<compile_context>
chip_gen: v7x
topology: tpu7x:2x2x1
jax: 0.10.0
libtpu: 0.0.40
codegen_flags: <defaults>
</compile_context>

<pallas_src>
import functools

import jax
import jax.numpy as jnp
from jax.experimental import pallas as pl
from jax.experimental.pallas import tpu as pltpu

# dot_general dimension numbers: contract the leading dim of both operands
# (transposed-LHS matmul) for the GraphNorm "scatter back" so we do not need a
# transposed copy of the batch mask for that step.
_TN = (((0,), (0,)), ((), ()))


def cheshire_kernel(N, ROW_TILE, POOL_TILE, C, lhat_resident,
                    feat_ref, wenc_ref, benc_ref,
                    gamma_ref, beta_ref, mscale_ref,
                    mask_bn_ref, mask_nb_ref, counts_ref,
                    lhat_ref, wcheb_ref, chebb_ref,
                    wlin_ref, blin_ref,
                    out_ref,
                    *scratch):
    f32 = jnp.float32
    if lhat_resident:
        (xc_ref,) = scratch
    else:
        lbuf_ref, dma_sem, lapA_ref, lapB_ref, xc_ref = scratch

    B = mask_bn_ref.shape[0]

    # ---- 1) linear encoder + Hardtanh --------------------------------------
    x = jnp.dot(feat_ref[...], wenc_ref[...], preferred_element_type=f32) + benc_ref[...]
    x = jnp.clip(x, -1.0, 1.0)

    # ---- 2) GraphNorm (eval mode) -------------------------------------------
    m_bn = mask_bn_ref[...]                              # [B, N]
    inv_cnt = 1.0 / counts_ref[...]                      # [B, 1] exact (counts >= 1)
    mean_g = jnp.dot(m_bn, x, preferred_element_type=f32) * inv_cnt              # [B, E]
    mean_n = jax.lax.dot_general(m_bn, mean_g, _TN, preferred_element_type=f32)  # [N, E]
    ctr = x - mean_n * mscale_ref[...]
    var_g = jnp.dot(m_bn, ctr * ctr, preferred_element_type=f32) * inv_cnt
    var_n = jax.lax.dot_general(m_bn, var_g, _TN, preferred_element_type=f32)
    x = gamma_ref[...] * ctr * jax.lax.rsqrt(var_n + 1e-5) + beta_ref[...]
    # TODO(synk): AlphaDropout is stochastic at train time; eval-mode identity here.

    # ---- 3) ChebConv, K=3, lambda_max=2 -------------------------------------
    #   conv = x (W0 - W2) + L_hat (x W1) + 2 L_hat (L_hat (x W2)) + b
    # One fused projection (K = emb_dim); both O(N^2) products run at conv width.
    proj = jnp.dot(x, wcheb_ref[...], preferred_element_type=f32)   # [N, 3C]
    p0 = proj[:, :C]                 # x (W0 - W2)
    rhs01 = proj[:, C:]              # [N, 2C] = [x W1 | x W2]

    if lhat_resident:
        # L_hat held in VMEM (bf16) -> no HBM re-streaming, no DMA bookkeeping.
        L = lhat_ref[...]
        lap01 = jnp.dot(L, rhs01.astype(jnp.bfloat16), preferred_element_type=f32)
        lap2 = jnp.dot(L, (2.0 * lap01[:, C:]).astype(jnp.bfloat16),
                       preferred_element_type=f32)
        conv = p0 + lap01[:, :C] + lap2 + chebb_ref[...]
    else:
        n_panels = N // ROW_TILE
        n_full_pairs = n_panels // 2
        has_tail = (n_panels % 2) == 1

        def lap_stream_matmul(rhs_f32, dst_ref):
            """dst_ref <- L_hat @ rhs, streaming bf16 row panels of L_hat from HBM
            with a 2-deep manual DMA pipeline; buffer slots are static (loop is
            unrolled by 2), only the look-ahead start is conditional."""
            rhs = rhs_f32.astype(jnp.bfloat16)

            def panel_copy(i, slot):
                start = pl.multiple_of(i * ROW_TILE, ROW_TILE)
                return pltpu.make_async_copy(
                    lhat_ref.at[pl.ds(start, ROW_TILE), :],
                    lbuf_ref.at[slot],
                    dma_sem.at[slot])

            def panel_compute(i, slot):
                start = pl.multiple_of(i * ROW_TILE, ROW_TILE)
                dst_ref[pl.ds(start, ROW_TILE), :] = jnp.dot(
                    lbuf_ref[slot], rhs, preferred_element_type=f32)

            panel_copy(0, 0).start()

            def pair_body(p, carry):
                i = 2 * p
                panel_copy(i + 1, 1).start()        # always valid inside full pairs
                panel_copy(i, 0).wait()
                panel_compute(i, 0)

                @pl.when(i + 2 < n_panels)
                def _():
                    panel_copy(i + 2, 0).start()

                panel_copy(i + 1, 1).wait()
                panel_compute(i + 1, 1)
                return carry

            jax.lax.fori_loop(0, n_full_pairs, pair_body, 0)

            if has_tail:                            # static Python epilogue
                t = n_panels - 1
                panel_copy(t, 0).wait()
                panel_compute(t, 0)

        lap_stream_matmul(rhs01, lapA_ref)                   # [N, 2C] = L [xW1 | xW2]
        lap_stream_matmul(2.0 * lapA_ref[:, C:], lapB_ref)   # [N, C]  = L (2 L xW2)
        conv = p0 + lapA_ref[:, :C] + lapB_ref[...] + chebb_ref[...]

    xc = jnp.clip(conv, -1.0, 1.0)       # [N, C], Hardtanh
    xc_ref[...] = xc                     # stash for chunked pooling reads

    # ---- 4) pooling: (max - min) and sqrt(mean(x^2)) per graph ---------------
    sq_g = jnp.dot(m_bn, xc * xc, preferred_element_type=f32) * inv_cnt
    y_norm = jnp.sqrt(sq_g)                                   # [B, C]

    # Chunked segment max/min: node-major mask column so N stays on sublanes;
    # temp is O(B * POOL_TILE * C). xc is clipped to [-1, 1] so the +-1 sentinels
    # are exact and cannot overflow.
    n_chunks = N // POOL_TILE

    def pool_body(j, carry):
        maxp, minp = carry
        start = pl.multiple_of(j * POOL_TILE, POOL_TILE)
        xs = xc_ref[pl.ds(start, POOL_TILE), :]               # [T, C]
        ms = mask_nb_ref[pl.ds(start, POOL_TILE), :]          # [T, B]
        member = ms[:, :, None] > 0.0                         # [T, B, 1]
        xb = xs[:, None, :]                                   # [T, 1, C]
        maxp = jnp.maximum(maxp, jnp.max(jnp.where(member, xb, -1.0), axis=0))
        minp = jnp.minimum(minp, jnp.min(jnp.where(member, xb, 1.0), axis=0))
        return maxp, minp

    maxp, minp = jax.lax.fori_loop(
        0, n_chunks, pool_body,
        (jnp.full((B, C), -1.0, f32), jnp.full((B, C), 1.0, f32)))

    y = jnp.concatenate([maxp - minp, y_norm], axis=1)        # [B, 2C]

    # ---- 5) final linear ------------------------------------------------------
    out_ref[...] = jnp.dot(y, wlin_ref[...], preferred_element_type=f32) + blin_ref[...]


def _vmem_capacity_bytes():
    try:
        info = pltpu.get_tpu_info()
        cap = getattr(info, "vmem_capacity_bytes", None)
        if cap:
            return int(cap)
    except Exception:
        pass
    return 64 * 1024 * 1024   # conservative fallback (v7x per-core VMEM)


def cheshire_forward(feature, edge_index, batch, params, num_graphs,
                     row_tile=None, lhat_in_vmem=None):
    N = feature.shape[0]
    B = int(num_graphs)
    input_dim = feature.shape[1]
    E = params["w_enc"].shape[1]
    C = params["cheb_b"].shape[1]
    two_c = params["w_lin"].shape[1]

    # Pad node count to a lane-aligned multiple of 128: unmasked vld/vst on every
    # N-sized lane axis and clean MXU K tiling. Padded nodes are inert (see below).
    N_pad = max(128, ((N + 127) // 128) * 128)

    if row_tile is None:
        # Streamed-panel height: 256 fills the v6e/v7x MXU M-dim; 128 already
        # saturates v5e's 128-wide MXU and is the fallback when 256 !| N_pad.
        row_tile = 256 if N_pad % 256 == 0 else 128
    row_tile = min(row_tile, N_pad)
    assert N_pad % row_tile == 0, "row_tile must divide the padded node count"
    pool_tile = min(128, N_pad)   # bounds the pooling temp to O(B*128*C)

    # --- glue: dense scaled Laplacian (sym norm, lambda_max=2): L_hat = -D^-1/2 A D^-1/2.
    # Degree from edge_index[0] (as in PyG get_laplacian); assumes a symmetric edge list.
    row, col = edge_index[0], edge_index[1]
    deg = jnp.zeros((N_pad,), jnp.float32).at[row].add(1.0)
    dinv = jnp.where(deg > 0, jax.lax.rsqrt(deg), 0.0)
    w = -dinv[row] * dinv[col]
    lhat = (jnp.zeros((N_pad, N_pad), jnp.float32).at[row, col].add(w)
            ).astype(jnp.bfloat16)                 # bf16: the only O(N^2) operand
    # TODO(synk): fp8(e4m3) L_hat on v7x (int8+scale on v5e/v6e) would halve the
    #             dominant N^2 HBM stream; needs an accuracy sign-off first.

    # --- glue: pad nodes up to N_pad. Padded nodes get graph id B (matches no one-hot
    # row), zero features and zero Laplacian rows/cols, so they never influence the
    # stats, the real nodes' conv outputs, or the pooling.
    feat_p = jnp.zeros((N_pad, input_dim), jnp.float32).at[:N].set(
        feature.astype(jnp.float32))
    batch_p = jnp.full((N_pad,), B, jnp.int32).at[:N].set(batch.astype(jnp.int32))

    mask_bn = (jnp.arange(B)[:, None] == batch_p[None, :]).astype(jnp.float32)  # [B, N_pad]
    mask_nb = mask_bn.T                                                          # [N_pad, B]
    counts = jnp.maximum(jnp.sum(mask_bn, axis=1, keepdims=True), 1.0)           # [B, 1]

    # Fused / pre-folded Chebyshev weights: [E, 3C] = [W0 - W2 | W1 | W2]
    wcheb = jnp.concatenate(
        [params["cheb_w0"] - params["cheb_w2"], params["cheb_w1"], params["cheb_w2"]],
        axis=1)

    # --- memory policy: keep L_hat VMEM-resident when it fits, else stream it ----
    vmem_cap = _vmem_capacity_bytes()
    lhat_bytes = N_pad * N_pad * 2
    small_inputs = (feat_p, params["w_enc"], params["b_enc"], params["gn_weight"],
                    params["gn_bias"], params["gn_mean_scale"], mask_bn, mask_nb,
                    counts, wcheb, params["cheb_b"], params["w_lin"], params["b_lin"])
    small_in_bytes = sum(int(a.size) * a.dtype.itemsize for a in small_inputs)
    xc_bytes = 4 * N_pad * C
    work_bytes = 4 * N_pad * (E + 6 * C) + 2 * 4 * pool_tile * B * C
    # x2 on inputs: BlockSpec inputs may be double-buffered even at grid=(1,).
    resident_need = 2 * (small_in_bytes + lhat_bytes) + xc_bytes + work_bytes
    stream_scratch = 2 * row_tile * N_pad * 2 + 4 * N_pad * 3 * C + xc_bytes
    stream_need = 2 * small_in_bytes + stream_scratch + work_bytes

    if lhat_in_vmem is None:
        lhat_in_vmem = resident_need <= int(0.8 * vmem_cap)

    need = resident_need if lhat_in_vmem else stream_need
    vmem_limit = int(max(32 * 1024 * 1024,
                         min(vmem_cap - 2 * 1024 * 1024, need + 8 * 1024 * 1024)))

    def vmem_spec(shape):
        return pl.BlockSpec(shape, lambda i: (0,) * len(shape))

    lhat_spec = (vmem_spec(lhat.shape) if lhat_in_vmem
                 else pl.BlockSpec(memory_space=pl.ANY))   # streamed: stays in HBM

    in_specs = [
        vmem_spec(feat_p.shape),
        vmem_spec(params["w_enc"].shape), vmem_spec(params["b_enc"].shape),
        vmem_spec(params["gn_weight"].shape), vmem_spec(params["gn_bias"].shape),
        vmem_spec(params["gn_mean_scale"].shape),
        vmem_spec(mask_bn.shape), vmem_spec(mask_nb.shape), vmem_spec(counts.shape),
        lhat_spec,
        vmem_spec(wcheb.shape), vmem_spec(params["cheb_b"].shape),
        vmem_spec(params["w_lin"].shape), vmem_spec(params["b_lin"].shape),
    ]

    if lhat_in_vmem:
        scratch_shapes = [pltpu.VMEM((N_pad, C), jnp.float32)]          # xc (pooling)
    else:
        scratch_shapes = [
            pltpu.VMEM((2, row_tile, N_pad), jnp.bfloat16),             # L_hat panels (dbl buf)
            pltpu.SemaphoreType.DMA((2,)),
            pltpu.VMEM((N_pad, 2 * C), jnp.float32),                    # L [xW1 | xW2]
            pltpu.VMEM((N_pad, C), jnp.float32),                        # L (2 L xW2)
            pltpu.VMEM((N_pad, C), jnp.float32),                        # xc (pooling)
        ]

    inputs = (feat_p, params["w_enc"], params["b_enc"],
              params["gn_weight"], params["gn_bias"], params["gn_mean_scale"],
              mask_bn, mask_nb, counts,
              lhat,
              wcheb, params["cheb_b"], params["w_lin"], params["b_lin"])

    return pl.pallas_call(
        functools.partial(cheshire_kernel, N_pad, row_tile, pool_tile, C, lhat_in_vmem),
        grid=(1,),
        in_specs=in_specs,
        out_specs=vmem_spec((B, two_c)),
        out_shape=jax.ShapeDtypeStruct((B, two_c), jnp.float32),
        scratch_shapes=scratch_shapes,
        compiler_params=pltpu.CompilerParams(
            dimension_semantics=("arbitrary",),
            vmem_limit_bytes=vmem_limit,
        ),
    )(*inputs)


def init_params(key, input_dim, emb_dim, conv_dim):
    ks = jax.random.split(key, 8)

    def u(k, shape, fan_in):
        lim = 1.0 / jnp.sqrt(jnp.float32(fan_in))
        return jax.random.uniform(k, shape, jnp.float32, -lim, lim)

    p = {}
    p["w_enc"] = u(ks[0], (input_dim, emb_dim), input_dim)
    p["b_enc"] = u(ks[1], (1, emb_dim), input_dim)
    # GraphNorm defaults: weight=1, bias=0, mean_scale=1
    p["gn_weight"] = jnp.ones((1, emb_dim), jnp.float32)
    p["gn_bias"] = jnp.zeros((1, emb_dim), jnp.float32)
    p["gn_mean_scale"] = jnp.ones((1, emb_dim), jnp.float32)
    # ChebConv K=3: three weight matrices + one bias
    p["cheb_w0"] = u(ks[2], (emb_dim, conv_dim), emb_dim)
    p["cheb_w1"] = u(ks[3], (emb_dim, conv_dim), emb_dim)
    p["cheb_w2"] = u(ks[4], (emb_dim, conv_dim), emb_dim)
    p["cheb_b"] = jnp.zeros((1, conv_dim), jnp.float32)
    # Final Linear(2*conv_dim, 2*conv_dim), stored as [in, out]
    p["w_lin"] = u(ks[5], (2 * conv_dim, 2 * conv_dim), 2 * conv_dim)
    p["b_lin"] = u(ks[6], (1, 2 * conv_dim), 2 * conv_dim)
    return p


if __name__ == "__main__":
    INPUT_DIM, EMB_DIM, CONV_DIM = 8, 32, 16
    N_PER_GRAPH, NUM_GRAPHS = 96, 2      # N=192 -> padded to 256
    N = N_PER_GRAPH * NUM_GRAPHS

    key = jax.random.PRNGKey(0)
    k_feat, k_param = jax.random.split(key)

    feature = jax.random.normal(k_feat, (N, INPUT_DIM), jnp.float32)

    # undirected ring within each graph (symmetric edge list)
    edges = []
    for g in range(NUM_GRAPHS):
        base = g * N_PER_GRAPH
        for i in range(N_PER_GRAPH):
            u_, v_ = base + i, base + (i + 1) % N_PER_GRAPH
            edges.append((u_, v_))
            edges.append((v_, u_))
    edge_index = jnp.array(edges, dtype=jnp.int32).T          # [2, num_edges]
    batch = jnp.repeat(jnp.arange(NUM_GRAPHS, dtype=jnp.int32), N_PER_GRAPH)  # [N]

    params = init_params(k_param, INPUT_DIM, EMB_DIM, CONV_DIM)

    # Auto memory policy (VMEM-resident L_hat at this size).
    out = cheshire_forward(feature, edge_index, batch, params, NUM_GRAPHS)
    out = jax.block_until_ready(out)

    # Also exercise the streamed large-N fallback (2 row panels, double-buffered DMA).
    out_s = cheshire_forward(feature, edge_index, batch, params, NUM_GRAPHS,
                             row_tile=128, lhat_in_vmem=False)
    out_s = jax.block_until_ready(out_s)

    assert out.shape == (NUM_GRAPHS, 2 * CONV_DIM) and out.dtype == jnp.float32
    assert bool(jnp.isfinite(out).all()) and bool(jnp.isfinite(out_s).all())
    assert bool(jnp.allclose(out, out_s, rtol=1e-3, atol=1e-3))
    print("KERNEL_OK")
</pallas_src>

<mosaic_0001>
module attributes {stable_mosaic.version = 11 : i64} {
  func.func @cheshire_kernel(%arg0: i32, %arg1: memref<256x8xf32, #tpu.memory_space<vmem>>, %arg2: memref<8x32xf32, #tpu.memory_space<vmem>>, %arg3: memref<1x32xf32, #tpu.memory_space<vmem>>, %arg4: memref<1x32xf32, #tpu.memory_space<vmem>>, %arg5: memref<1x32xf32, #tpu.memory_space<vmem>>, %arg6: memref<1x32xf32, #tpu.memory_space<vmem>>, %arg7: memref<2x256xf32, #tpu.memory_space<vmem>>, %arg8: memref<256x2xf32, #tpu.memory_space<vmem>>, %arg9: memref<2x1xf32, #tpu.memory_space<vmem>>, %arg10: memref<256x256xbf16, #tpu.memory_space<vmem>>, %arg11: memref<32x48xf32, #tpu.memory_space<vmem>>, %arg12: memref<1x16xf32, #tpu.memory_space<vmem>>, %arg13: memref<32x32xf32, #tpu.memory_space<vmem>>, %arg14: memref<1x32xf32, #tpu.memory_space<vmem>>, %arg15: memref<2x32xf32, #tpu.memory_space<vmem>>, %arg16: memref<256x16xf32, #tpu.memory_space<vmem>>) attributes {dimension_semantics = [#tpu.dimension_semantics<arbitrary>], iteration_bounds = array<i64: 1>, scalar_prefetch = 0 : i64, scratch_operands = 1 : i64, tpu.core_type = #tpu.core_type<tc>, window_params = [{pipeline_mode = #tpu.pipeline_mode<synchronous>, transform_indices = @transform_0, window_bounds = array<i64: 256, 8>}, {pipeline_mode = #tpu.pipeline_mode<synchronous>, transform_indices = @transform_1, window_bounds = array<i64: 8, 32>}, {pipeline_mode = #tpu.pipeline_mode<synchronous>, transform_indices = @transform_2, window_bounds = array<i64: 1, 32>}, {pipeline_mode = #tpu.pipeline_mode<synchronous>, transform_indices = @transform_3, window_bounds = array<i64: 1, 32>}, {pipeline_mode = #tpu.pipeline_mode<synchronous>, transform_indices = @transform_4, window_bounds = array<i64: 1, 32>}, {pipeline_mode = #tpu.pipeline_mode<synchronous>, transform_indices = @transform_5, window_bounds = array<i64: 1, 32>}, {pipeline_mode = #tpu.pipeline_mode<synchronous>, transform_indices = @transform_6, window_bounds = array<i64: 2, 256>}, {pipeline_mode = #tpu.pipeline_mode<synchronous>, transform_indices = @transform_7, window_bounds = array<i64: 256, 2>}, {pipeline_mode = #tpu.pipeline_mode<synchronous>, transform_indices = @transform_8, window_bounds = array<i64: 2, 1>}, {pipeline_mode = #tpu.pipeline_mode<synchronous>, transform_indices = @transform_9, window_bounds = array<i64: 256, 256>}, {pipeline_mode = #tpu.pipeline_mode<synchronous>, transform_indices = @transform_10, window_bounds = array<i64: 32, 48>}, {pipeline_mode = #tpu.pipeline_mode<synchronous>, transform_indices = @transform_11, window_bounds = array<i64: 1, 16>}, {pipeline_mode = #tpu.pipeline_mode<synchronous>, transform_indices = @transform_12, window_bounds = array<i64: 32, 32>}, {pipeline_mode = #tpu.pipeline_mode<synchronous>, transform_indices = @transform_13, window_bounds = array<i64: 1, 32>}, {pipeline_mode = #tpu.pipeline_mode<synchronous>, transform_indices = @transform_14, window_bounds = array<i64: 2, 32>}]} {
    %c0 = arith.constant 0 : index
    %c0_0 = arith.constant 0 : index
    %0 = vector.load %arg1[%c0, %c0_0] : memref<256x8xf32, #tpu.memory_space<vmem>>, vector<256x8xf32>
    %c0_1 = arith.constant 0 : index
    %c0_2 = arith.constant 0 : index
    %1 = vector.load %arg2[%c0_1, %c0_2] : memref<8x32xf32, #tpu.memory_space<vmem>>, vector<8x32xf32>
    %cst = arith.constant dense<0.000000e+00> : vector<256x32xf32>
    %2 = tpu.matmul %0, %1, %cst {dimension_numbers = #tpu.dot_dimension_numbers<[1], [0], [0], [1], [0, 0, 1, 1], [], []>} : vector<256x8xf32>, vector<8x32xf32>, vector<256x32xf32> -> vector<256x32xf32>
    %c0_3 = arith.constant 0 : index
    %c0_4 = arith.constant 0 : index
    %3 = vector.load %arg3[%c0_3, %c0_4] : memref<1x32xf32, #tpu.memory_space<vmem>>, vector<1x32xf32>
    %4 = vector.broadcast %3 : vector<1x32xf32> to vector<256x32xf32>
    %5 = arith.addf %2, %4 : vector<256x32xf32>
    %cst_5 = arith.constant -1.000000e+00 : f32
    %cst_6 = arith.constant 1.000000e+00 : f32
    %6 = vector.broadcast %cst_5 : f32 to vector<256x32xf32>
    %7 = arith.maximumf %6, %5 : vector<256x32xf32>
    %8 = vector.broadcast %cst_6 : f32 to vector<256x32xf32>
    %9 = arith.minimumf %8, %7 : vector<256x32xf32>
    %c0_7 = arith.constant 0 : index
    %c0_8 = arith.constant 0 : index
    %10 = vector.load %arg7[%c0_7, %c0_8] : memref<2x256xf32, #tpu.memory_space<vmem>>, vector<2x256xf32>
    %c0_9 = arith.constant 0 : index
    %c0_10 = arith.constant 0 : index
    %11 = vector.load %arg9[%c0_9, %c0_10] : memref<2x1xf32, #tpu.memory_space<vmem>>, vector<2x1xf32>
    %cst_11 = arith.constant 1.000000e+00 : f32
    %12 = vector.broadcast %cst_11 : f32 to vector<2x1xf32>
    %13 = arith.divf %12, %11 : vector<2x1xf32>
    %cst_12 = arith.constant dense<0.000000e+00> : vector<2x32xf32>
    %14 = tpu.matmul %10, %9, %cst_12 {dimension_numbers = #tpu.dot_dimension_numbers<[1], [0], [0], [1], [0, 0, 1, 1], [], []>} : vector<2x256xf32>, vector<256x32xf32>, vector<2x32xf32> -> vector<2x32xf32>
    %15 = vector.broadcast %13 : vector<2x1xf32> to vector<2x32xf32>
    %16 = arith.mulf %14, %15 : vector<2x32xf32>
    %cst_13 = arith.constant dense<0.000000e+00> : vector<256x32xf32>
    %17 = tpu.matmul %10, %16, %cst_13 {dimension_numbers = #tpu.dot_dimension_numbers<[0], [0], [1], [1], [0, 1, 1, 1], [], []>} : vector<2x256xf32>, vector<2x32xf32>, vector<256x32xf32> -> vector<256x32xf32>
    %c0_14 = arith.constant 0 : index
    %c0_15 = arith.constant 0 : index
    %18 = vector.load %arg6[%c0_14, %c0_15] : memref<1x32xf32, #tpu.memory_space<vmem>>, vector<1x32xf32>
    %19 = vector.broadcast %18 : vector<1x32xf32> to vector<256x32xf32>
    %20 = arith.mulf %17, %19 : vector<256x32xf32>
    %21 = arith.subf %9, %20 : vector<256x32xf32>
    %22 = arith.mulf %21, %21 : vector<256x32xf32>
    %cst_16 = arith.constant dense<0.000000e+00> : vector<2x32xf32>
    %23 = tpu.matmul %10, %22, %cst_16 {dimension_numbers = #tpu.dot_dimension_numbers<[1], [0], [0], [1], [0, 0, 1, 1], [], []>} : vector<2x256xf32>, vector<256x32xf32>, vector<2x32xf32> -> vector<2x32xf32>
    %24 = vector.broadcast %13 : vector<2x1xf32> to vector<2x32xf32>
    %25 = arith.mulf %23, %24 : vector<2x32xf32>
    %cst_17 = arith.constant dense<0.000000e+00> : vector<256x32xf32>
    %26 = tpu.matmul %10, %25, %cst_17 {dimension_numbers = #tpu.dot_dimension_numbers<[0], [0], [1], [1], [0, 1, 1, 1], [], []>} : vector<2x256xf32>, vector<2x32xf32>, vector<256x32xf32> -> vector<256x32xf32>
    %c0_18 = arith.constant 0 : index
    %c0_19 = arith.constant 0 : index
    %27 = vector.load %arg4[%c0_18, %c0_19] : memref<1x32xf32, #tpu.memory_space<vmem>>, vector<1x32xf32>
    %28 = vector.broadcast %27 : vector<1x32xf32> to vector<256x32xf32>
    %29 = arith.mulf %28, %21 : vector<256x32xf32>
    %cst_20 = arith.constant 9.99999974E-6 : f32
    %30 = vector.broadcast %cst_20 : f32 to vector<256x32xf32>
    %31 = arith.addf %26, %30 : vector<256x32xf32>
    %32 = math.rsqrt %31 : vector<256x32xf32>
    %33 = arith.mulf %29, %32 : vector<256x32xf32>
    %c0_21 = arith.constant 0 : index
    %c0_22 = arith.constant 0 : index
    %34 = vector.load %arg5[%c0_21, %c0_22] : memref<1x32xf32, #tpu.memory_space<vmem>>, vector<1x32xf32>
    %35 = vector.broadcast %34 : vector<1x32xf32> to vector<256x32xf32>
    %36 = arith.addf %33, %35 : vector<256x32xf32>
    %c0_23 = arith.constant 0 : index
    %c0_24 = arith.constant 0 : index
    %37 = vector.load %arg11[%c0_23, %c0_24] : memref<32x48xf32, #tpu.memory_space<vmem>>, vector<32x48xf32>
    %cst_25 = arith.constant dense<0.000000e+00> : vector<256x48xf32>
    %38 = tpu.matmul %36, %37, %cst_25 {dimension_numbers = #tpu.dot_dimension_numbers<[1], [0], [0], [1], [0, 0, 1, 1], [], []>} : vector<256x32xf32>, vector<32x48xf32>, vector<256x48xf32> -> vector<256x48xf32>
    %39 = vector.extract_strided_slice %38 {offsets = [0, 0], sizes = [256, 16], strides = [1, 1]} : vector<256x48xf32> to vector<256x16xf32>
    %40 = vector.extract_strided_slice %38 {offsets = [0, 16], sizes = [256, 32], strides = [1, 1]} : vector<256x48xf32> to vector<256x32xf32>
    %c0_26 = arith.constant 0 : index
    %c0_27 = arith.constant 0 : index
    %41 = vector.load %arg10[%c0_26, %c0_27] : memref<256x256xbf16, #tpu.memory_space<vmem>>, vector<256x256xbf16>
    %42 = arith.truncf %40 : vector<256x32xf32> to vector<256x32xbf16>
    %cst_28 = arith.constant dense<0.000000e+00> : vector<256x32xf32>
    %43 = tpu.matmul %41, %42, %cst_28 {dimension_numbers = #tpu.dot_dimension_numbers<[1], [0], [0], [1], [0, 0, 1, 1], [], []>} : vector<256x256xbf16>, vector<256x32xbf16>, vector<256x32xf32> -> vector<256x32xf32>
    %44 = vector.extract_strided_slice %43 {offsets = [0, 16], sizes = [256, 16], strides = [1, 1]} : vector<256x32xf32> to vector<256x16xf32>
    %cst_29 = arith.constant 2.000000e+00 : f32
    %45 = vector.broadcast %cst_29 : f32 to vector<256x16xf32>
    %46 = arith.mulf %45, %44 : vector<256x16xf32>
    %47 = arith.truncf %46 : vector<256x16xf32> to vector<256x16xbf16>
    %cst_30 = arith.constant dense<0.000000e+00> : vector<256x16xf32>
    %48 = tpu.matmul %41, %47, %cst_30 {dimension_numbers = #tpu.dot_dimension_numbers<[1], [0], [0], [1], [0, 0, 1, 1], [], []>} : vector<256x256xbf16>, vector<256x16xbf16>, vector<256x16xf32> -> vector<256x16xf32>
    %49 = vector.extract_strided_slice %43 {offsets = [0, 0], sizes = [256, 16], strides = [1, 1]} : vector<256x32xf32> to vector<256x16xf32>
    %50 = arith.addf %39, %49 : vector<256x16xf32>
    %51 = arith.addf %50, %48 : vector<256x16xf32>
    %c0_31 = arith.constant 0 : index
    %c0_32 = arith.constant 0 : index
    %52 = vector.load %arg12[%c0_31, %c0_32] : memref<1x16xf32, #tpu.memory_space<vmem>>, vector<1x16xf32>
    %53 = vector.broadcast %52 : vector<1x16xf32> to vector<256x16xf32>
    %54 = arith.addf %51, %53 : vector<256x16xf32>
    %cst_33 = arith.constant -1.000000e+00 : f32
    %cst_34 = arith.constant 1.000000e+00 : f32
    %55 = vector.broadcast %cst_33 : f32 to vector<256x16xf32>
    %56 = arith.maximumf %55, %54 : vector<256x16xf32>
    %57 = vector.broadcast %cst_34 : f32 to vector<256x16xf32>
    %58 = arith.minimumf %57, %56 : vector<256x16xf32>
    %c0_35 = arith.constant 0 : index
    %c0_36 = arith.constant 0 : index
    %59 = vector.load %arg16[%c0_35, %c0_36] : memref<256x16xf32, #tpu.memory_space<vmem>>, vector<256x16xf32>
    tpu.vector_store %arg16[%c0_35, %c0_36], %58 {strides = array<i32>} : memref<256x16xf32, #tpu.memory_space<vmem>>, vector<256x16xf32>,
    %60 = arith.mulf %58, %58 : vector<256x16xf32>
    %cst_37 = arith.constant dense<0.000000e+00> : vector<2x16xf32>
    %61 = tpu.matmul %10, %60, %cst_37 {dimension_numbers = #tpu.dot_dimension_numbers<[1], [0], [0], [1], [0, 0, 1, 1], [], []>} : vector<2x256xf32>, vector<256x16xf32>, vector<2x16xf32> -> vector<2x16xf32>
    %62 = vector.broadcast %13 : vector<2x1xf32> to vector<2x16xf32>
    %63 = arith.mulf %61, %62 : vector<2x16xf32>
    %64 = math.sqrt %63 : vector<2x16xf32>
    %cst_38 = arith.constant -1.000000e+00 : f32
    %65 = vector.broadcast %cst_38 : f32 to vector<2x16xf32>
    %cst_39 = arith.constant 1.000000e+00 : f32
    %66 = vector.broadcast %cst_39 : f32 to vector<2x16xf32>
    %c0_i32 = arith.constant 0 : i32
    %c2_i32 = arith.constant 2 : i32
    %67 = arith.addi %c0_i32, %c2_i32 : i32
    %c1_i32 = arith.constant 1 : i32
    %68:2 = scf.for %arg17 = %c0_i32 to %67 step %c1_i32 iter_args(%arg18 = %65, %arg19 = %66) -> (vector<2x16xf32>, vector<2x16xf32>)  : i32 {
      %c128_i32 = arith.constant 128 : i32
      %77 = arith.muli %arg17, %c128_i32 : i32
      %78 = tpu.assume_multiple %77, 128 : i32
      %79 = arith.index_cast %78 : i32 to index
      %c0_48 = arith.constant 0 : index
      %80 = vector.load %arg16[%79, %c0_48] : memref<256x16xf32, #tpu.memory_space<vmem>>, vector<128x16xf32>
      %81 = arith.index_cast %78 : i32 to index
      %c0_49 = arith.constant 0 : index
      %82 = vector.load %arg8[%81, %c0_49] : memref<256x2xf32, #tpu.memory_space<vmem>>, vector<128x2xf32>
      %83 = vector.shape_cast %82 : vector<128x2xf32> to vector<128x2x1xf32>
      %cst_50 = arith.constant 0.000000e+00 : f32
      %84 = vector.broadcast %cst_50 : f32 to vector<128x2x1xf32>
      %85 = arith.cmpf ogt, %83, %84 : vector<128x2x1xf32>
      %86 = vector.shape_cast %80 : vector<128x16xf32> to vector<128x1x16xf32>
      %cst_51 = arith.constant -1.000000e+00 : f32
      %87 = vector.shape_cast %85 : vector<128x2x1xi1> to vector<128x2x1xi1>
      %88 = vector.broadcast %87 : vector<128x2x1xi1> to vector<128x2x16xi1>
      %89 = vector.shape_cast %86 : vector<128x1x16xf32> to vector<128x1x16xf32>
      %90 = vector.broadcast %89 : vector<128x1x16xf32> to vector<128x2x16xf32>
      %91 = vector.broadcast %cst_51 : f32 to vector<128x2x16xf32>
      %92 = arith.select %88, %90, %91 : vector<128x2x16xi1>, vector<128x2x16xf32>
      %cst_52 = arith.constant dense<0xFF800000> : vector<2x16xf32>
      %93 = vector.multi_reduction <maximumf>, %92, %cst_52 [0] : vector<128x2x16xf32> to vector<2x16xf32>
      %94 = arith.maximumf %arg18, %93 : vector<2x16xf32>
      %cst_53 = arith.constant 1.000000e+00 : f32
      %95 = vector.shape_cast %85 : vector<128x2x1xi1> to vector<128x2x1xi1>
      %96 = vector.broadcast %95 : vector<128x2x1xi1> to vector<128x2x16xi1>
      %97 = vector.shape_cast %86 : vector<128x1x16xf32> to vector<128x1x16xf32>
      %98 = vector.broadcast %97 : vector<128x1x16xf32> to vector<128x2x16xf32>
      %99 = vector.broadcast %cst_53 : f32 to vector<128x2x16xf32>
      %100 = arith.select %96, %98, %99 : vector<128x2x16xi1>, vector<128x2x16xf32>
      %cst_54 = arith.constant dense<0x7F800000> : vector<2x16xf32>
      %101 = vector.multi_reduction <minimumf>, %100, %cst_54 [0] : vector<128x2x16xf32> to vector<2x16xf32>
      %102 = arith.minimumf %arg19, %101 : vector<2x16xf32>
      scf.yield %94, %102 : vector<2x16xf32>, vector<2x16xf32>
    }
    %c2_i32_40 = arith.constant 2 : i32
    %69 = arith.subf %68#0, %68#1 : vector<2x16xf32>
    %70 = tpu.concatenate %69, %64 in 1 : vector<2x16xf32>, vector<2x16xf32> -> vector<2x32xf32>
    %c0_41 = arith.constant 0 : index
    %c0_42 = arith.constant 0 : index
    %71 = vector.load %arg13[%c0_41, %c0_42] : memref<32x32xf32, #tpu.memory_space<vmem>>, vector<32x32xf32>
    %cst_43 = arith.constant dense<0.000000e+00> : vector<2x32xf32>
    %72 = tpu.matmul %70, %71, %cst_43 {dimension_numbers = #tpu.dot_dimension_numbers<[1], [0], [0], [1], [0, 0, 1, 1], [], []>} : vector<2x32xf32>, vector<32x32xf32>, vector<2x32xf32> -> vector<2x32xf32>
    %c0_44 = arith.constant 0 : index
    %c0_45 = arith.constant 0 : index
    %73 = vector.load %arg14[%c0_44, %c0_45] : memref<1x32xf32, #tpu.memory_space<vmem>>, vector<1x32xf32>
    %74 = vector.broadcast %73 : vector<1x32xf32> to vector<2x32xf32>
    %75 = arith.addf %72, %74 : vector<2x32xf32>
    %c0_46 = arith.constant 0 : index
    %c0_47 = arith.constant 0 : index
    %76 = vector.load %arg15[%c0_46, %c0_47] : memref<2x32xf32, #tpu.memory_space<vmem>>, vector<2x32xf32>
    tpu.vector_store %arg15[%c0_46, %c0_47], %75 {strides = array<i32>} : memref<2x32xf32, #tpu.memory_space<vmem>>, vector<2x32xf32>,
    return
  }
  func.func @transform_0(%arg0: i32) -> (i32, i32) {
    %c0_i32 = arith.constant 0 : i32
    %c0_i32_0 = arith.constant 0 : i32
    %c0_i32_1 = arith.constant 0 : i32
    return %c0_i32, %c0_i32_0 : i32, i32
  }
  func.func @transform_1(%arg0: i32) -> (i32, i32) {
    %c0_i32 = arith.constant 0 : i32
    %c0_i32_0 = arith.constant 0 : i32
    %c0_i32_1 = arith.constant 0 : i32
    return %c0_i32, %c0_i32_0 : i32, i32
  }
  func.func @transform_2(%arg0: i32) -> (i32, i32) {
    %c0_i32 = arith.constant 0 : i32
    %c0_i32_0 = arith.constant 0 : i32
    %c0_i32_1 = arith.constant 0 : i32
    return %c0_i32, %c0_i32_0 : i32, i32
  }
  func.func @transform_3(%arg0: i32) -> (i32, i32) {
    %c0_i32 = arith.constant 0 : i32
    %c0_i32_0 = arith.constant 0 : i32
    %c0_i32_1 = arith.constant 0 : i32
    return %c0_i32, %c0_i32_0 : i32, i32
  }
  func.func @transform_4(%arg0: i32) -> (i32, i32) {
    %c0_i32 = arith.constant 0 : i32
    %c0_i32_0 = arith.constant 0 : i32
    %c0_i32_1 = arith.constant 0 : i32
    return %c0_i32, %c0_i32_0 : i32, i32
  }
  func.func @transform_5(%arg0: i32) -> (i32, i32) {
    %c0_i32 = arith.constant 0 : i32
    %c0_i32_0 = arith.constant 0 : i32
    %c0_i32_1 = arith.constant 0 : i32
    return %c0_i32, %c0_i32_0 : i32, i32
  }
  func.func @transform_6(%arg0: i32) -> (i32, i32) {
    %c0_i32 = arith.constant 0 : i32
    %c0_i32_0 = arith.constant 0 : i32
    %c0_i32_1 = arith.constant 0 : i32
    return %c0_i32, %c0_i32_0 : i32, i32
  }
  func.func @transform_7(%arg0: i32) -> (i32, i32) {
    %c0_i32 = arith.constant 0 : i32
    %c0_i32_0 = arith.constant 0 : i32
    %c0_i32_1 = arith.constant 0 : i32
    return %c0_i32, %c0_i32_0 : i32, i32
  }
  func.func @transform_8(%arg0: i32) -> (i32, i32) {
    %c0_i32 = arith.constant 0 : i32
    %c0_i32_0 = arith.constant 0 : i32
    %c0_i32_1 = arith.constant 0 : i32
    return %c0_i32, %c0_i32_0 : i32, i32
  }
  func.func @transform_9(%arg0: i32) -> (i32, i32) {
    %c0_i32 = arith.constant 0 : i32
    %c0_i32_0 = arith.constant 0 : i32
    %c0_i32_1 = arith.constant 0 : i32
    return %c0_i32, %c0_i32_0 : i32, i32
  }
  func.func @transform_10(%arg0: i32) -> (i32, i32) {
    %c0_i32 = arith.constant 0 : i32
    %c0_i32_0 = arith.constant 0 : i32
    %c0_i32_1 = arith.constant 0 : i32
    return %c0_i32, %c0_i32_0 : i32, i32
  }
  func.func @transform_11(%arg0: i32) -> (i32, i32) {
    %c0_i32 = arith.constant 0 : i32
    %c0_i32_0 = arith.constant 0 : i32
    %c0_i32_1 = arith.constant 0 : i32
    return %c0_i32, %c0_i32_0 : i32, i32
  }
  func.func @transform_12(%arg0: i32) -> (i32, i32) {
    %c0_i32 = arith.constant 0 : i32
    %c0_i32_0 = arith.constant 0 : i32
    %c0_i32_1 = arith.constant 0 : i32
    return %c0_i32, %c0_i32_0 : i32, i32
  }
  func.func @transform_13(%arg0: i32) -> (i32, i32) {
    %c0_i32 = arith.constant 0 : i32
    %c0_i32_0 = arith.constant 0 : i32
    %c0_i32_1 = arith.constant 0 : i32
    return %c0_i32, %c0_i32_0 : i32, i32
  }
  func.func @transform_14(%arg0: i32) -> (i32, i32) {
    %c0_i32 = arith.constant 0 : i32
    %c0_i32_0 = arith.constant 0 : i32
    %c0_i32_1 = arith.constant 0 : i32
    return %c0_i32, %c0_i32_0 : i32, i32
  }
}

</mosaic_0001>

<llo_original>
// kernel: tpu_custom_call.1
$region0: #{tpu_custom_call.1}
  #allocation0 [shape = 'u32[]', space=smem, size = 0x4, offset = 0x4, fixed_abs, tag = 'smem constant byte address 0x4 - core index']
  #allocation1 [shape = 'u32[144,128]{1,0:T(1,128)}', space=vmem, size = 0x12000, scoped, tag = 'internal scratch']
  #allocation2 [shape = 'f32[256,16]{1,0:T(8,128)}', space=vmem, size = 0x20000, scoped, tag = 'scratch operand']
  %s0 = inlined_call_operand.vmem [shape: f32[256,8], index: 0, kind: input, shape index: {}]
  %s1 = inlined_call_operand.vmem [shape: f32[8,32], index: 1, kind: input, shape index: {}]
  %s2 = inlined_call_operand.vmem [shape: f32[1,32], index: 2, kind: input, shape index: {}]
  %s3 = inlined_call_operand.vmem [shape: f32[1,32], index: 3, kind: input, shape index: {}]
  %s4 = inlined_call_operand.vmem [shape: f32[1,32], index: 4, kind: input, shape index: {}]
  %s5 = inlined_call_operand.vmem [shape: f32[1,32], index: 5, kind: input, shape index: {}]
  %s6 = inlined_call_operand.vmem [shape: f32[2,256], index: 6, kind: input, shape index: {}]
  %s7 = inlined_call_operand.vmem [shape: f32[256,2], index: 7, kind: input, shape index: {}]
  %s8 = inlined_call_operand.vmem [shape: f32[2,1], index: 8, kind: input, shape index: {}]
  %s9 = inlined_call_operand.vmem [shape: bf16[256,256], index: 9, kind: input, shape index: {}]
  %s10 = inlined_call_operand.vmem [shape: f32[32,48], index: 10, kind: input, shape index: {}]
  %s11 = inlined_call_operand.vmem [shape: f32[1,16], index: 11, kind: input, shape index: {}]
  %s12 = inlined_call_operand.vmem [shape: f32[32,32], index: 12, kind: input, shape index: {}]
  %s13 = inlined_call_operand.vmem [shape: f32[1,32], index: 13, kind: input, shape index: {}]
  %s14 = inlined_call_operand.hbm [shape: f32[2,32], index: 14, kind: output, shape index: {}]
  %s15 = sld [smem:[#allocation0]]
  $region73: #{tpu_custom_call.1} parent=0
    _
  %s17 = ssub.s32 1, %s15
  %s18 = scalar_select 0, %s17, %s15
  $region1: #{tpu_custom_call.1} parent=0
    #allocation3 [shape = 'u8[1024]{0}', space=vmem, size = 0x400, scoped, tag = 'output window, operand 0, single buffered']
    #allocation4 [shape = 's32[1]{0}', space=sflag, size = 0x4, scoped, tag = 'scoped memory for tpu_custom_call.1']
    %19 = vsyncpa [#allocation4], 0
    // Predicated region
    $region2: #{tpu_custom_call.1} parent=1 // pred_check
      _
    $region3: #{tpu_custom_call.1} parent=1 // pred_check_branch
      %21 = sbr.rel (0) target = $region5
    $region4: #{tpu_custom_call.1} parent=1 // pred_region
      _
    $region5: #{tpu_custom_call.1} parent=1 // pred_fallthru
      _
    // Predicated region
    $region6: #{tpu_custom_call.1} parent=1 // pred_check
      _
    $region7: #{tpu_custom_call.1} parent=1 // pred_check_branch
      %23 = sbr.rel (0) target = $region9
    $region8: #{tpu_custom_call.1} parent=1 // pred_region
      _
    $region9: #{tpu_custom_call.1} parent=1 // pred_fallthru
      _
    // Predicated region
    $region10: #{tpu_custom_call.1} parent=1 // pred_check
      _
    $region11: #{tpu_custom_call.1} parent=1 // pred_check_branch
      %25 = sbr.rel (0) target = $region13
    $region12: #{tpu_custom_call.1} parent=1 // pred_region
      _
    $region13: #{tpu_custom_call.1} parent=1 // pred_fallthru
      _
    // Predicated region
    $region14: #{tpu_custom_call.1} parent=1 // pred_check
      _
    $region15: #{tpu_custom_call.1} parent=1 // pred_check_branch
      %27 = sbr.rel (0) target = $region17
    $region16: #{tpu_custom_call.1} parent=1 // pred_region
      _
    $region17: #{tpu_custom_call.1} parent=1 // pred_fallthru
      _
    // Predicated region
    $region18: #{tpu_custom_call.1} parent=1 // pred_check
      _
    $region19: #{tpu_custom_call.1} parent=1 // pred_check_branch
      %29 = sbr.rel (0) target = $region21
    $region20: #{tpu_custom_call.1} parent=1 // pred_region
      _
    $region21: #{tpu_custom_call.1} parent=1 // pred_fallthru
      _
    // Predicated region
    $region22: #{tpu_custom_call.1} parent=1 // pred_check
      _
    $region23: #{tpu_custom_call.1} parent=1 // pred_check_branch
      %31 = sbr.rel (0) target = $region25
    $region24: #{tpu_custom_call.1} parent=1 // pred_region
      _
    $region25: #{tpu_custom_call.1} parent=1 // pred_fallthru
      _
    // Predicated region
    $region26: #{tpu_custom_call.1} parent=1 // pred_check
      _
    $region27: #{tpu_custom_call.1} parent=1 // pred_check_branch
      %33 = sbr.rel (0) target = $region29
    $region28: #{tpu_custom_call.1} parent=1 // pred_region
      _
    $region29: #{tpu_custom_call.1} parent=1 // pred_fallthru
      _
    // Predicated region
    $region30: #{tpu_custom_call.1} parent=1 // pred_check
      _
    $region31: #{tpu_custom_call.1} parent=1 // pred_check_branch
      %35 = sbr.rel (0) target = $region33
    $region32: #{tpu_custom_call.1} parent=1 // pred_region
      _
    $region33: #{tpu_custom_call.1} parent=1 // pred_fallthru
      _
    // Predicated region
    $region34: #{tpu_custom_call.1} parent=1 // pred_check
      _
    $region35: #{tpu_custom_call.1} parent=1 // pred_check_branch
      %37 = sbr.rel (0) target = $region37
    $region36: #{tpu_custom_call.1} parent=1 // pred_region
      _
    $region37: #{tpu_custom_call.1} parent=1 // pred_fallthru
      _
    // Predicated region
    $region38: #{tpu_custom_call.1} parent=1 // pred_check
      _
    $region39: #{tpu_custom_call.1} parent=1 // pred_check_branch
      %39 = sbr.rel (0) target = $region41
    $region40: #{tpu_custom_call.1} parent=1 // pred_region
      _
    $region41: #{tpu_custom_call.1} parent=1 // pred_fallthru
      _
    // Predicated region
    $region42: #{tpu_custom_call.1} parent=1 // pred_check
      _
    $region43: #{tpu_custom_call.1} parent=1 // pred_check_branch
      %41 = sbr.rel (0) target = $region45
    $region44: #{tpu_custom_call.1} parent=1 // pred_region
      _
    $region45: #{tpu_custom_call.1} parent=1 // pred_fallthru
      _
    // Predicated region
    $region46: #{tpu_custom_call.1} parent=1 // pred_check
      _
    $region47: #{tpu_custom_call.1} parent=1 // pred_check_branch
      %43 = sbr.rel (0) target = $region49
    $region48: #{tpu_custom_call.1} parent=1 // pred_region
      _
    $region49: #{tpu_custom_call.1} parent=1 // pred_fallthru
      _
    // Predicated region
    $region50: #{tpu_custom_call.1} parent=1 // pred_check
      _
    $region51: #{tpu_custom_call.1} parent=1 // pred_check_branch
      %45 = sbr.rel (0) target = $region53
    $region52: #{tpu_custom_call.1} parent=1 // pred_region
      _
    $region53: #{tpu_custom_call.1} parent=1 // pred_fallthru
      _
    // Predicated region
    $region54: #{tpu_custom_call.1} parent=1 // pred_check
      _
    $region55: #{tpu_custom_call.1} parent=1 // pred_check_branch
      %47 = sbr.rel (0) target = $region57
    $region56: #{tpu_custom_call.1} parent=1 // pred_region
      _
    $region57: #{tpu_custom_call.1} parent=1 // pred_fallthru
      _
    %v49 = vld [vmem:[%s0] sm:$0xff]
    %v50 = vld [vmem:[%s0 + $0x8] sm:$0xff]
    %v51 = vld [vmem:[%s0 + $0x10] sm:$0xff]
    %v52 = vld [vmem:[%s0 + $0x18] sm:$0xff]
    %v53 = vld [vmem:[%s0 + $0x20] sm:$0xff]
    %v54 = vld [vmem:[%s0 + $0x28] sm:$0xff]
    %v55 = vld [vmem:[%s0 + $0x30] sm:$0xff]
    %v56 = vld [vmem:[%s0 + $0x38] sm:$0xff]
    %v57 = vld [vmem:[%s0 + $0x40] sm:$0xff]
    %v58 = vld [vmem:[%s0 + $0x48] sm:$0xff]
    %v59 = vld [vmem:[%s0 + $0x50] sm:$0xff]
    %v60 = vld [vmem:[%s0 + $0x58] sm:$0xff]
    %v61 = vld [vmem:[%s0 + $0x60] sm:$0xff]
    %v62 = vld [vmem:[%s0 + $0x68] sm:$0xff]
    %v63 = vld [vmem:[%s0 + $0x70] sm:$0xff]
    %v64 = vld [vmem:[%s0 + $0x78] sm:$0xff]
    %v65 = vld [vmem:[%s0 + $0x80] sm:$0xff]
    %v66 = vld [vmem:[%s0 + $0x88] sm:$0xff]
    %v67 = vld [vmem:[%s0 + $0x90] sm:$0xff]
    %v68 = vld [vmem:[%s0 + $0x98] sm:$0xff]
    %v69 = vld [vmem:[%s0 + $0xa0] sm:$0xff]
    %v70 = vld [vmem:[%s0 + $0xa8] sm:$0xff]
    %v71 = vld [vmem:[%s0 + $0xb0] sm:$0xff]
    %v72 = vld [vmem:[%s0 + $0xb8] sm:$0xff]
    %v73 = vld [vmem:[%s0 + $0xc0] sm:$0xff]
    %v74 = vld [vmem:[%s0 + $0xc8] sm:$0xff]
    %v75 = vld [vmem:[%s0 + $0xd0] sm:$0xff]
    %v76 = vld [vmem:[%s0 + $0xd8] sm:$0xff]
    %v77 = vld [vmem:[%s0 + $0xe0] sm:$0xff]
    %v78 = vld [vmem:[%s0 + $0xe8] sm:$0xff]
    %v79 = vld [vmem:[%s0 + $0xf0] sm:$0xff]
    %v80 = vld [vmem:[%s0 + $0xf8] sm:$0xff]
    %v81 = vld [vmem:[%s1] sm:$0xff]
    %v82 = vld [vmem:[%s2] sm:$0x1]
    %v84 = vlaneseq
    %v85 = vshrl.u32 %v84, 7
    %v86 = vsub.s32 0, %v85
    %v87 = vrot.slane %v82, %v86
    %vm89 = vcmask 64512
    %v91 = vsel %vm89, %v49, 0
    %v94 = vsel %vm89, %v50, 0
    %v97 = vsel %vm89, %v51, 0
    %v100 = vsel %vm89, %v52, 0
    %v103 = vsel %vm89, %v53, 0
    %v106 = vsel %vm89, %v54, 0
    %v109 = vsel %vm89, %v55, 0
    %v112 = vsel %vm89, %v56, 0
    %v115 = vsel %vm89, %v57, 0
    %v118 = vsel %vm89, %v58, 0
    %v121 = vsel %vm89, %v59, 0
    %v124 = vsel %vm89, %v60, 0
    %v127 = vsel %vm89, %v61, 0
    %v130 = vsel %vm89, %v62, 0
    %v133 = vsel %vm89, %v63, 0
    %v136 = vsel %vm89, %v64, 0
    %v139 = vsel %vm89, %v65, 0
    %v142 = vsel %vm89, %v66, 0
    %v145 = vsel %vm89, %v67, 0
    %v148 = vsel %vm89, %v68, 0
    %v151 = vsel %vm89, %v69, 0
    %v154 = vsel %vm89, %v70, 0
    %v157 = vsel %vm89, %v71, 0
    %v160 = vsel %vm89, %v72, 0
    %v163 = vsel %vm89, %v73, 0
    %v166 = vsel %vm89, %v74, 0
    %v169 = vsel %vm89, %v75, 0
    %v172 = vsel %vm89, %v76, 0
    %v175 = vsel %vm89, %v77, 0
    %v178 = vsel %vm89, %v78, 0
    %v181 = vsel %vm89, %v79, 0
    %v184 = vsel %vm89, %v80, 0
    %186 = vmatprep.subr.mxu0 0.0
    %187 = vmatpush1.msra.mxu0 %v81
    %188 = vmatprep.subr.mxu0 0.0
    %189 = vmatpush1.msra.mxu0 0.0
    %190 = vmatprep.subr.mxu0 0.0
    %191 = vmatpush1.msra.mxu0 0.0
    %192 = vmatprep.subr.mxu0 0.0
    %193 = vmatpush1.msra.mxu0 0.0
    %194 = vmatprep.subr.mxu0 0.0
    %195 = vmatpush1.msra.mxu0 0.0
    %196 = vmatprep.subr.mxu0 0.0
    %197 = vmatpush1.msra.mxu0 0.0
    %198 = vmatprep.subr.mxu0 0.0
    %199 = vmatpush1.msra.mxu0 0.0
    %200 = vmatprep.subr.mxu0 0.0
    %201 = vmatpush1.msra.mxu0 0.0
    %202 = vmatprep.subr.mxu0 0.0
    %203 = vmatpush1.msra.mxu0 0.0
    %204 = vmatprep.subr.mxu0 0.0
    %205 = vmatpush1.msra.mxu0 0.0
    %206 = vmatprep.subr.mxu0 0.0
    %207 = vmatpush1.msra.mxu0 0.0
    %208 = vmatprep.subr.mxu0 0.0
    %209 = vmatpush1.msra.mxu0 0.0
    %210 = vmatprep.subr.mxu0 0.0
    %211 = vmatpush1.msra.mxu0 0.0
    %212 = vmatprep.subr.mxu0 0.0
    %213 = vmatpush1.msra.mxu0 0.0
    %214 = vmatprep.subr.mxu0 0.0
    %215 = vmatpush1.msra.mxu0 0.0
    %216 = vmatprep.subr.mxu0 0.0
    %217 = vmatpush1.msra.mxu0 0.0
    %218 = vmatprep.subr.mxu0 0.0
    %219 = vmatpush1.msra.mxu0 0.0
    %220 = vmatprep.subr.mxu0 0.0
    %221 = vmatpush1.msra.mxu0 0.0
    %222 = vmatprep.subr.mxu0 0.0
    %223 = vmatpush1.msra.mxu0 0.0
    %224 = vmatprep.subr.mxu0 0.0
    %225 = vmatpush1.msra.mxu0 0.0
    %226 = vmatprep.subr.mxu0 0.0
    %227 = vmatpush1.msra.mxu0 0.0
    %228 = vmatprep.subr.mxu0 0.0
    %229 = vmatpush1.msra.mxu0 0.0
    %230 = vmatprep.subr.mxu0 0.0
    %231 = vmatpush1.msra.mxu0 0.0
    %232 = vmatprep.subr.mxu0 0.0
    %233 = vmatpush1.msra.mxu0 0.0
    %234 = vmatprep.subr.mxu0 0.0
    %235 = vmatpush1.msra.mxu0 0.0
    %236 = vmatprep.subr.mxu0 0.0
    %237 = vmatpush1.msra.mxu0 0.0
    %238 = vmatprep.subr.mxu0 0.0
    %239 = vmatpush1.msra.mxu0 0.0
    %240 = vmatprep.subr.mxu0 0.0
    %241 = vmatpush1.msra.mxu0 0.0
    %242 = vmatprep.subr.mxu0 0.0
    %243 = vmatpush1.msra.mxu0 0.0
    %244 = vmatprep.subr.mxu0 0.0
    %245 = vmatpush1.msra.mxu0 0.0
    %246 = vmatprep.subr.mxu0 0.0
    %247 = vmatpush1.msra.mxu0 0.0
    %248 = vmatprep.subr.mxu0 0.0
    %249 = vmatpush1.msra.mxu0 0.0
    %250 = vmatprep.mubr.f32.mxu0 0.0
    %251 = vmatmul.mubr.f32.gmra.mrb[0].mxu0 %v91
    %v252 = vpop.f32.mrb[0].mxu0
    %v253 = vadd.f32 %v87, %v252
    %v254 = vpop.f32.mrb[0].mxu0
    %255 = vmatprep.mubr.f32.mxu0 0.0
    %256 = vmatmul.mubr.f32.gmra.mrb[0].mxu0 %v94
    %v257 = vpop.f32.mrb[0].mxu0
    %v258 = vadd.f32 %v87, %v257
    %v259 = vpop.f32.mrb[0].mxu0
    %260 = vmatprep.mubr.f32.mxu0 0.0
    %261 = vmatmul.mubr.f32.gmra.mrb[0].mxu0 %v97
    %v262 = vpop.f32.mrb[0].mxu0
    %v263 = vadd.f32 %v87, %v262
    %v264 = vpop.f32.mrb[0].mxu0
    %265 = vmatprep.mubr.f32.mxu0 0.0
    %266 = vmatmul.mubr.f32.gmra.mrb[0].mxu0 %v100
    %v267 = vpop.f32.mrb[0].mxu0
    %v268 = vadd.f32 %v87, %v267
    %v269 = vpop.f32.mrb[0].mxu0
    %270 = vmatprep.mubr.f32.mxu0 0.0
    %271 = vmatmul.mubr.f32.gmra.mrb[0].mxu0 %v103
    %v272 = vpop.f32.mrb[0].mxu0
    %v273 = vadd.f32 %v87, %v272
    %v274 = vpop.f32.mrb[0].mxu0
    %275 = vmatprep.mubr.f32.mxu0 0.0
    %276 = vmatmul.mubr.f32.gmra.mrb[0].mxu0 %v106
    %v277 = vpop.f32.mrb[0].mxu0
    %v278 = vadd.f32 %v87, %v277
    %v279 = vpop.f32.mrb[0].mxu0
    %280 = vmatprep.mubr.f32.mxu0 0.0
    %281 = vmatmul.mubr.f32.gmra.mrb[0].mxu0 %v109
    %v282 = vpop.f32.mrb[0].mxu0
    %v283 = vadd.f32 %v87, %v282
    %v284 = vpop.f32.mrb[0].mxu0
    %285 = vmatprep.mubr.f32.mxu0 0.0
    %286 = vmatmul.mubr.f32.gmra.mrb[0].mxu0 %v112
    %v287 = vpop.f32.mrb[0].mxu0
    %v288 = vadd.f32 %v87, %v287
    %v289 = vpop.f32.mrb[0].mxu0
    %290 = vmatprep.mubr.f32.mxu0 0.0
    %291 = vmatmul.mubr.f32.gmra.mrb[0].mxu0 %v115
    %v292 = vpop.f32.mrb[0].mxu0
    %v293 = vadd.f32 %v87, %v292
    %v294 = vpop.f32.mrb[0].mxu0
    %295 = vmatprep.mubr.f32.mxu0 0.0
    %296 = vmatmul.mubr.f32.gmra.mrb[0].mxu0 %v118
    %v297 = vpop.f32.mrb[0].mxu0
    %v298 = vadd.f32 %v87, %v297
    %v299 = vpop.f32.mrb[0].mxu0
    %300 = vmatprep.mubr.f32.mxu0 0.0
    %301 = vmatmul.mubr.f32.gmra.mrb[0].mxu0 %v121
    %v302 = vpop.f32.mrb[0].mxu0
    %v303 = vadd.f32 %v87, %v302
    %v304 = vpop.f32.mrb[0].mxu0
    %305 = vmatprep.mubr.f32.mxu0 0.0
    %306 = vmatmul.mubr.f32.gmra.mrb[0].mxu0 %v124
    %v307 = vpop.f32.mrb[0].mxu0
    %v308 = vadd.f32 %v87, %v307
    %v309 = vpop.f32.mrb[0].mxu0
    %310 = vmatprep.mubr.f32.mxu0 0.0
    %311 = vmatmul.mubr.f32.gmra.mrb[0].mxu0 %v127
    %v312 = vpop.f32.mrb[0].mxu0
    %v313 = vadd.f32 %v87, %v312
    %v314 = vpop.f32.mrb[0].mxu0
    %315 = vmatprep.mubr.f32.mxu0 0.0
    %316 = vmatmul.mubr.f32.gmra.mrb[0].mxu0 %v130
    %v317 = vpop.f32.mrb[0].mxu0
    %v318 = vadd.f32 %v87, %v317
    %v319 = vpop.f32.mrb[0].mxu0
    %320 = vmatprep.mubr.f32.mxu0 0.0
    %321 = vmatmul.mubr.f32.gmra.mrb[0].mxu0 %v133
    %v322 = vpop.f32.mrb[0].mxu0
    %v323 = vadd.f32 %v87, %v322
    %v324 = vpop.f32.mrb[0].mxu0
    %325 = vmatprep.mubr.f32.mxu0 0.0
    %326 = vmatmul.mubr.f32.gmra.mrb[0].mxu0 %v136
    %v327 = vpop.f32.mrb[0].mxu0
    %v328 = vadd.f32 %v87, %v327
    %v329 = vpop.f32.mrb[0].mxu0
    %330 = vmatprep.mubr.f32.mxu0 0.0
    %331 = vmatmul.mubr.f32.gmra.mrb[0].mxu0 %v139
    %v332 = vpop.f32.mrb[0].mxu0
    %v333 = vadd.f32 %v87, %v332
    %v334 = vpop.f32.mrb[0].mxu0
    %335 = vmatprep.mubr.f32.mxu0 0.0
    %336 = vmatmul.mubr.f32.gmra.mrb[0].mxu0 %v142
    %v337 = vpop.f32.mrb[0].mxu0
    %v338 = vadd.f32 %v87, %v337
    %v339 = vpop.f32.mrb[0].mxu0
    %340 = vmatprep.mubr.f32.mxu0 0.0
    %341 = vmatmul.mubr.f32.gmra.mrb[0].mxu0 %v145
    %v342 = vpop.f32.mrb[0].mxu0
    %v343 = vadd.f32 %v87, %v342
    %v344 = vpop.f32.mrb[0].mxu0
    %345 = vmatprep.mubr.f32.mxu0 0.0
    %346 = vmatmul.mubr.f32.gmra.mrb[0].mxu0 %v148
    %v347 = vpop.f32.mrb[0].mxu0
    %v348 = vadd.f32 %v87, %v347
    %v349 = vpop.f32.mrb[0].mxu0
    %350 = vmatprep.mubr.f32.mxu0 0.0
    %351 = vmatmul.mubr.f32.gmra.mrb[0].mxu0 %v151
    %v352 = vpop.f32.mrb[0].mxu0
    %v353 = vadd.f32 %v87, %v352
    %v354 = vpop.f32.mrb[0].mxu0
    %355 = vmatprep.mubr.f32.mxu0 0.0
    %356 = vmatmul.mubr.f32.gmra.mrb[0].mxu0 %v154
    %v357 = vpop.f32.mrb[0].mxu0
    %v358 = vadd.f32 %v87, %v357
    %v359 = vpop.f32.mrb[0].mxu0
    %360 = vmatprep.mubr.f32.mxu0 0.0
    %361 = vmatmul.mubr.f32.gmra.mrb[0].mxu0 %v157
    %v362 = vpop.f32.mrb[0].mxu0
    %v363 = vadd.f32 %v87, %v362
    %v364 = vpop.f32.mrb[0].mxu0
    %365 = vmatprep.mubr.f32.mxu0 0.0
    %366 = vmatmul.mubr.f32.gmra.mrb[0].mxu0 %v160
    %v367 = vpop.f32.mrb[0].mxu0
    %v368 = vadd.f32 %v87, %v367
    %v369 = vpop.f32.mrb[0].mxu0
    %370 = vmatprep.mubr.f32.mxu0 0.0
    %371 = vmatmul.mubr.f32.gmra.mrb[0].mxu0 %v163
    %v372 = vpop.f32.mrb[0].mxu0
    %v373 = vadd.f32 %v87, %v372
    %v374 = vpop.f32.mrb[0].mxu0
    %375 = vmatprep.mubr.f32.mxu0 0.0
    %376 = vmatmul.mubr.f32.gmra.mrb[0].mxu0 %v166
    %v377 = vpop.f32.mrb[0].mxu0
    %v378 = vadd.f32 %v87, %v377
    %v379 = vpop.f32.mrb[0].mxu0
    %380 = vmatprep.mubr.f32.mxu0 0.0
    %381 = vmatmul.mubr.f32.gmra.mrb[0].mxu0 %v169
    %v382 = vpop.f32.mrb[0].mxu0
    %v383 = vadd.f32 %v87, %v382
    %v384 = vpop.f32.mrb[0].mxu0
    %385 = vmatprep.mubr.f32.mxu0 0.0
    %386 = vmatmul.mubr.f32.gmra.mrb[0].mxu0 %v172
    %v387 = vpop.f32.mrb[0].mxu0
    %v388 = vadd.f32 %v87, %v387
    %v389 = vpop.f32.mrb[0].mxu0
    %390 = vmatprep.mubr.f32.mxu0 0.0
    %391 = vmatmul.mubr.f32.gmra.mrb[0].mxu0 %v175
    %v392 = vpop.f32.mrb[0].mxu0
    %v393 = vadd.f32 %v87, %v392
    %v394 = vpop.f32.mrb[0].mxu0
    %395 = vmatprep.mubr.f32.mxu0 0.0
    %396 = vmatmul.mubr.f32.gmra.mrb[0].mxu0 %v178
    %v397 = vpop.f32.mrb[0].mxu0
    %v398 = vadd.f32 %v87, %v397
    %v399 = vpop.f32.mrb[0].mxu0
    %400 = vmatprep.mubr.f32.mxu0 0.0
    %401 = vmatmul.mubr.f32.gmra.mrb[0].mxu0 %v181
    %v402 = vpop.f32.mrb[0].mxu0
    %v403 = vadd.f32 %v87, %v402
    %v404 = vpop.f32.mrb[0].mxu0
    %405 = vmatprep.mubr.f32.mxu0 0.0
    %406 = vmatmul.mubr.f32.gmra.mrb[0].mxu0 %v184
    %v407 = vpop.f32.mrb[0].mxu0
    %v408 = vadd.f32 %v87, %v407
    %v409 = vpop.f32.mrb[0].mxu0
    %410 = vdwg.mxu0
    %v411 = vmax.f32 %v253, -1.0
    %v412 = vmax.f32 %v258, -1.0
    %v413 = vmax.f32 %v263, -1.0
    %v414 = vmax.f32 %v268, -1.0
    %v415 = vmax.f32 %v273, -1.0
    %v416 = vmax.f32 %v278, -1.0
    %v417 = vmax.f32 %v283, -1.0
    %v418 = vmax.f32 %v288, -1.0
    %v419 = vmax.f32 %v293, -1.0
    %v420 = vmax.f32 %v298, -1.0
    %v421 = vmax.f32 %v303, -1.0
    %v422 = vmax.f32 %v308, -1.0
    %v423 = vmax.f32 %v313, -1.0
    %v424 = vmax.f32 %v318, -1.0
    %v425 = vmax.f32 %v323, -1.0
    %v426 = vmax.f32 %v328, -1.0
    %v427 = vmax.f32 %v333, -1.0
    %v428 = vmax.f32 %v338, -1.0
    %v429 = vmax.f32 %v343, -1.0
    %v430 = vmax.f32 %v348, -1.0
    %v431 = vmax.f32 %v353, -1.0
    %v432 = vmax.f32 %v358, -1.0
    %v433 = vmax.f32 %v363, -1.0
    %v434 = vmax.f32 %v368, -1.0
    %v435 = vmax.f32 %v373, -1.0
    %v436 = vmax.f32 %v378, -1.0
    %v437 = vmax.f32 %v383, -1.0
    %v438 = vmax.f32 %v388, -1.0
    %v439 = vmax.f32 %v393, -1.0
    %v440 = vmax.f32 %v398, -1.0
    %v441 = vmax.f32 %v403, -1.0
    %v442 = vmax.f32 %v408, -1.0
    %v443 = vmin.f32 %v411, 1.0
    %v444 = vmin.f32 %v412, 1.0
    %v445 = vmin.f32 %v413, 1.0
    %v446 = vmin.f32 %v414, 1.0
    %v447 = vmin.f32 %v415, 1.0
    %v448 = vmin.f32 %v416, 1.0
    %v449 = vmin.f32 %v417, 1.0
    %v450 = vmin.f32 %v418, 1.0
    %v451 = vmin.f32 %v419, 1.0
    %v452 = vmin.f32 %v420, 1.0
    %v453 = vmin.f32 %v421, 1.0
    %v454 = vmin.f32 %v422, 1.0
    %v455 = vmin.f32 %v423, 1.0
    %v456 = vmin.f32 %v424, 1.0
    %v457 = vmin.f32 %v425, 1.0
    %v458 = vmin.f32 %v426, 1.0
    %v459 = vmin.f32 %v427, 1.0
    %v460 = vmin.f32 %v428, 1.0
    %v461 = vmin.f32 %v429, 1.0
    %v462 = vmin.f32 %v430, 1.0
    %v463 = vmin.f32 %v431, 1.0
    %v464 = vmin.f32 %v432, 1.0
    %v465 = vmin.f32 %v433, 1.0
    %v466 = vmin.f32 %v434, 1.0
    %v467 = vmin.f32 %v435, 1.0
    %v468 = vmin.f32 %v436, 1.0
    %v469 = vmin.f32 %v437, 1.0
    %v470 = vmin.f32 %v438, 1.0
    %v471 = vmin.f32 %v439, 1.0
    %v472 = vmin.f32 %v440, 1.0
    %v473 = vmin.f32 %v441, 1.0
    %v474 = vmin.f32 %v442, 1.0
    %v475 = vld [vmem:[%s6] sm:$0xf]
    %v476 = vld [vmem:[%s8] sm:$0x3]
    %v477 = vrcp.pop %v476
    %v478 = vmul.f32 1.0, %v477
    %v481 = vunpack.c.l.s4 1983009808
    %v482 = vunpack.c.0.s8 %v481
    %v483 = vlaneseq
    %v484 = vshrl.u32 %v483, 7
    %v485 = vsub.s32 %v482, %v484
    %v486 = vrot.slane %v475, %v485
    %v487 = vcombine.high %v486, %v486
    %490 = vmatprep.subr.mxu0 0.0
    %491 = vmatpush1.msra.mxu0 %v443
    %492 = vmatprep.subr.mxu0 0.0
    %493 = vmatpush1.msra.mxu0 %v444
    %494 = vmatprep.subr.mxu0 0.0
    %495 = vmatpush1.msra.mxu0 %v445
    %496 = vmatprep.subr.mxu0 0.0
    %497 = vmatpush1.msra.mxu0 %v446
    %498 = vmatprep.subr.mxu0 0.0
    %499 = vmatpush1.msra.mxu0 %v447
    %500 = vmatprep.subr.mxu0 0.0
    %501 = vmatpush1.msra.mxu0 %v448
    %502 = vmatprep.subr.mxu0 0.0
    %503 = vmatpush1.msra.mxu0 %v449
    %504 = vmatprep.subr.mxu0 0.0
    %505 = vmatpush1.msra.mxu0 %v450
    %506 = vmatprep.subr.mxu0 0.0
    %507 = vmatpush1.msra.mxu0 %v451
    %508 = vmatprep.subr.mxu0 0.0
    %509 = vmatpush1.msra.mxu0 %v452
    %510 = vmatprep.subr.mxu0 0.0
    %511 = vmatpush1.msra.mxu0 %v453
    %512 = vmatprep.subr.mxu0 0.0
    %513 = vmatpush1.msra.mxu0 %v454
    %514 = vmatprep.subr.mxu0 0.0
    %515 = vmatpush1.msra.mxu0 %v455
    %516 = vmatprep.subr.mxu0 0.0
    %517 = vmatpush1.msra.mxu0 %v456
    %518 = vmatprep.subr.mxu0 0.0
    %519 = vmatpush1.msra.mxu0 %v457
    %520 = vmatprep.subr.mxu0 0.0
    %521 = vmatpush1.msra.mxu0 %v458
    %522 = vmatprep.subr.mxu0 0.0
    %523 = vmatpush1.msra.mxu0 %v459
    %524 = vmatprep.subr.mxu0 0.0
    %525 = vmatpush1.msra.mxu0 %v460
    %526 = vmatprep.subr.mxu0 0.0
    %527 = vmatpush1.msra.mxu0 %v461
    %528 = vmatprep.subr.mxu0 0.0
    %529 = vmatpush1.msra.mxu0 %v462
    %530 = vmatprep.subr.mxu0 0.0
    %531 = vmatpush1.msra.mxu0 %v463
    %532 = vmatprep.subr.mxu0 0.0
    %533 = vmatpush1.msra.mxu0 %v464
    %534 = vmatprep.subr.mxu0 0.0
    %535 = vmatpush1.msra.mxu0 %v465
    %536 = vmatprep.subr.mxu0 0.0
    %537 = vmatpush1.msra.mxu0 %v466
    %538 = vmatprep.subr.mxu0 0.0
    %539 = vmatpush1.msra.mxu0 %v467
    %540 = vmatprep.subr.mxu0 0.0
    %541 = vmatpush1.msra.mxu0 %v468
    %542 = vmatprep.subr.mxu0 0.0
    %543 = vmatpush1.msra.mxu0 %v469
    %544 = vmatprep.subr.mxu0 0.0
    %545 = vmatpush1.msra.mxu0 %v470
    %546 = vmatprep.subr.mxu0 0.0
    %547 = vmatpush1.msra.mxu0 %v471
    %548 = vmatprep.subr.mxu0 0.0
    %549 = vmatpush1.msra.mxu0 %v472
    %550 = vmatprep.subr.mxu0 0.0
    %551 = vmatpush1.msra.mxu0 %v473
    %552 = vmatprep.subr.mxu0 0.0
    %553 = vmatpush1.msra.mxu0 %v474
    %554 = vmatprep.mubr.f32.mxu0 %v487
    %555 = vmatmul.mubr.f32.gmra.mrb[0].mxu0 %v486
    %v556 = vpop.f32.mrb[0].mxu0
    %v557 = vadd.f32 0.0, %v556
    %v558 = vpop.f32.mrb[0].mxu0
    %559 = vdwg.mxu0
    %561 = vset.pattern.permute.xlu0 0
    %562 = vperm.xlu0 %561, %v478
    %v563 = vpop.permute.xlu0 %562
    %v565 = vmul.f32 %v557, %v563
    %566 = vxpose.xlu0.b32.start [1/16] %v486, 128
    %567 = vxpose.xlu0.b32.cont [2/16] 0.0, 128
    %568 = vxpose.xlu0.b32.cont [3/16] 0.0, 128
    %569 = vxpose.xlu0.b32.cont [4/16] 0.0, 128
    %570 = vxpose.xlu0.b32.cont [5/16] 0.0, 128
    %571 = vxpose.xlu0.b32.cont [6/16] 0.0, 128
    %572 = vxpose.xlu0.b32.cont [7/16] 0.0, 128
    %573 = vxpose.xlu0.b32.cont [8/16] 0.0, 128
    %574 = vxpose.xlu0.b32.cont [9/16] 0.0, 128
    %575 = vxpose.xlu0.b32.cont [10/16] 0.0, 128
    %576 = vxpose.xlu0.b32.cont [11/16] 0.0, 128
    %577 = vxpose.xlu0.b32.cont [12/16] 0.0, 128
    %578 = vxpose.xlu0.b32.cont [13/16] 0.0, 128
    %579 = vxpose.xlu0.b32.cont [14/16] 0.0, 128
    %580 = vxpose.xlu0.b32.cont [15/16] 0.0, 128
    %581 = vxpose.xlu0.b32.end [16/16] 0.0, 128
    %v582 = vpop.trf.xlu0
    %v583 = vpop.trf.xlu0
    %v584 = vpop.trf.xlu0
    %v585 = vpop.trf.xlu0
    %v586 = vpop.trf.xlu0
    %v587 = vpop.trf.xlu0
    %v588 = vpop.trf.xlu0
    %v589 = vpop.trf.xlu0
    %v590 = vpop.trf.xlu0
    %v591 = vpop.trf.xlu0
    %v592 = vpop.trf.xlu0
    %v593 = vpop.trf.xlu0
    %v594 = vpop.trf.xlu0
    %v595 = vpop.trf.xlu0
    %v596 = vpop.trf.xlu0
    %v597 = vpop.trf.xlu0
    %598 = vxpose.xlu0.b32.start [1/16] %v487, 128
    %599 = vxpose.xlu0.b32.cont [2/16] 0.0, 128
    %600 = vxpose.xlu0.b32.cont [3/16] 0.0, 128
    %601 = vxpose.xlu0.b32.cont [4/16] 0.0, 128
    %602 = vxpose.xlu0.b32.cont [5/16] 0.0, 128
    %603 = vxpose.xlu0.b32.cont [6/16] 0.0, 128
    %604 = vxpose.xlu0.b32.cont [7/16] 0.0, 128
    %605 = vxpose.xlu0.b32.cont [8/16] 0.0, 128
    %606 = vxpose.xlu0.b32.cont [9/16] 0.0, 128
    %607 = vxpose.xlu0.b32.cont [10/16] 0.0, 128
    %608 = vxpose.xlu0.b32.cont [11/16] 0.0, 128
    %609 = vxpose.xlu0.b32.cont [12/16] 0.0, 128
    %610 = vxpose.xlu0.b32.cont [13/16] 0.0, 128
    %611 = vxpose.xlu0.b32.cont [14/16] 0.0, 128
    %612 = vxpose.xlu0.b32.cont [15/16] 0.0, 128
    %613 = vxpose.xlu0.b32.end [16/16] 0.0, 128
    %v614 = vpop.trf.xlu0
    %v615 = vpop.trf.xlu0
    %v616 = vpop.trf.xlu0
    %v617 = vpop.trf.xlu0
    %v618 = vpop.trf.xlu0
    %v619 = vpop.trf.xlu0
    %v620 = vpop.trf.xlu0
    %v621 = vpop.trf.xlu0
    %v622 = vpop.trf.xlu0
    %v623 = vpop.trf.xlu0
    %v624 = vpop.trf.xlu0
    %v625 = vpop.trf.xlu0
    %v626 = vpop.trf.xlu0
    %v627 = vpop.trf.xlu0
    %v628 = vpop.trf.xlu0
    %v629 = vpop.trf.xlu0
    %vm630 = vcmask 15360
    %v632 = vsel %vm630, %v582, 0
    %v635 = vsel %vm630, %v583, 0
    %v638 = vsel %vm630, %v584, 0
    %v641 = vsel %vm630, %v585, 0
    %v644 = vsel %vm630, %v586, 0
    %v647 = vsel %vm630, %v587, 0
    %v650 = vsel %vm630, %v588, 0
    %v653 = vsel %vm630, %v589, 0
    %v656 = vsel %vm630, %v590, 0
    %v659 = vsel %vm630, %v591, 0
    %v662 = vsel %vm630, %v592, 0
    %v665 = vsel %vm630, %v593, 0
    %v668 = vsel %vm630, %v594, 0
    %v671 = vsel %vm630, %v595, 0
    %v674 = vsel %vm630, %v596, 0
    %v677 = vsel %vm630, %v597, 0
    %v680 = vsel %vm630, %v614, 0
    %v683 = vsel %vm630, %v615, 0
    %v686 = vsel %vm630, %v616, 0
    %v689 = vsel %vm630, %v617, 0
    %v692 = vsel %vm630, %v618, 0
    %v695 = vsel %vm630, %v619, 0
    %v698 = vsel %vm630, %v620, 0
    %v701 = vsel %vm630, %v621, 0
    %v704 = vsel %vm630, %v622, 0
    %v707 = vsel %vm630, %v623, 0
    %v710 = vsel %vm630, %v624, 0
    %v713 = vsel %vm630, %v625, 0
    %v716 = vsel %vm630, %v626, 0
    %v719 = vsel %vm630, %v627, 0
    %v722 = vsel %vm630, %v628, 0
    %v725 = vsel %vm630, %v629, 0
    %vm727 = vcmask 1041408
    %v729 = vsel %vm727, %v565, 0
    %731 = vmatprep.subr.mxu0 0.0
    %732 = vmatpush1.msra.mxu0 %v729
    %733 = vmatprep.subr.mxu0 0.0
    %734 = vmatpush1.msra.mxu0 0.0
    %735 = vmatprep.subr.mxu0 0.0
    %736 = vmatpush1.msra.mxu0 0.0
    %737 = vmatprep.subr.mxu0 0.0
    %738 = vmatpush1.msra.mxu0 0.0
    %739 = vmatprep.subr.mxu0 0.0
    %740 = vmatpush1.msra.mxu0 0.0
    %741 = vmatprep.subr.mxu0 0.0
    %742 = vmatpush1.msra.mxu0 0.0
    %743 = vmatprep.subr.mxu0 0.0
    %744 = vmatpush1.msra.mxu0 0.0
    %745 = vmatprep.subr.mxu0 0.0
    %746 = vmatpush1.msra.mxu0 0.0
    %747 = vmatprep.subr.mxu0 0.0
    %748 = vmatpush1.msra.mxu0 0.0
    %749 = vmatprep.subr.mxu0 0.0
    %750 = vmatpush1.msra.mxu0 0.0
    %751 = vmatprep.subr.mxu0 0.0
    %752 = vmatpush1.msra.mxu0 0.0
    %753 = vmatprep.subr.mxu0 0.0
    %754 = vmatpush1.msra.mxu0 0.0
    %755 = vmatprep.subr.mxu0 0.0
    %756 = vmatpush1.msra.mxu0 0.0
    %757 = vmatprep.subr.mxu0 0.0
    %758 = vmatpush1.msra.mxu0 0.0
    %759 = vmatprep.subr.mxu0 0.0
    %760 = vmatpush1.msra.mxu0 0.0
    %761 = vmatprep.subr.mxu0 0.0
    %762 = vmatpush1.msra.mxu0 0.0
    %763 = vmatprep.subr.mxu0 0.0
    %764 = vmatpush1.msra.mxu0 0.0
    %765 = vmatprep.subr.mxu0 0.0
    %766 = vmatpush1.msra.mxu0 0.0
    %767 = vmatprep.subr.mxu0 0.0
    %768 = vmatpush1.msra.mxu0 0.0
    %769 = vmatprep.subr.mxu0 0.0
    %770 = vmatpush1.msra.mxu0 0.0
    %771 = vmatprep.subr.mxu0 0.0
    %772 = vmatpush1.msra.mxu0 0.0
    %773 = vmatprep.subr.mxu0 0.0
    %774 = vmatpush1.msra.mxu0 0.0
    %775 = vmatprep.subr.mxu0 0.0
    %776 = vmatpush1.msra.mxu0 0.0
    %777 = vmatprep.subr.mxu0 0.0
    %778 = vmatpush1.msra.mxu0 0.0
    %779 = vmatprep.subr.mxu0 0.0
    %780 = vmatpush1.msra.mxu0 0.0
    %781 = vmatprep.subr.mxu0 0.0
    %782 = vmatpush1.msra.mxu0 0.0
    %783 = vmatprep.subr.mxu0 0.0
    %784 = vmatpush1.msra.mxu0 0.0
    %785 = vmatprep.subr.mxu0 0.0
    %786 = vmatpush1.msra.mxu0 0.0
    %787 = vmatprep.subr.mxu0 0.0
    %788 = vmatpush1.msra.mxu0 0.0
    %789 = vmatprep.subr.mxu0 0.0
    %790 = vmatpush1.msra.mxu0 0.0
    %791 = vmatprep.subr.mxu0 0.0
    %792 = vmatpush1.msra.mxu0 0.0
    %793 = vmatprep.subr.mxu0 0.0
    %794 = vmatpush1.msra.mxu0 0.0
    %795 = vmatprep.mubr.f32.mxu0 0.0
    %796 = vmatmul.mubr.f32.gmra.mrb[0].mxu0 %v632
    %v797 = vpop.f32.mrb[0].mxu0
    %v798 = vadd.f32 0.0, %v797
    %v799 = vpop.f32.mrb[0].mxu0
    %800 = vmatprep.mubr.f32.mxu0 0.0
    %801 = vmatmul.mubr.f32.gmra.mrb[0].mxu0 %v635
    %v802 = vpop.f32.mrb[0].mxu0
    %v803 = vadd.f32 0.0, %v802
    %v804 = vpop.f32.mrb[0].mxu0
    %805 = vmatprep.mubr.f32.mxu0 0.0
    %806 = vmatmul.mubr.f32.gmra.mrb[0].mxu0 %v638
    %v807 = vpop.f32.mrb[0].mxu0
    %v808 = vadd.f32 0.0, %v807
    %v809 = vpop.f32.mrb[0].mxu0
    %810 = vmatprep.mubr.f32.mxu0 0.0
    %811 = vmatmul.mubr.f32.gmra.mrb[0].mxu0 %v641
    %v812 = vpop.f32.mrb[0].mxu0
    %v813 = vadd.f32 0.0, %v812
    %v814 = vpop.f32.mrb[0].mxu0
    %815 = vmatprep.mubr.f32.mxu0 0.0
    %816 = vmatmul.mubr.f32.gmra.mrb[0].mxu0 %v644
    %v817 = vpop.f32.mrb[0].mxu0
    %v818 = vadd.f32 0.0, %v817
    %v819 = vpop.f32.mrb[0].mxu0
    %820 = vmatprep.mubr.f32.mxu0 0.0
    %821 = vmatmul.mubr.f32.gmra.mrb[0].mxu0 %v647
    %v822 = vpop.f32.mrb[0].mxu0
    %v823 = vadd.f32 0.0, %v822
    %v824 = vpop.f32.mrb[0].mxu0
    %825 = vmatprep.mubr.f32.mxu0 0.0
    %826 = vmatmul.mubr.f32.gmra.mrb[0].mxu0 %v650
    %v827 = vpop.f32.mrb[0].mxu0
    %v828 = vadd.f32 0.0, %v827
    %v829 = vpop.f32.mrb[0].mxu0
    %830 = vmatprep.mubr.f32.mxu0 0.0
    %831 = vmatmul.mubr.f32.gmra.mrb[0].mxu0 %v653
    %v832 = vpop.f32.mrb[0].mxu0
    %v833 = vadd.f32 0.0, %v832
    %v834 = vpop.f32.mrb[0].mxu0
    %835 = vmatprep.mubr.f32.mxu0 0.0
    %836 = vmatmul.mubr.f32.gmra.mrb[0].mxu0 %v656
    %v837 = vpop.f32.mrb[0].mxu0
    %v838 = vadd.f32 0.0, %v837
    %v839 = vpop.f32.mrb[0].mxu0
    %840 = vmatprep.mubr.f32.mxu0 0.0
    %841 = vmatmul.mubr.f32.gmra.mrb[0].mxu0 %v659
    %v842 = vpop.f32.mrb[0].mxu0
    %v843 = vadd.f32 0.0, %v842
    %v844 = vpop.f32.mrb[0].mxu0
    %845 = vmatprep.mubr.f32.mxu0 0.0
    %846 = vmatmul.mubr.f32.gmra.mrb[0].mxu0 %v662
    %v847 = vpop.f32.mrb[0].mxu0
    %v848 = vadd.f32 0.0, %v847
    %v849 = vpop.f32.mrb[0].mxu0
    %850 = vmatprep.mubr.f32.mxu0 0.0
    %851 = vmatmul.mubr.f32.gmra.mrb[0].mxu0 %v665
    %v852 = vpop.f32.mrb[0].mxu0
    %v853 = vadd.f32 0.0, %v852
    %v854 = vpop.f32.mrb[0].mxu0
    %855 = vmatprep.mubr.f32.mxu0 0.0
    %856 = vmatmul.mubr.f32.gmra.mrb[0].mxu0 %v668
    %v857 = vpop.f32.mrb[0].mxu0
    %v858 = vadd.f32 0.0, %v857
    %v859 = vpop.f32.mrb[0].mxu0
    %860 = vmatprep.mubr.f32.mxu0 0.0
    %861 = vmatmul.mubr.f32.gmra.mrb[0].mxu0 %v671
    %v862 = vpop.f32.mrb[0].mxu0
    %v863 = vadd.f32 0.0, %v862
    %v864 = vpop.f32.mrb[0].mxu0
    %865 = vmatprep.mubr.f32.mxu0 0.0
    %866 = vmatmul.mubr.f32.gmra.mrb[0].mxu0 %v674
    %v867 = vpop.f32.mrb[0].mxu0
    %v868 = vadd.f32 0.0, %v867
    %v869 = vpop.f32.mrb[0].mxu0
    %870 = vmatprep.mubr.f32.mxu0 0.0
    %871 = vmatmul.mubr.f32.gmra.mrb[0].mxu0 %v677
    %v872 = vpop.f32.mrb[0].mxu0
    %v873 = vadd.f32 0.0, %v872
    %v874 = vpop.f32.mrb[0].mxu0
    %875 = vmatprep.mubr.f32.mxu0 0.0
    %876 = vmatmul.mubr.f32.gmra.mrb[0].mxu0 %v680
    %v877 = vpop.f32.mrb[0].mxu0
    %v878 = vadd.f32 0.0, %v877
    %v879 = vpop.f32.mrb[0].mxu0
    %880 = vmatprep.mubr.f32.mxu0 0.0
    %881 = vmatmul.mubr.f32.gmra.mrb[0].mxu0 %v683
    %v882 = vpop.f32.mrb[0].mxu0
    %v883 = vadd.f32 0.0, %v882
    %v884 = vpop.f32.mrb[0].mxu0
    %885 = vmatprep.mubr.f32.mxu0 0.0
    %886 = vmatmul.mubr.f32.gmra.mrb[0].mxu0 %v686
    %v887 = vpop.f32.mrb[0].mxu0
    %v888 = vadd.f32 0.0, %v887
    %v889 = vpop.f32.mrb[0].mxu0
    %890 = vmatprep.mubr.f32.mxu0 0.0
    %891 = vmatmul.mubr.f32.gmra.mrb[0].mxu0 %v689
    %v892 = vpop.f32.mrb[0].mxu0
    %v893 = vadd.f32 0.0, %v892
    %v894 = vpop.f32.mrb[0].mxu0
    %895 = vmatprep.mubr.f32.mxu0 0.0
    %896 = vmatmul.mubr.f32.gmra.mrb[0].mxu0 %v692
    %v897 = vpop.f32.mrb[0].mxu0
    %v898 = vadd.f32 0.0, %v897
    %v899 = vpop.f32.mrb[0].mxu0
    %900 = vmatprep.mubr.f32.mxu0 0.0
    %901 = vmatmul.mubr.f32.gmra.mrb[0].mxu0 %v695
    %v902 = vpop.f32.mrb[0].mxu0
    %v903 = vadd.f32 0.0, %v902
    %v904 = vpop.f32.mrb[0].mxu0
    %905 = vmatprep.mubr.f32.mxu0 0.0
    %906 = vmatmul.mubr.f32.gmra.mrb[0].mxu0 %v698
    %v907 = vpop.f32.mrb[0].mxu0
    %v908 = vadd.f32 0.0, %v907
    %v909 = vpop.f32.mrb[0].mxu0
    %910 = vmatprep.mubr.f32.mxu0 0.0
    %911 = vmatmul.mubr.f32.gmra.mrb[0].mxu0 %v701
    %v912 = vpop.f32.mrb[0].mxu0
    %v913 = vadd.f32 0.0, %v912
    %v914 = vpop.f32.mrb[0].mxu0
    %915 = vmatprep.mubr.f32.mxu0 0.0
    %916 = vmatmul.mubr.f32.gmra.mrb[0].mxu0 %v704
    %v917 = vpop.f32.mrb[0].mxu0
    %v918 = vadd.f32 0.0, %v917
    %v919 = vpop.f32.mrb[0].mxu0
    %920 = vmatprep.mubr.f32.mxu0 0.0
    %921 = vmatmul.mubr.f32.gmra.mrb[0].mxu0 %v707
    %v922 = vpop.f32.mrb[0].mxu0
    %v923 = vadd.f32 0.0, %v922
    %v924 = vpop.f32.mrb[0].mxu0
    %925 = vmatprep.mubr.f32.mxu0 0.0
    %926 = vmatmul.mubr.f32.gmra.mrb[0].mxu0 %v710
    %v927 = vpop.f32.mrb[0].mxu0
    %v928 = vadd.f32 0.0, %v927
    %v929 = vpop.f32.mrb[0].mxu0
    %930 = vmatprep.mubr.f32.mxu0 0.0
    %931 = vmatmul.mubr.f32.gmra.mrb[0].mxu0 %v713
    %v932 = vpop.f32.mrb[0].mxu0
    %v933 = vadd.f32 0.0, %v932
    %v934 = vpop.f32.mrb[0].mxu0
    %935 = vmatprep.mubr.f32.mxu0 0.0
    %936 = vmatmul.mubr.f32.gmra.mrb[0].mxu0 %v716
    %v937 = vpop.f32.mrb[0].mxu0
    %v938 = vadd.f32 0.0, %v937
    %v939 = vpop.f32.mrb[0].mxu0
    %940 = vmatprep.mubr.f32.mxu0 0.0
    %941 = vmatmul.mubr.f32.gmra.mrb[0].mxu0 %v719
    %v942 = vpop.f32.mrb[0].mxu0
    %v943 = vadd.f32 0.0, %v942
    %v944 = vpop.f32.mrb[0].mxu0
    %945 = vmatprep.mubr.f32.mxu0 0.0
    %946 = vmatmul.mubr.f32.gmra.mrb[0].mxu0 %v722
    %v947 = vpop.f32.mrb[0].mxu0
    %v948 = vadd.f32 0.0, %v947
    %v949 = vpop.f32.mrb[0].mxu0
    %950 = vmatprep.mubr.f32.mxu0 0.0
    %951 = vmatmul.mubr.f32.gmra.mrb[0].mxu0 %v725
    %v952 = vpop.f32.mrb[0].mxu0
    %v953 = vadd.f32 0.0, %v952
    %v954 = vpop.f32.mrb[0].mxu0
    %955 = vdwg.mxu0
    %v956 = vld [vmem:[%s5] sm:$0x1]
    %v958 = vlaneseq
    %v959 = vshrl.u32 %v958, 7
    %v960 = vsub.s32 0, %v959
    %v961 = vrot.slane %v956, %v960
    %v963 = vmul.f32 %v798, %v961
    %v964 = vmul.f32 %v803, %v961
    %v965 = vmul.f32 %v808, %v961
    %v966 = vmul.f32 %v813, %v961
    %v967 = vmul.f32 %v818, %v961
    %v968 = vmul.f32 %v823, %v961
    %v969 = vmul.f32 %v828, %v961
    %v970 = vmul.f32 %v833, %v961
    %v971 = vmul.f32 %v838, %v961
    %v972 = vmul.f32 %v843, %v961
    %v973 = vmul.f32 %v848, %v961
    %v974 = vmul.f32 %v853, %v961
    %v975 = vmul.f32 %v858, %v961
    %v976 = vmul.f32 %v863, %v961
    %v977 = vmul.f32 %v868, %v961
    %v978 = vmul.f32 %v873, %v961
    %v979 = vmul.f32 %v878, %v961
    %v980 = vmul.f32 %v883, %v961
    %v981 = vmul.f32 %v888, %v961
    %v982 = vmul.f32 %v893, %v961
    %v983 = vmul.f32 %v898, %v961
    %v984 = vmul.f32 %v903, %v961
    %v985 = vmul.f32 %v908, %v961
    %v986 = vmul.f32 %v913, %v961
    %v987 = vmul.f32 %v918, %v961
    %v988 = vmul.f32 %v923, %v961
    %v989 = vmul.f32 %v928, %v961
    %v990 = vmul.f32 %v933, %v961
    %v991 = vmul.f32 %v938, %v961
    %v992 = vmul.f32 %v943, %v961
    %v993 = vmul.f32 %v948, %v961
    %v994 = vmul.f32 %v953, %v961
    %v995 = vsub.f32 %v443, %v963
    %v996 = vsub.f32 %v444, %v964
    %v997 = vsub.f32 %v445, %v965
    %v998 = vsub.f32 %v446, %v966
    %v999 = vsub.f32 %v447, %v967
    %v1000 = vsub.f32 %v448, %v968
    %v1001 = vsub.f32 %v449, %v969
    %v1002 = vsub.f32 %v450, %v970
    %v1003 = vsub.f32 %v451, %v971
    %v1004 = vsub.f32 %v452, %v972
    %v1005 = vsub.f32 %v453, %v973
    %v1006 = vsub.f32 %v454, %v974
    %v1007 = vsub.f32 %v455, %v975
    %v1008 = vsub.f32 %v456, %v976
    %v1009 = vsub.f32 %v457, %v977
    %v1010 = vsub.f32 %v458, %v978
    %v1011 = vsub.f32 %v459, %v979
    %v1012 = vsub.f32 %v460, %v980
    %v1013 = vsub.f32 %v461, %v981
    %v1014 = vsub.f32 %v462, %v982
    %v1015 = vsub.f32 %v463, %v983
    %v1016 = vsub.f32 %v464, %v984
    %v1017 = vsub.f32 %v465, %v985
    %v1018 = vsub.f32 %v466, %v986
    %v1019 = vsub.f32 %v467, %v987
    %v1020 = vsub.f32 %v468, %v988
    %v1021 = vsub.f32 %v469, %v989
    %v1022 = vsub.f32 %v470, %v990
    %v1023 = vsub.f32 %v471, %v991
    %v1024 = vsub.f32 %v472, %v992
    %v1025 = vsub.f32 %v473, %v993
    %v1026 = vsub.f32 %v474, %v994
    %v1027 = vmul.f32 %v995, %v995
    %v1028 = vmul.f32 %v996, %v996
    %v1029 = vmul.f32 %v997, %v997
    %v1030 = vmul.f32 %v998, %v998
    %v1031 = vmul.f32 %v999, %v999
    %v1032 = vmul.f32 %v1000, %v1000
    %v1033 = vmul.f32 %v1001, %v1001
    %v1034 = vmul.f32 %v1002, %v1002
    %v1035 = vmul.f32 %v1003, %v1003
    %v1036 = vmul.f32 %v1004, %v1004
    %v1037 = vmul.f32 %v1005, %v1005
    %v1038 = vmul.f32 %v1006, %v1006
    %v1039 = vmul.f32 %v1007, %v1007
    %v1040 = vmul.f32 %v1008, %v1008
    %v1041 = vmul.f32 %v1009, %v1009
    %v1042 = vmul.f32 %v1010, %v1010
    %v1043 = vmul.f32 %v1011, %v1011
    %v1044 = vmul.f32 %v1012, %v1012
    %v1045 = vmul.f32 %v1013, %v1013
    %v1046 = vmul.f32 %v1014, %v1014
    %v1047 = vmul.f32 %v1015, %v1015
    %v1048 = vmul.f32 %v1016, %v1016
    %v1049 = vmul.f32 %v1017, %v1017
    %v1050 = vmul.f32 %v1018, %v1018
    %v1051 = vmul.f32 %v1019, %v1019
    %v1052 = vmul.f32 %v1020, %v1020
    %v1053 = vmul.f32 %v1021, %v1021
    %v1054 = vmul.f32 %v1022, %v1022
    %v1055 = vmul.f32 %v1023, %v1023
    %v1056 = vmul.f32 %v1024, %v1024
    %v1057 = vmul.f32 %v1025, %v1025
    %v1058 = vmul.f32 %v1026, %v1026
    %1059 = vmatprep.subr.mxu0 0.0
    %1060 = vmatpush1.msra.mxu0 %v1027
    %1061 = vmatprep.subr.mxu0 0.0
    %1062 = vmatpush1.msra.mxu0 %v1028
    %1063 = vmatprep.subr.mxu0 0.0
    %1064 = vmatpush1.msra.mxu0 %v1029
    %1065 = vmatprep.subr.mxu0 0.0
    %1066 = vmatpush1.msra.mxu0 %v1030
    %1067 = vmatprep.subr.mxu0 0.0
    %1068 = vmatpush1.msra.mxu0 %v1031
    %1069 = vmatprep.subr.mxu0 0.0
    %1070 = vmatpush1.msra.mxu0 %v1032
    %1071 = vmatprep.subr.mxu0 0.0
    %1072 = vmatpush1.msra.mxu0 %v1033
    %1073 = vmatprep.subr.mxu0 0.0
    %1074 = vmatpush1.msra.mxu0 %v1034
    %1075 = vmatprep.subr.mxu0 0.0
    %1076 = vmatpush1.msra.mxu0 %v1035
    %1077 = vmatprep.subr.mxu0 0.0
    %1078 = vmatpush1.msra.mxu0 %v1036
    %1079 = vmatprep.subr.mxu0 0.0
    %1080 = vmatpush1.msra.mxu0 %v1037
    %1081 = vmatprep.subr.mxu0 0.0
    %1082 = vmatpush1.msra.mxu0 %v1038
    %1083 = vmatprep.subr.mxu0 0.0
    %1084 = vmatpush1.msra.mxu0 %v1039
    %1085 = vmatprep.subr.mxu0 0.0
    %1086 = vmatpush1.msra.mxu0 %v1040
    %1087 = vmatprep.subr.mxu0 0.0
    %1088 = vmatpush1.msra.mxu0 %v1041
    %1089 = vmatprep.subr.mxu0 0.0
    %1090 = vmatpush1.msra.mxu0 %v1042
    %1091 = vmatprep.subr.mxu0 0.0
    %1092 = vmatpush1.msra.mxu0 %v1043
    %1093 = vmatprep.subr.mxu0 0.0
    %1094 = vmatpush1.msra.mxu0 %v1044
    %1095 = vmatprep.subr.mxu0 0.0
    %1096 = vmatpush1.msra.mxu0 %v1045
    %1097 = vmatprep.subr.mxu0 0.0
    %1098 = vmatpush1.msra.mxu0 %v1046
    %1099 = vmatprep.subr.mxu0 0.0
    %1100 = vmatpush1.msra.mxu0 %v1047
    %1101 = vmatprep.subr.mxu0 0.0
    %1102 = vmatpush1.msra.mxu0 %v1048
    %1103 = vmatprep.subr.mxu0 0.0
    %1104 = vmatpush1.msra.mxu0 %v1049
    %1105 = vmatprep.subr.mxu0 0.0
    %1106 = vmatpush1.msra.mxu0 %v1050
    %1107 = vmatprep.subr.mxu0 0.0
    %1108 = vmatpush1.msra.mxu0 %v1051
    %1109 = vmatprep.subr.mxu0 0.0
    %1110 = vmatpush1.msra.mxu0 %v1052
    %1111 = vmatprep.subr.mxu0 0.0
    %1112 = vmatpush1.msra.mxu0 %v1053
    %1113 = vmatprep.subr.mxu0 0.0
    %1114 = vmatpush1.msra.mxu0 %v1054
    %1115 = vmatprep.subr.mxu0 0.0
    %1116 = vmatpush1.msra.mxu0 %v1055
    %1117 = vmatprep.subr.mxu0 0.0
    %1118 = vmatpush1.msra.mxu0 %v1056
    %1119 = vmatprep.subr.mxu0 0.0
    %1120 = vmatpush1.msra.mxu0 %v1057
    %1121 = vmatprep.subr.mxu0 0.0
    %1122 = vmatpush1.msra.mxu0 %v1058
    %1123 = vmatprep.mubr.f32.mxu0 %v487
    %1124 = vmatmul.mubr.f32.gmra.mrb[0].mxu0 %v486
    %v1125 = vpop.f32.mrb[0].mxu0
    %v1126 = vadd.f32 0.0, %v1125
    %v1127 = vpop.f32.mrb[0].mxu0
    %1128 = vdwg.mxu0
    %v1129 = vmul.f32 %v1126, %v563
    %v1130 = vld [vmem:[%s3] sm:$0x1]
    %v1132 = vlaneseq
    %v1133 = vshrl.u32 %v1132, 7
    %v1134 = vsub.s32 0, %v1133
    %v1135 = vrot.slane %v1130, %v1134
    %v1137 = vmul.f32 %v1135, %v995
    %v1138 = vmul.f32 %v1135, %v996
    %v1139 = vmul.f32 %v1135, %v997
    %v1140 = vmul.f32 %v1135, %v998
    %v1141 = vmul.f32 %v1135, %v999
    %v1142 = vmul.f32 %v1135, %v1000
    %v1143 = vmul.f32 %v1135, %v1001
    %v1144 = vmul.f32 %v1135, %v1002
    %v1145 = vmul.f32 %v1135, %v1003
    %v1146 = vmul.f32 %v1135, %v1004
    %v1147 = vmul.f32 %v1135, %v1005
    %v1148 = vmul.f32 %v1135, %v1006
    %v1149 = vmul.f32 %v1135, %v1007
    %v1150 = vmul.f32 %v1135, %v1008
    %v1151 = vmul.f32 %v1135, %v1009
    %v1152 = vmul.f32 %v1135, %v1010
    %v1153 = vmul.f32 %v1135, %v1011
    %v1154 = vmul.f32 %v1135, %v1012
    %v1155 = vmul.f32 %v1135, %v1013
    %v1156 = vmul.f32 %v1135, %v1014
    %v1157 = vmul.f32 %v1135, %v1015
    %v1158 = vmul.f32 %v1135, %v1016
    %v1159 = vmul.f32 %v1135, %v1017
    %v1160 = vmul.f32 %v1135, %v1018
    %v1161 = vmul.f32 %v1135, %v1019
    %v1162 = vmul.f32 %v1135, %v1020
    %v1163 = vmul.f32 %v1135, %v1021
    %v1164 = vmul.f32 %v1135, %v1022
    %v1165 = vmul.f32 %v1135, %v1023
    %v1166 = vmul.f32 %v1135, %v1024
    %v1167 = vmul.f32 %v1135, %v1025
    %v1168 = vmul.f32 %v1135, %v1026
    %v1170 = vsel %vm727, %v1129, 0
    %1172 = vmatprep.subr.mxu0 0.0
    %1173 = vmatpush1.msra.mxu0 %v1170
    %1174 = vmatprep.subr.mxu0 0.0
    %1175 = vmatpush1.msra.mxu0 0.0
    %1176 = vmatprep.subr.mxu0 0.0
    %1177 = vmatpush1.msra.mxu0 0.0
    %1178 = vmatprep.subr.mxu0 0.0
    %1179 = vmatpush1.msra.mxu0 0.0
    %1180 = vmatprep.subr.mxu0 0.0
    %1181 = vmatpush1.msra.mxu0 0.0
    %1182 = vmatprep.subr.mxu0 0.0
    %1183 = vmatpush1.msra.mxu0 0.0
    %1184 = vmatprep.subr.mxu0 0.0
    %1185 = vmatpush1.msra.mxu0 0.0
    %1186 = vmatprep.subr.mxu0 0.0
    %1187 = vmatpush1.msra.mxu0 0.0
    %1188 = vmatprep.subr.mxu0 0.0
    %1189 = vmatpush1.msra.mxu0 0.0
    %1190 = vmatprep.subr.mxu0 0.0
    %1191 = vmatpush1.msra.mxu0 0.0
    %1192 = vmatprep.subr.mxu0 0.0
    %1193 = vmatpush1.msra.mxu0 0.0
    %1194 = vmatprep.subr.mxu0 0.0
    %1195 = vmatpush1.msra.mxu0 0.0
    %1196 = vmatprep.subr.mxu0 0.0
    %1197 = vmatpush1.msra.mxu0 0.0
    %1198 = vmatprep.subr.mxu0 0.0
    %1199 = vmatpush1.msra.mxu0 0.0
    %1200 = vmatprep.subr.mxu0 0.0
    %1201 = vmatpush1.msra.mxu0 0.0
    %1202 = vmatprep.subr.mxu0 0.0
    %1203 = vmatpush1.msra.mxu0 0.0
    %1204 = vmatprep.subr.mxu0 0.0
    %1205 = vmatpush1.msra.mxu0 0.0
    %1206 = vmatprep.subr.mxu0 0.0
    %1207 = vmatpush1.msra.mxu0 0.0
    %1208 = vmatprep.subr.mxu0 0.0
    %1209 = vmatpush1.msra.mxu0 0.0
    %1210 = vmatprep.subr.mxu0 0.0
    %1211 = vmatpush1.msra.mxu0 0.0
    %1212 = vmatprep.subr.mxu0 0.0
    %1213 = vmatpush1.msra.mxu0 0.0
    %1214 = vmatprep.subr.mxu0 0.0
    %1215 = vmatpush1.msra.mxu0 0.0
    %1216 = vmatprep.subr.mxu0 0.0
    %1217 = vmatpush1.msra.mxu0 0.0
    %1218 = vmatprep.subr.mxu0 0.0
    %1219 = vmatpush1.msra.mxu0 0.0
    %1220 = vmatprep.subr.mxu0 0.0
    %1221 = vmatpush1.msra.mxu0 0.0
    %1222 = vmatprep.subr.mxu0 0.0
    %1223 = vmatpush1.msra.mxu0 0.0
    %1224 = vmatprep.subr.mxu0 0.0
    %1225 = vmatpush1.msra.mxu0 0.0
    %1226 = vmatprep.subr.mxu0 0.0
    %1227 = vmatpush1.msra.mxu0 0.0
    %1228 = vmatprep.subr.mxu0 0.0
    %1229 = vmatpush1.msra.mxu0 0.0
    %1230 = vmatprep.subr.mxu0 0.0
    %1231 = vmatpush1.msra.mxu0 0.0
    %1232 = vmatprep.subr.mxu0 0.0
    %1233 = vmatpush1.msra.mxu0 0.0
    %1234 = vmatprep.subr.mxu0 0.0
    %1235 = vmatpush1.msra.mxu0 0.0
    %1236 = vmatprep.mubr.f32.mxu0 0.0
    %1237 = vmatmul.mubr.f32.gmra.mrb[0].mxu0 %v632
    %v1238 = vpop.f32.mrb[0].mxu0
    %v1239 = vadd.f32 1e-05, %v1238
    %v1240 = vpop.f32.mrb[0].mxu0
    %1241 = vmatprep.mubr.f32.mxu0 0.0
    %1242 = vmatmul.mubr.f32.gmra.mrb[0].mxu0 %v635
    %v1243 = vpop.f32.mrb[0].mxu0
    %v1244 = vadd.f32 1e-05, %v1243
    %v1245 = vpop.f32.mrb[0].mxu0
    %1246 = vmatprep.mubr.f32.mxu0 0.0
    %1247 = vmatmul.mubr.f32.gmra.mrb[0].mxu0 %v638
    %v1248 = vpop.f32.mrb[0].mxu0
    %v1249 = vadd.f32 1e-05, %v1248
    %v1250 = vpop.f32.mrb[0].mxu0
    %1251 = vmatprep.mubr.f32.mxu0 0.0
    %1252 = vmatmul.mubr.f32.gmra.mrb[0].mxu0 %v641
    %v1253 = vpop.f32.mrb[0].mxu0
    %v1254 = vadd.f32 1e-05, %v1253
    %v1255 = vpop.f32.mrb[0].mxu0
    %1256 = vmatprep.mubr.f32.mxu0 0.0
    %1257 = vmatmul.mubr.f32.gmra.mrb[0].mxu0 %v644
    %v1258 = vpop.f32.mrb[0].mxu0
    %v1259 = vadd.f32 1e-05, %v1258
    %v1260 = vpop.f32.mrb[0].mxu0
    %1261 = vmatprep.mubr.f32.mxu0 0.0
    %1262 = vmatmul.mubr.f32.gmra.mrb[0].mxu0 %v647
    %v1263 = vpop.f32.mrb[0].mxu0
    %v1264 = vadd.f32 1e-05, %v1263
    %v1265 = vpop.f32.mrb[0].mxu0
    %1266 = vmatprep.mubr.f32.mxu0 0.0
    %1267 = vmatmul.mubr.f32.gmra.mrb[0].mxu0 %v650
    %v1268 = vpop.f32.mrb[0].mxu0
    %v1269 = vadd.f32 1e-05, %v1268
    %v1270 = vpop.f32.mrb[0].mxu0
    %1271 = vmatprep.mubr.f32.mxu0 0.0
    %1272 = vmatmul.mubr.f32.gmra.mrb[0].mxu0 %v653
    %v1273 = vpop.f32.mrb[0].mxu0
    %v1274 = vadd.f32 1e-05, %v1273
    %v1275 = vpop.f32.mrb[0].mxu0
    %1276 = vmatprep.mubr.f32.mxu0 0.0
    %1277 = vmatmul.mubr.f32.gmra.mrb[0].mxu0 %v656
    %v1278 = vpop.f32.mrb[0].mxu0
    %v1279 = vadd.f32 1e-05, %v1278
    %v1280 = vpop.f32.mrb[0].mxu0
    %1281 = vmatprep.mubr.f32.mxu0 0.0
    %1282 = vmatmul.mubr.f32.gmra.mrb[0].mxu0 %v659
    %v1283 = vpop.f32.mrb[0].mxu0
    %v1284 = vadd.f32 1e-05, %v1283
    %v1285 = vpop.f32.mrb[0].mxu0
    %1286 = vmatprep.mubr.f32.mxu0 0.0
    %1287 = vmatmul.mubr.f32.gmra.mrb[0].mxu0 %v662
    %v1288 = vpop.f32.mrb[0].mxu0
    %v1289 = vadd.f32 1e-05, %v1288
    %v1290 = vpop.f32.mrb[0].mxu0
    %1291 = vmatprep.mubr.f32.mxu0 0.0
    %1292 = vmatmul.mubr.f32.gmra.mrb[0].mxu0 %v665
    %v1293 = vpop.f32.mrb[0].mxu0
    %v1294 = vadd.f32 1e-05, %v1293
    %v1295 = vpop.f32.mrb[0].mxu0
    %1296 = vmatprep.mubr.f32.mxu0 0.0
    %1297 = vmatmul.mubr.f32.gmra.mrb[0].mxu0 %v668
    %v1298 = vpop.f32.mrb[0].mxu0
    %v1299 = vadd.f32 1e-05, %v1298
    %v1300 = vpop.f32.mrb[0].mxu0
    %1301 = vmatprep.mubr.f32.mxu0 0.0
    %1302 = vmatmul.mubr.f32.gmra.mrb[0].mxu0 %v671
    %v1303 = vpop.f32.mrb[0].mxu0
    %v1304 = vadd.f32 1e-05, %v1303
    %v1305 = vpop.f32.mrb[0].mxu0
    %1306 = vmatprep.mubr.f32.mxu0 0.0
    %1307 = vmatmul.mubr.f32.gmra.mrb[0].mxu0 %v674
    %v1308 = vpop.f32.mrb[0].mxu0
    %v1309 = vadd.f32 1e-05, %v1308
    %v1310 = vpop.f32.mrb[0].mxu0
    %1311 = vmatprep.mubr.f32.mxu0 0.0
    %1312 = vmatmul.mubr.f32.gmra.mrb[0].mxu0 %v677
    %v1313 = vpop.f32.mrb[0].mxu0
    %v1314 = vadd.f32 1e-05, %v1313
    %v1315 = vpop.f32.mrb[0].mxu0
    %1316 = vmatprep.mubr.f32.mxu0 0.0
    %1317 = vmatmul.mubr.f32.gmra.mrb[0].mxu0 %v680
    %v1318 = vpop.f32.mrb[0].mxu0
    %v1319 = vadd.f32 1e-05, %v1318
    %v1320 = vpop.f32.mrb[0].mxu0
    %1321 = vmatprep.mubr.f32.mxu0 0.0
    %1322 = vmatmul.mubr.f32.gmra.mrb[0].mxu0 %v683
    %v1323 = vpop.f32.mrb[0].mxu0
    %v1324 = vadd.f32 1e-05, %v1323
    %v1325 = vpop.f32.mrb[0].mxu0
    %1326 = vmatprep.mubr.f32.mxu0 0.0
    %1327 = vmatmul.mubr.f32.gmra.mrb[0].mxu0 %v686
    %v1328 = vpop.f32.mrb[0].mxu0
    %v1329 = vadd.f32 1e-05, %v1328
    %v1330 = vpop.f32.mrb[0].mxu0
    %1331 = vmatprep.mubr.f32.mxu0 0.0
    %1332 = vmatmul.mubr.f32.gmra.mrb[0].mxu0 %v689
    %v1333 = vpop.f32.mrb[0].mxu0
    %v1334 = vadd.f32 1e-05, %v1333
    %v1335 = vpop.f32.mrb[0].mxu0
    %1336 = vmatprep.mubr.f32.mxu0 0.0
    %1337 = vmatmul.mubr.f32.gmra.mrb[0].mxu0 %v692
    %v1338 = vpop.f32.mrb[0].mxu0
    %v1339 = vadd.f32 1e-05, %v1338
    %v1340 = vpop.f32.mrb[0].mxu0
    %1341 = vmatprep.mubr.f32.mxu0 0.0
    %1342 = vmatmul.mubr.f32.gmra.mrb[0].mxu0 %v695
    %v1343 = vpop.f32.mrb[0].mxu0
    %v1344 = vadd.f32 1e-05, %v1343
    %v1345 = vpop.f32.mrb[0].mxu0
    %1346 = vmatprep.mubr.f32.mxu0 0.0
    %1347 = vmatmul.mubr.f32.gmra.mrb[0].mxu0 %v698
    %v1348 = vpop.f32.mrb[0].mxu0
    %v1349 = vadd.f32 1e-05, %v1348
    %v1350 = vpop.f32.mrb[0].mxu0
    %1351 = vmatprep.mubr.f32.mxu0 0.0
    %1352 = vmatmul.mubr.f32.gmra.mrb[0].mxu0 %v701
    %v1353 = vpop.f32.mrb[0].mxu0
    %v1354 = vadd.f32 1e-05, %v1353
    %v1355 = vpop.f32.mrb[0].mxu0
    %1356 = vmatprep.mubr.f32.mxu0 0.0
    %1357 = vmatmul.mubr.f32.gmra.mrb[0].mxu0 %v704
    %v1358 = vpop.f32.mrb[0].mxu0
    %v1359 = vadd.f32 1e-05, %v1358
    %v1360 = vpop.f32.mrb[0].mxu0
    %1361 = vmatprep.mubr.f32.mxu0 0.0
    %1362 = vmatmul.mubr.f32.gmra.mrb[0].mxu0 %v707
    %v1363 = vpop.f32.mrb[0].mxu0
    %v1364 = vadd.f32 1e-05, %v1363
    %v1365 = vpop.f32.mrb[0].mxu0
    %1366 = vmatprep.mubr.f32.mxu0 0.0
    %1367 = vmatmul.mubr.f32.gmra.mrb[0].mxu0 %v710
    %v1368 = vpop.f32.mrb[0].mxu0
    %v1369 = vadd.f32 1e-05, %v1368
    %v1370 = vpop.f32.mrb[0].mxu0
    %1371 = vmatprep.mubr.f32.mxu0 0.0
    %1372 = vmatmul.mubr.f32.gmra.mrb[0].mxu0 %v713
    %v1373 = vpop.f32.mrb[0].mxu0
    %v1374 = vadd.f32 1e-05, %v1373
    %v1375 = vpop.f32.mrb[0].mxu0
    %1376 = vmatprep.mubr.f32.mxu0 0.0
    %1377 = vmatmul.mubr.f32.gmra.mrb[0].mxu0 %v716
    %v1378 = vpop.f32.mrb[0].mxu0
    %v1379 = vadd.f32 1e-05, %v1378
    %v1380 = vpop.f32.mrb[0].mxu0
    %1381 = vmatprep.mubr.f32.mxu0 0.0
    %1382 = vmatmul.mubr.f32.gmra.mrb[0].mxu0 %v719
    %v1383 = vpop.f32.mrb[0].mxu0
    %v1384 = vadd.f32 1e-05, %v1383
    %v1385 = vpop.f32.mrb[0].mxu0
    %1386 = vmatprep.mubr.f32.mxu0 0.0
    %1387 = vmatmul.mubr.f32.gmra.mrb[0].mxu0 %v722
    %v1388 = vpop.f32.mrb[0].mxu0
    %v1389 = vadd.f32 1e-05, %v1388
    %v1390 = vpop.f32.mrb[0].mxu0
    %1391 = vmatprep.mubr.f32.mxu0 0.0
    %1392 = vmatmul.mubr.f32.gmra.mrb[0].mxu0 %v725
    %v1393 = vpop.f32.mrb[0].mxu0
    %v1394 = vadd.f32 1e-05, %v1393
    %v1395 = vpop.f32.mrb[0].mxu0
    %1396 = vdwg.mxu0
    %v1397 = vrsqrt.pop %v1239
    %v1398 = vrsqrt.pop %v1244
    %v1399 = vrsqrt.pop %v1249
    %v1400 = vrsqrt.pop %v1254
    %v1401 = vrsqrt.pop %v1259
    %v1402 = vrsqrt.pop %v1264
    %v1403 = vrsqrt.pop %v1269
    %v1404 = vrsqrt.pop %v1274
    %v1405 = vrsqrt.pop %v1279
    %v1406 = vrsqrt.pop %v1284
    %v1407 = vrsqrt.pop %v1289
    %v1408 = vrsqrt.pop %v1294
    %v1409 = vrsqrt.pop %v1299
    %v1410 = vrsqrt.pop %v1304
    %v1411 = vrsqrt.pop %v1309
    %v1412 = vrsqrt.pop %v1314
    %v1413 = vrsqrt.pop %v1319
    %v1414 = vrsqrt.pop %v1324
    %v1415 = vrsqrt.pop %v1329
    %v1416 = vrsqrt.pop %v1334
    %v1417 = vrsqrt.pop %v1339
    %v1418 = vrsqrt.pop %v1344
    %v1419 = vrsqrt.pop %v1349
    %v1420 = vrsqrt.pop %v1354
    %v1421 = vrsqrt.pop %v1359
    %v1422 = vrsqrt.pop %v1364
    %v1423 = vrsqrt.pop %v1369
    %v1424 = vrsqrt.pop %v1374
    %v1425 = vrsqrt.pop %v1379
    %v1426 = vrsqrt.pop %v1384
    %v1427 = vrsqrt.pop %v1389
    %v1428 = vrsqrt.pop %v1394
    %v1429 = vmul.f32 %v1137, %v1397
    %v1430 = vmul.f32 %v1138, %v1398
    %v1431 = vmul.f32 %v1139, %v1399
    %v1432 = vmul.f32 %v1140, %v1400
    %v1433 = vmul.f32 %v1141, %v1401
    %v1434 = vmul.f32 %v1142, %v1402
    %v1435 = vmul.f32 %v1143, %v1403
    %v1436 = vmul.f32 %v1144, %v1404
    %v1437 = vmul.f32 %v1145, %v1405
    %v1438 = vmul.f32 %v1146, %v1406
    %v1439 = vmul.f32 %v1147, %v1407
    %v1440 = vmul.f32 %v1148, %v1408
    %v1441 = vmul.f32 %v1149, %v1409
    %v1442 = vmul.f32 %v1150, %v1410
    %v1443 = vmul.f32 %v1151, %v1411
    %v1444 = vmul.f32 %v1152, %v1412
    %v1445 = vmul.f32 %v1153, %v1413
    %v1446 = vmul.f32 %v1154, %v1414
    %v1447 = vmul.f32 %v1155, %v1415
    %v1448 = vmul.f32 %v1156, %v1416
    %v1449 = vmul.f32 %v1157, %v1417
    %v1450 = vmul.f32 %v1158, %v1418
    %v1451 = vmul.f32 %v1159, %v1419
    %v1452 = vmul.f32 %v1160, %v1420
    %v1453 = vmul.f32 %v1161, %v1421
    %v1454 = vmul.f32 %v1162, %v1422
    %v1455 = vmul.f32 %v1163, %v1423
    %v1456 = vmul.f32 %v1164, %v1424
    %v1457 = vmul.f32 %v1165, %v1425
    %v1458 = vmul.f32 %v1166, %v1426
    %v1459 = vmul.f32 %v1167, %v1427
    %v1460 = vmul.f32 %v1168, %v1428
    %v1461 = vld [vmem:[%s4] sm:$0x1]
    %v1463 = vlaneseq
    %v1464 = vshrl.u32 %v1463, 7
    %v1465 = vsub.s32 0, %v1464
    %v1466 = vrot.slane %v1461, %v1465
    %v1468 = vadd.f32 %v1429, %v1466
    %v1469 = vadd.f32 %v1430, %v1466
    %v1470 = vadd.f32 %v1431, %v1466
    %v1471 = vadd.f32 %v1432, %v1466
    %v1472 = vadd.f32 %v1433, %v1466
    %v1473 = vadd.f32 %v1434, %v1466
    %v1474 = vadd.f32 %v1435, %v1466
    %v1475 = vadd.f32 %v1436, %v1466
    %v1476 = vadd.f32 %v1437, %v1466
    %v1477 = vadd.f32 %v1438, %v1466
    %v1478 = vadd.f32 %v1439, %v1466
    %v1479 = vadd.f32 %v1440, %v1466
    %v1480 = vadd.f32 %v1441, %v1466
    %v1481 = vadd.f32 %v1442, %v1466
    %v1482 = vadd.f32 %v1443, %v1466
    %v1483 = vadd.f32 %v1444, %v1466
    %v1484 = vadd.f32 %v1445, %v1466
    %v1485 = vadd.f32 %v1446, %v1466
    %v1486 = vadd.f32 %v1447, %v1466
    %v1487 = vadd.f32 %v1448, %v1466
    %v1488 = vadd.f32 %v1449, %v1466
    %v1489 = vadd.f32 %v1450, %v1466
    %v1490 = vadd.f32 %v1451, %v1466
    %v1491 = vadd.f32 %v1452, %v1466
    %v1492 = vadd.f32 %v1453, %v1466
    %v1493 = vadd.f32 %v1454, %v1466
    %v1494 = vadd.f32 %v1455, %v1466
    %v1495 = vadd.f32 %v1456, %v1466
    %v1496 = vadd.f32 %v1457, %v1466
    %v1497 = vadd.f32 %v1458, %v1466
    %v1498 = vadd.f32 %v1459, %v1466
    %v1499 = vadd.f32 %v1460, %v1466
    %v1500 = vld [vmem:[%s10] sm:$0xff]
    %v1501 = vld [vmem:[%s10 + $0x8] sm:$0xff]
    %v1502 = vld [vmem:[%s10 + $0x10] sm:$0xff]
    %v1503 = vld [vmem:[%s10 + $0x18] sm:$0xff]
    %vm1504 = vcmask 261120
    %v1506 = vsel %vm1504, %v1468, 0
    %v1509 = vsel %vm1504, %v1469, 0
    %v1512 = vsel %vm1504, %v1470, 0
    %v1515 = vsel %vm1504, %v1471, 0
    %v1518 = vsel %vm1504, %v1472, 0
    %v1521 = vsel %vm1504, %v1473, 0
    %v1524 = vsel %vm1504, %v1474, 0
    %v1527 = vsel %vm1504, %v1475, 0
    %v1530 = vsel %vm1504, %v1476, 0
    %v1533 = vsel %vm1504, %v1477, 0
    %v1536 = vsel %vm1504, %v1478, 0
    %v1539 = vsel %vm1504, %v1479, 0
    %v1542 = vsel %vm1504, %v1480, 0
    %v1545 = vsel %vm1504, %v1481, 0
    %v1548 = vsel %vm1504, %v1482, 0
    %v1551 = vsel %vm1504, %v1483, 0
    %v1554 = vsel %vm1504, %v1484, 0
    %v1557 = vsel %vm1504, %v1485, 0
    %v1560 = vsel %vm1504, %v1486, 0
    %v1563 = vsel %vm1504, %v1487, 0
    %v1566 = vsel %vm1504, %v1488, 0
    %v1569 = vsel %vm1504, %v1489, 0
    %v1572 = vsel %vm1504, %v1490, 0
    %v1575 = vsel %vm1504, %v1491, 0
    %v1578 = vsel %vm1504, %v1492, 0
    %v1581 = vsel %vm1504, %v1493, 0
    %v1584 = vsel %vm1504, %v1494, 0
    %v1587 = vsel %vm1504, %v1495, 0
    %v1590 = vsel %vm1504, %v1496, 0
    %v1593 = vsel %vm1504, %v1497, 0
    %v1596 = vsel %vm1504, %v1498, 0
    %v1599 = vsel %vm1504, %v1499, 0
    %1601 = vmatprep.subr.mxu0 0.0
    %1602 = vmatpush1.msra.mxu0 %v1500
    %1603 = vmatprep.subr.mxu0 0.0
    %1604 = vmatpush1.msra.mxu0 %v1501
    %1605 = vmatprep.subr.mxu0 0.0
    %1606 = vmatpush1.msra.mxu0 %v1502
    %1607 = vmatprep.subr.mxu0 0.0
    %1608 = vmatpush1.msra.mxu0 %v1503
    %1609 = vmatprep.subr.mxu0 0.0
    %1610 = vmatpush1.msra.mxu0 0.0
    %1611 = vmatprep.subr.mxu0 0.0
    %1612 = vmatpush1.msra.mxu0 0.0
    %1613 = vmatprep.subr.mxu0 0.0
    %1614 = vmatpush1.msra.mxu0 0.0
    %1615 = vmatprep.subr.mxu0 0.0
    %1616 = vmatpush1.msra.mxu0 0.0
    %1617 = vmatprep.subr.mxu0 0.0
    %1618 = vmatpush1.msra.mxu0 0.0
    %1619 = vmatprep.subr.mxu0 0.0
    %1620 = vmatpush1.msra.mxu0 0.0
    %1621 = vmatprep.subr.mxu0 0.0
    %1622 = vmatpush1.msra.mxu0 0.0
    %1623 = vmatprep.subr.mxu0 0.0
    %1624 = vmatpush1.msra.mxu0 0.0
    %1625 = vmatprep.subr.mxu0 0.0
    %1626 = vmatpush1.msra.mxu0 0.0
    %1627 = vmatprep.subr.mxu0 0.0
    %1628 = vmatpush1.msra.mxu0 0.0
    %1629 = vmatprep.subr.mxu0 0.0
    %1630 = vmatpush1.msra.mxu0 0.0
    %1631 = vmatprep.subr.mxu0 0.0
    %1632 = vmatpush1.msra.mxu0 0.0
    %1633 = vmatprep.subr.mxu0 0.0
    %1634 = vmatpush1.msra.mxu0 0.0
    %1635 = vmatprep.subr.mxu0 0.0
    %1636 = vmatpush1.msra.mxu0 0.0
    %1637 = vmatprep.subr.mxu0 0.0
    %1638 = vmatpush1.msra.mxu0 0.0
    %1639 = vmatprep.subr.mxu0 0.0
    %1640 = vmatpush1.msra.mxu0 0.0
    %1641 = vmatprep.subr.mxu0 0.0
    %1642 = vmatpush1.msra.mxu0 0.0
    %1643 = vmatprep.subr.mxu0 0.0
    %1644 = vmatpush1.msra.mxu0 0.0
    %1645 = vmatprep.subr.mxu0 0.0
    %1646 = vmatpush1.msra.mxu0 0.0
    %1647 = vmatprep.subr.mxu0 0.0
    %1648 = vmatpush1.msra.mxu0 0.0
    %1649 = vmatprep.subr.mxu0 0.0
    %1650 = vmatpush1.msra.mxu0 0.0
    %1651 = vmatprep.subr.mxu0 0.0
    %1652 = vmatpush1.msra.mxu0 0.0
    %1653 = vmatprep.subr.mxu0 0.0
    %1654 = vmatpush1.msra.mxu0 0.0
    %1655 = vmatprep.subr.mxu0 0.0
    %1656 = vmatpush1.msra.mxu0 0.0
    %1657 = vmatprep.subr.mxu0 0.0
    %1658 = vmatpush1.msra.mxu0 0.0
    %1659 = vmatprep.subr.mxu0 0.0
    %1660 = vmatpush1.msra.mxu0 0.0
    %1661 = vmatprep.subr.mxu0 0.0
    %1662 = vmatpush1.msra.mxu0 0.0
    %1663 = vmatprep.subr.mxu0 0.0
    %1664 = vmatpush1.msra.mxu0 0.0
    %1665 = vmatprep.mubr.f32.mxu0 0.0
    %1666 = vmatmul.mubr.f32.gmra.mrb[0].mxu0 %v1506
    %v1667 = vpop.f32.mrb[0].mxu0
    %v1668 = vadd.f32 0.0, %v1667
    %v1669 = vpop.f32.mrb[0].mxu0
    %1670 = vmatprep.mubr.f32.mxu0 0.0
    %1671 = vmatmul.mubr.f32.gmra.mrb[0].mxu0 %v1509
    %v1672 = vpop.f32.mrb[0].mxu0
    %v1673 = vadd.f32 0.0, %v1672
    %v1674 = vpop.f32.mrb[0].mxu0
    %1675 = vmatprep.mubr.f32.mxu0 0.0
    %1676 = vmatmul.mubr.f32.gmra.mrb[0].mxu0 %v1512
    %v1677 = vpop.f32.mrb[0].mxu0
    %v1678 = vadd.f32 0.0, %v1677
    %v1679 = vpop.f32.mrb[0].mxu0
    %1680 = vmatprep.mubr.f32.mxu0 0.0
    %1681 = vmatmul.mubr.f32.gmra.mrb[0].mxu0 %v1515
    %v1682 = vpop.f32.mrb[0].mxu0
    %v1683 = vadd.f32 0.0, %v1682
    %v1684 = vpop.f32.mrb[0].mxu0
    %1685 = vmatprep.mubr.f32.mxu0 0.0
    %1686 = vmatmul.mubr.f32.gmra.mrb[0].mxu0 %v1518
    %v1687 = vpop.f32.mrb[0].mxu0
    %v1688 = vadd.f32 0.0, %v1687
    %v1689 = vpop.f32.mrb[0].mxu0
    %1690 = vmatprep.mubr.f32.mxu0 0.0
    %1691 = vmatmul.mubr.f32.gmra.mrb[0].mxu0 %v1521
    %v1692 = vpop.f32.mrb[0].mxu0
    %v1693 = vadd.f32 0.0, %v1692
    %v1694 = vpop.f32.mrb[0].mxu0
    %1695 = vmatprep.mubr.f32.mxu0 0.0
    %1696 = vmatmul.mubr.f32.gmra.mrb[0].mxu0 %v1524
    %v1697 = vpop.f32.mrb[0].mxu0
    %v1698 = vadd.f32 0.0, %v1697
    %v1699 = vpop.f32.mrb[0].mxu0
    %1700 = vmatprep.mubr.f32.mxu0 0.0
    %1701 = vmatmul.mubr.f32.gmra.mrb[0].mxu0 %v1527
    %v1702 = vpop.f32.mrb[0].mxu0
    %v1703 = vadd.f32 0.0, %v1702
    %v1704 = vpop.f32.mrb[0].mxu0
    %1705 = vmatprep.mubr.f32.mxu0 0.0
    %1706 = vmatmul.mubr.f32.gmra.mrb[0].mxu0 %v1530
    %v1707 = vpop.f32.mrb[0].mxu0
    %v1708 = vadd.f32 0.0, %v1707
    %v1709 = vpop.f32.mrb[0].mxu0
    %1710 = vmatprep.mubr.f32.mxu0 0.0
    %1711 = vmatmul.mubr.f32.gmra.mrb[0].mxu0 %v1533
    %v1712 = vpop.f32.mrb[0].mxu0
    %v1713 = vadd.f32 0.0, %v1712
    %v1714 = vpop.f32.mrb[0].mxu0
    %1715 = vmatprep.mubr.f32.mxu0 0.0
    %1716 = vmatmul.mubr.f32.gmra.mrb[0].mxu0 %v1536
    %v1717 = vpop.f32.mrb[0].mxu0
    %v1718 = vadd.f32 0.0, %v1717
    %v1719 = vpop.f32.mrb[0].mxu0
    %1720 = vmatprep.mubr.f32.mxu0 0.0
    %1721 = vmatmul.mubr.f32.gmra.mrb[0].mxu0 %v1539
    %v1722 = vpop.f32.mrb[0].mxu0
    %v1723 = vadd.f32 0.0, %v1722
    %v1724 = vpop.f32.mrb[0].mxu0
    %1725 = vmatprep.mubr.f32.mxu0 0.0
    %1726 = vmatmul.mubr.f32.gmra.mrb[0].mxu0 %v1542
    %v1727 = vpop.f32.mrb[0].mxu0
    %v1728 = vadd.f32 0.0, %v1727
    %v1729 = vpop.f32.mrb[0].mxu0
    %1730 = vmatprep.mubr.f32.mxu0 0.0
    %1731 = vmatmul.mubr.f32.gmra.mrb[0].mxu0 %v1545
    %v1732 = vpop.f32.mrb[0].mxu0
    %v1733 = vadd.f32 0.0, %v1732
    %v1734 = vpop.f32.mrb[0].mxu0
    %1735 = vmatprep.mubr.f32.mxu0 0.0
    %1736 = vmatmul.mubr.f32.gmra.mrb[0].mxu0 %v1548
    %v1737 = vpop.f32.mrb[0].mxu0
    %v1738 = vadd.f32 0.0, %v1737
    %v1739 = vpop.f32.mrb[0].mxu0
    %1740 = vmatprep.mubr.f32.mxu0 0.0
    %1741 = vmatmul.mubr.f32.gmra.mrb[0].mxu0 %v1551
    %v1742 = vpop.f32.mrb[0].mxu0
    %v1743 = vadd.f32 0.0, %v1742
    %v1744 = vpop.f32.mrb[0].mxu0
    %1745 = vmatprep.mubr.f32.mxu0 0.0
    %1746 = vmatmul.mubr.f32.gmra.mrb[0].mxu0 %v1554
    %v1747 = vpop.f32.mrb[0].mxu0
    %v1748 = vadd.f32 0.0, %v1747
    %v1749 = vpop.f32.mrb[0].mxu0
    %1750 = vmatprep.mubr.f32.mxu0 0.0
    %1751 = vmatmul.mubr.f32.gmra.mrb[0].mxu0 %v1557
    %v1752 = vpop.f32.mrb[0].mxu0
    %v1753 = vadd.f32 0.0, %v1752
    %v1754 = vpop.f32.mrb[0].mxu0
    %1755 = vmatprep.mubr.f32.mxu0 0.0
    %1756 = vmatmul.mubr.f32.gmra.mrb[0].mxu0 %v1560
    %v1757 = vpop.f32.mrb[0].mxu0
    %v1758 = vadd.f32 0.0, %v1757
    %v1759 = vpop.f32.mrb[0].mxu0
    %1760 = vmatprep.mubr.f32.mxu0 0.0
    %1761 = vmatmul.mubr.f32.gmra.mrb[0].mxu0 %v1563
    %v1762 = vpop.f32.mrb[0].mxu0
    %v1763 = vadd.f32 0.0, %v1762
    %v1764 = vpop.f32.mrb[0].mxu0
    %1765 = vmatprep.mubr.f32.mxu0 0.0
    %1766 = vmatmul.mubr.f32.gmra.mrb[0].mxu0 %v1566
    %v1767 = vpop.f32.mrb[0].mxu0
    %v1768 = vadd.f32 0.0, %v1767
    %v1769 = vpop.f32.mrb[0].mxu0
    %1770 = vmatprep.mubr.f32.mxu0 0.0
    %1771 = vmatmul.mubr.f32.gmra.mrb[0].mxu0 %v1569
    %v1772 = vpop.f32.mrb[0].mxu0
    %v1773 = vadd.f32 0.0, %v1772
    %v1774 = vpop.f32.mrb[0].mxu0
    %1775 = vmatprep.mubr.f32.mxu0 0.0
    %1776 = vmatmul.mubr.f32.gmra.mrb[0].mxu0 %v1572
    %v1777 = vpop.f32.mrb[0].mxu0
    %v1778 = vadd.f32 0.0, %v1777
    %v1779 = vpop.f32.mrb[0].mxu0
    %1780 = vmatprep.mubr.f32.mxu0 0.0
    %1781 = vmatmul.mubr.f32.gmra.mrb[0].mxu0 %v1575
    %v1782 = vpop.f32.mrb[0].mxu0
    %v1783 = vadd.f32 0.0, %v1782
    %v1784 = vpop.f32.mrb[0].mxu0
    %1785 = vmatprep.mubr.f32.mxu0 0.0
    %1786 = vmatmul.mubr.f32.gmra.mrb[0].mxu0 %v1578
    %v1787 = vpop.f32.mrb[0].mxu0
    %v1788 = vadd.f32 0.0, %v1787
    %v1789 = vpop.f32.mrb[0].mxu0
    %1790 = vmatprep.mubr.f32.mxu0 0.0
    %1791 = vmatmul.mubr.f32.gmra.mrb[0].mxu0 %v1581
    %v1792 = vpop.f32.mrb[0].mxu0
    %v1793 = vadd.f32 0.0, %v1792
    %v1794 = vpop.f32.mrb[0].mxu0
    %1795 = vmatprep.mubr.f32.mxu0 0.0
    %1796 = vmatmul.mubr.f32.gmra.mrb[0].mxu0 %v1584
    %v1797 = vpop.f32.mrb[0].mxu0
    %v1798 = vadd.f32 0.0, %v1797
    %v1799 = vpop.f32.mrb[0].mxu0
    %1800 = vmatprep.mubr.f32.mxu0 0.0
    %1801 = vmatmul.mubr.f32.gmra.mrb[0].mxu0 %v1587
    %v1802 = vpop.f32.mrb[0].mxu0
    %v1803 = vadd.f32 0.0, %v1802
    %v1804 = vpop.f32.mrb[0].mxu0
    %1805 = vmatprep.mubr.f32.mxu0 0.0
    %1806 = vmatmul.mubr.f32.gmra.mrb[0].mxu0 %v1590
    %v1807 = vpop.f32.mrb[0].mxu0
    %v1808 = vadd.f32 0.0, %v1807
    %v1809 = vpop.f32.mrb[0].mxu0
    %1810 = vmatprep.mubr.f32.mxu0 0.0
    %1811 = vmatmul.mubr.f32.gmra.mrb[0].mxu0 %v1593
    %v1812 = vpop.f32.mrb[0].mxu0
    %v1813 = vadd.f32 0.0, %v1812
    %v1814 = vpop.f32.mrb[0].mxu0
    %1815 = vmatprep.mubr.f32.mxu0 0.0
    %1816 = vmatmul.mubr.f32.gmra.mrb[0].mxu0 %v1596
    %v1817 = vpop.f32.mrb[0].mxu0
    %v1818 = vadd.f32 0.0, %v1817
    %v1819 = vpop.f32.mrb[0].mxu0
    %1820 = vmatprep.mubr.f32.mxu0 0.0
    %1821 = vmatmul.mubr.f32.gmra.mrb[0].mxu0 %v1599
    %v1822 = vpop.f32.mrb[0].mxu0
    %v1823 = vadd.f32 0.0, %v1822
    %v1824 = vpop.f32.mrb[0].mxu0
    %1825 = vdwg.mxu0
    %v1826 = vld [vmem:[%s9] sm:$0xff]
    %v1827 = vld [vmem:[%s9 + $0x8] sm:$0xff]
    %v1828 = vld [vmem:[%s9 + $0x10] sm:$0xff]
    %v1829 = vld [vmem:[%s9 + $0x18] sm:$0xff]
    %v1830 = vld [vmem:[%s9 + $0x20] sm:$0xff]
    %v1831 = vld [vmem:[%s9 + $0x28] sm:$0xff]
    %v1832 = vld [vmem:[%s9 + $0x30] sm:$0xff]
    %v1833 = vld [vmem:[%s9 + $0x38] sm:$0xff]
    %v1834 = vld [vmem:[%s9 + $0x40] sm:$0xff]
    %v1835 = vld [vmem:[%s9 + $0x48] sm:$0xff]
    %v1836 = vld [vmem:[%s9 + $0x50] sm:$0xff]
    %v1837 = vld [vmem:[%s9 + $0x58] sm:$0xff]
    %v1838 = vld [vmem:[%s9 + $0x60] sm:$0xff]
    %v1839 = vld [vmem:[%s9 + $0x68] sm:$0xff]
    %v1840 = vld [vmem:[%s9 + $0x70] sm:$0xff]
    %v1841 = vld [vmem:[%s9 + $0x78] sm:$0xff]
    %v1842 = vld [vmem:[%s9 + $0x80] sm:$0xff]
    %v1843 = vld [vmem:[%s9 + $0x88] sm:$0xff]
    %v1844 = vld [vmem:[%s9 + $0x90] sm:$0xff]
    %v1845 = vld [vmem:[%s9 + $0x98] sm:$0xff]
    %v1846 = vld [vmem:[%s9 + $0xa0] sm:$0xff]
    %v1847 = vld [vmem:[%s9 + $0xa8] sm:$0xff]
    %v1848 = vld [vmem:[%s9 + $0xb0] sm:$0xff]
    %v1849 = vld [vmem:[%s9 + $0xb8] sm:$0xff]
    %v1850 = vld [vmem:[%s9 + $0xc0] sm:$0xff]
    %v1851 = vld [vmem:[%s9 + $0xc8] sm:$0xff]
    %v1852 = vld [vmem:[%s9 + $0xd0] sm:$0xff]
    %v1853 = vld [vmem:[%s9 + $0xd8] sm:$0xff]
    %v1854 = vld [vmem:[%s9 + $0xe0] sm:$0xff]
    %v1855 = vld [vmem:[%s9 + $0xe8] sm:$0xff]
    %v1856 = vld [vmem:[%s9 + $0xf0] sm:$0xff]
    %v1857 = vld [vmem:[%s9 + $0xf8] sm:$0xff]
    %v1858 = vpack.c.bf16 %v1673, %v1668
    %v1859 = vpack.c.bf16 %v1683, %v1678
    %v1860 = vpack.c.bf16 %v1693, %v1688
    %v1861 = vpack.c.bf16 %v1703, %v1698
    %v1862 = vpack.c.bf16 %v1713, %v1708
    %v1863 = vpack.c.bf16 %v1723, %v1718
    %v1864 = vpack.c.bf16 %v1733, %v1728
    %v1865 = vpack.c.bf16 %v1743, %v1738
    %v1866 = vpack.c.bf16 %v1753, %v1748
    %v1867 = vpack.c.bf16 %v1763, %v1758
    %v1868 = vpack.c.bf16 %v1773, %v1768
    %v1869 = vpack.c.bf16 %v1783, %v1778
    %v1870 = vpack.c.bf16 %v1793, %v1788
    %v1871 = vpack.c.bf16 %v1803, %v1798
    %v1872 = vpack.c.bf16 %v1813, %v1808
    %v1873 = vpack.c.bf16 %v1823, %v1818
    %v1906 = vunpack.c.l.b16 %v1826
    %v1907 = vunpack.c.h.b16 %v1826
    %v1908 = vunpack.c.l.b16 %v1827
    %v1909 = vunpack.c.h.b16 %v1827
    %v1910 = vunpack.c.l.b16 %v1828
    %v1911 = vunpack.c.h.b16 %v1828
    %v1912 = vunpack.c.l.b16 %v1829
    %v1913 = vunpack.c.h.b16 %v1829
    %v1914 = vunpack.c.l.b16 %v1830
    %v1915 = vunpack.c.h.b16 %v1830
    %v1916 = vunpack.c.l.b16 %v1831
    %v1917 = vunpack.c.h.b16 %v1831
    %v1918 = vunpack.c.l.b16 %v1832
    %v1919 = vunpack.c.h.b16 %v1832
    %v1920 = vunpack.c.l.b16 %v1833
    %v1921 = vunpack.c.h.b16 %v1833
    %v1922 = vunpack.c.l.b16 %v1834
    %v1923 = vunpack.c.h.b16 %v1834
    %v1924 = vunpack.c.l.b16 %v1835
    %v1925 = vunpack.c.h.b16 %v1835
    %v1926 = vunpack.c.l.b16 %v1836
    %v1927 = vunpack.c.h.b16 %v1836
    %v1928 = vunpack.c.l.b16 %v1837
    %v1929 = vunpack.c.h.b16 %v1837
    %v1930 = vunpack.c.l.b16 %v1838
    %v1931 = vunpack.c.h.b16 %v1838
    %v1932 = vunpack.c.l.b16 %v1839
    %v1933 = vunpack.c.h.b16 %v1839
    %v1934 = vunpack.c.l.b16 %v1840
    %v1935 = vunpack.c.h.b16 %v1840
    %v1936 = vunpack.c.l.b16 %v1841
    %v1937 = vunpack.c.h.b16 %v1841
    %v1938 = vunpack.c.l.b16 %v1842
    %v1939 = vunpack.c.h.b16 %v1842
    %v1940 = vunpack.c.l.b16 %v1843
    %v1941 = vunpack.c.h.b16 %v1843
    %v1942 = vunpack.c.l.b16 %v1844
    %v1943 = vunpack.c.h.b16 %v1844
    %v1944 = vunpack.c.l.b16 %v1845
    %v1945 = vunpack.c.h.b16 %v1845
    %v1946 = vunpack.c.l.b16 %v1846
    %v1947 = vunpack.c.h.b16 %v1846
    %v1948 = vunpack.c.l.b16 %v1847
    %v1949 = vunpack.c.h.b16 %v1847
    %v1950 = vunpack.c.l.b16 %v1848
    %v1951 = vunpack.c.h.b16 %v1848
    %v1952 = vunpack.c.l.b16 %v1849
    %v1953 = vunpack.c.h.b16 %v1849
    %v1954 = vunpack.c.l.b16 %v1850
    %v1955 = vunpack.c.h.b16 %v1850
    %v1956 = vunpack.c.l.b16 %v1851
    %v1957 = vunpack.c.h.b16 %v1851
    %v1958 = vunpack.c.l.b16 %v1852
    %v1959 = vunpack.c.h.b16 %v1852
    %v1960 = vunpack.c.l.b16 %v1853
    %v1961 = vunpack.c.h.b16 %v1853
    %v1962 = vunpack.c.l.b16 %v1854
    %v1963 = vunpack.c.h.b16 %v1854
    %v1964 = vunpack.c.l.b16 %v1855
    %v1965 = vunpack.c.h.b16 %v1855
    %v1966 = vunpack.c.l.b16 %v1856
    %v1967 = vunpack.c.h.b16 %v1856
    %v1968 = vunpack.c.l.b16 %v1857
    %v1969 = vunpack.c.h.b16 %v1857
    %v1970 = vpack.c.b16 %v1908, %v1906
    %v1971 = vpack.c.b16 %v1909, %v1907
    %v1972 = vpack.c.b16 %v1912, %v1910
    %v1973 = vpack.c.b16 %v1913, %v1911
    %v1974 = vpack.c.b16 %v1916, %v1914
    %v1975 = vpack.c.b16 %v1917, %v1915
    %v1976 = vpack.c.b16 %v1920, %v1918
    %v1977 = vpack.c.b16 %v1921, %v1919
    %v1978 = vpack.c.b16 %v1924, %v1922
    %v1979 = vpack.c.b16 %v1925, %v1923
    %v1980 = vpack.c.b16 %v1928, %v1926
    %v1981 = vpack.c.b16 %v1929, %v1927
    %v1982 = vpack.c.b16 %v1932, %v1930
    %v1983 = vpack.c.b16 %v1933, %v1931
    %v1984 = vpack.c.b16 %v1936, %v1934
    %v1985 = vpack.c.b16 %v1937, %v1935
    %v1986 = vpack.c.b16 %v1940, %v1938
    %v1987 = vpack.c.b16 %v1941, %v1939
    %v1988 = vpack.c.b16 %v1944, %v1942
    %v1989 = vpack.c.b16 %v1945, %v1943
    %v1990 = vpack.c.b16 %v1948, %v1946
    %v1991 = vpack.c.b16 %v1949, %v1947
    %v1992 = vpack.c.b16 %v1952, %v1950
    %v1993 = vpack.c.b16 %v1953, %v1951
    %v1994 = vpack.c.b16 %v1956, %v1954
    %v1995 = vpack.c.b16 %v1957, %v1955
    %v1996 = vpack.c.b16 %v1960, %v1958
    %v1997 = vpack.c.b16 %v1961, %v1959
    %v1998 = vpack.c.b16 %v1964, %v1962
    %v1999 = vpack.c.b16 %v1965, %v1963
    %v2000 = vpack.c.b16 %v1968, %v1966
    %v2001 = vpack.c.b16 %v1969, %v1967
    %2050 = vrot.lane.b32.xlu0 %v1858, 112
    %v2051 = vpop.permute.xlu0 %2050
    %2052 = vrot.lane.b32.xlu0 %v1859, 112
    %v2053 = vpop.permute.xlu0 %2052
    %2054 = vrot.lane.b32.xlu0 %v1860, 112
    %v2055 = vpop.permute.xlu0 %2054
    %2056 = vrot.lane.b32.xlu0 %v1861, 112
    %v2057 = vpop.permute.xlu0 %2056
    %2058 = vrot.lane.b32.xlu0 %v1862, 112
    %v2059 = vpop.permute.xlu0 %2058
    %2060 = vrot.lane.b32.xlu0 %v1863, 112
    %v2061 = vpop.permute.xlu0 %2060
    %2062 = vrot.lane.b32.xlu0 %v1864, 112
    %v2063 = vpop.permute.xlu0 %2062
    %2064 = vrot.lane.b32.xlu0 %v1865, 112
    %v2065 = vpop.permute.xlu0 %2064
    %2066 = vrot.lane.b32.xlu0 %v1866, 112
    %v2067 = vpop.permute.xlu0 %2066
    %2068 = vrot.lane.b32.xlu0 %v1867, 112
    %v2069 = vpop.permute.xlu0 %2068
    %2070 = vrot.lane.b32.xlu0 %v1868, 112
    %v2071 = vpop.permute.xlu0 %2070
    %2072 = vrot.lane.b32.xlu0 %v1869, 112
    %v2073 = vpop.permute.xlu0 %2072
    %2074 = vrot.lane.b32.xlu0 %v1870, 112
    %v2075 = vpop.permute.xlu0 %2074
    %2076 = vrot.lane.b32.xlu0 %v1871, 112
    %v2077 = vpop.permute.xlu0 %2076
    %2078 = vrot.lane.b32.xlu0 %v1872, 112
    %v2079 = vpop.permute.xlu0 %2078
    %2080 = vrot.lane.b32.xlu0 %v1873, 112
    %v2081 = vpop.permute.xlu0 %2080
    %2098 = vmatprep.subr.bf16.mxu0 0
    %2099 = vmatpush1.bf16.msra.mxu0 %v2051
    %2100 = vmatprep.subr.bf16.mxu0 0
    %2101 = vmatpush1.bf16.msra.mxu0 %v2053
    %2102 = vmatprep.subr.bf16.mxu0 0
    %2103 = vmatpush1.bf16.msra.mxu0 %v2055
    %2104 = vmatprep.subr.bf16.mxu0 0
    %2105 = vmatpush1.bf16.msra.mxu0 %v2057
    %2106 = vmatprep.subr.bf16.mxu0 0
    %2107 = vmatpush1.bf16.msra.mxu0 %v2059
    %2108 = vmatprep.subr.bf16.mxu0 0
    %2109 = vmatpush1.bf16.msra.mxu0 %v2061
    %2110 = vmatprep.subr.bf16.mxu0 0
    %2111 = vmatpush1.bf16.msra.mxu0 %v2063
    %2112 = vmatprep.subr.bf16.mxu0 0
    %2113 = vmatpush1.bf16.msra.mxu0 %v2065
    %2114 = vmatprep.subr.bf16.mxu0 0
    %2115 = vmatpush1.bf16.msra.mxu0 %v2067
    %2116 = vmatprep.subr.bf16.mxu0 0
    %2117 = vmatpush1.bf16.msra.mxu0 %v2069
    %2118 = vmatprep.subr.bf16.mxu0 0
    %2119 = vmatpush1.bf16.msra.mxu0 %v2071
    %2120 = vmatprep.subr.bf16.mxu0 0
    %2121 = vmatpush1.bf16.msra.mxu0 %v2073
    %2122 = vmatprep.subr.bf16.mxu0 0
    %2123 = vmatpush1.bf16.msra.mxu0 %v2075
    %2124 = vmatprep.subr.bf16.mxu0 0
    %2125 = vmatpush1.bf16.msra.mxu0 %v2077
    %2126 = vmatprep.subr.bf16.mxu0 0
    %2127 = vmatpush1.bf16.msra.mxu0 %v2079
    %2128 = vmatprep.subr.bf16.mxu0 0
    %2129 = vmatpush1.bf16.msra.mxu0 %v2081
    %2130 = vmatprep.mubr.bf16.mxu0 %v1971
    %2131 = vmatmul.mubr.bf16.gmra.mrb[0].mxu0 %v1970
    %v2132 = vpop.f32.mrb[0].mxu0
    %v2133 = vadd.f32 0.0, %v2132
    %v2134 = vpop.f32.mrb[0].mxu0
    %v2135 = vpop.f32.mrb[0].mxu0
    %v2136 = vadd.f32 0.0, %v2135
    %v2137 = vpop.f32.mrb[0].mxu0
    %2138 = vmatprep.mubr.bf16.mxu0 %v1973
    %2139 = vmatmul.mubr.bf16.gmra.mrb[0].mxu0 %v1972
    %v2140 = vpop.f32.mrb[0].mxu0
    %v2141 = vadd.f32 0.0, %v2140
    %v2142 = vpop.f32.mrb[0].mxu0
    %v2143 = vpop.f32.mrb[0].mxu0
    %v2144 = vadd.f32 0.0, %v2143
    %v2145 = vpop.f32.mrb[0].mxu0
    %2146 = vmatprep.mubr.bf16.mxu0 %v1975
    %2147 = vmatmul.mubr.bf16.gmra.mrb[0].mxu0 %v1974
    %v2148 = vpop.f32.mrb[0].mxu0
    %v2149 = vadd.f32 0.0, %v2148
    %v2150 = vpop.f32.mrb[0].mxu0
    %v2151 = vpop.f32.mrb[0].mxu0
    %v2152 = vadd.f32 0.0, %v2151
    %v2153 = vpop.f32.mrb[0].mxu0
    %2154 = vmatprep.mubr.bf16.mxu0 %v1977
    %2155 = vmatmul.mubr.bf16.gmra.mrb[0].mxu0 %v1976
    %v2156 = vpop.f32.mrb[0].mxu0
    %v2157 = vadd.f32 0.0, %v2156
    %v2158 = vpop.f32.mrb[0].mxu0
    %v2159 = vpop.f32.mrb[0].mxu0
    %v2160 = vadd.f32 0.0, %v2159
    %v2161 = vpop.f32.mrb[0].mxu0
    %2162 = vmatprep.mubr.bf16.mxu0 %v1979
    %2163 = vmatmul.mubr.bf16.gmra.mrb[0].mxu0 %v1978
    %v2164 = vpop.f32.mrb[0].mxu0
    %v2165 = vadd.f32 0.0, %v2164
    %v2166 = vpop.f32.mrb[0].mxu0
    %v2167 = vpop.f32.mrb[0].mxu0
    %v2168 = vadd.f32 0.0, %v2167
    %v2169 = vpop.f32.mrb[0].mxu0
    %2170 = vmatprep.mubr.bf16.mxu0 %v1981
    %2171 = vmatmul.mubr.bf16.gmra.mrb[0].mxu0 %v1980
    %v2172 = vpop.f32.mrb[0].mxu0
    %v2173 = vadd.f32 0.0, %v2172
    %v2174 = vpop.f32.mrb[0].mxu0
    %v2175 = vpop.f32.mrb[0].mxu0
    %v2176 = vadd.f32 0.0, %v2175
    %v2177 = vpop.f32.mrb[0].mxu0
    %2178 = vmatprep.mubr.bf16.mxu0 %v1983
    %2179 = vmatmul.mubr.bf16.gmra.mrb[0].mxu0 %v1982
    %v2180 = vpop.f32.mrb[0].mxu0
    %v2181 = vadd.f32 0.0, %v2180
    %v2182 = vpop.f32.mrb[0].mxu0
    %v2183 = vpop.f32.mrb[0].mxu0
    %v2184 = vadd.f32 0.0, %v2183
    %v2185 = vpop.f32.mrb[0].mxu0
    %2186 = vmatprep.mubr.bf16.mxu0 %v1985
    %2187 = vmatmul.mubr.bf16.gmra.mrb[0].mxu0 %v1984
    %v2188 = vpop.f32.mrb[0].mxu0
    %v2189 = vadd.f32 0.0, %v2188
    %v2190 = vpop.f32.mrb[0].mxu0
    %v2191 = vpop.f32.mrb[0].mxu0
    %v2192 = vadd.f32 0.0, %v2191
    %v2193 = vpop.f32.mrb[0].mxu0
    %2194 = vmatprep.mubr.bf16.mxu0 %v1987
    %2195 = vmatmul.mubr.bf16.gmra.mrb[0].mxu0 %v1986
    %v2196 = vpop.f32.mrb[0].mxu0
    %v2197 = vadd.f32 0.0, %v2196
    %v2198 = vpop.f32.mrb[0].mxu0
    %v2199 = vpop.f32.mrb[0].mxu0
    %v2200 = vadd.f32 0.0, %v2199
    %v2201 = vpop.f32.mrb[0].mxu0
    %2202 = vmatprep.mubr.bf16.mxu0 %v1989
    %2203 = vmatmul.mubr.bf16.gmra.mrb[0].mxu0 %v1988
    %v2204 = vpop.f32.mrb[0].mxu0
    %v2205 = vadd.f32 0.0, %v2204
    %v2206 = vpop.f32.mrb[0].mxu0
    %v2207 = vpop.f32.mrb[0].mxu0
    %v2208 = vadd.f32 0.0, %v2207
    %v2209 = vpop.f32.mrb[0].mxu0
    %2210 = vmatprep.mubr.bf16.mxu0 %v1991
    %2211 = vmatmul.mubr.bf16.gmra.mrb[0].mxu0 %v1990
    %v2212 = vpop.f32.mrb[0].mxu0
    %v2213 = vadd.f32 0.0, %v2212
    %v2214 = vpop.f32.mrb[0].mxu0
    %v2215 = vpop.f32.mrb[0].mxu0
    %v2216 = vadd.f32 0.0, %v2215
    %v2217 = vpop.f32.mrb[0].mxu0
    %2218 = vmatprep.mubr.bf16.mxu0 %v1993
    %2219 = vmatmul.mubr.bf16.gmra.mrb[0].mxu0 %v1992
    %v2220 = vpop.f32.mrb[0].mxu0
    %v2221 = vadd.f32 0.0, %v2220
    %v2222 = vpop.f32.mrb[0].mxu0
    %v2223 = vpop.f32.mrb[0].mxu0
    %v2224 = vadd.f32 0.0, %v2223
    %v2225 = vpop.f32.mrb[0].mxu0
    %2226 = vmatprep.mubr.bf16.mxu0 %v1995
    %2227 = vmatmul.mubr.bf16.gmra.mrb[0].mxu0 %v1994
    %v2228 = vpop.f32.mrb[0].mxu0
    %v2229 = vadd.f32 0.0, %v2228
    %v2230 = vpop.f32.mrb[0].mxu0
    %v2231 = vpop.f32.mrb[0].mxu0
    %v2232 = vadd.f32 0.0, %v2231
    %v2233 = vpop.f32.mrb[0].mxu0
    %2234 = vmatprep.mubr.bf16.mxu0 %v1997
    %2235 = vmatmul.mubr.bf16.gmra.mrb[0].mxu0 %v1996
    %v2236 = vpop.f32.mrb[0].mxu0
    %v2237 = vadd.f32 0.0, %v2236
    %v2238 = vpop.f32.mrb[0].mxu0
    %v2239 = vpop.f32.mrb[0].mxu0
    %v2240 = vadd.f32 0.0, %v2239
    %v2241 = vpop.f32.mrb[0].mxu0
    %2242 = vmatprep.mubr.bf16.mxu0 %v1999
    %2243 = vmatmul.mubr.bf16.gmra.mrb[0].mxu0 %v1998
    %v2244 = vpop.f32.mrb[0].mxu0
    %v2245 = vadd.f32 0.0, %v2244
    %v2246 = vpop.f32.mrb[0].mxu0
    %v2247 = vpop.f32.mrb[0].mxu0
    %v2248 = vadd.f32 0.0, %v2247
    %v2249 = vpop.f32.mrb[0].mxu0
    %2250 = vmatprep.mubr.bf16.mxu0 %v2001
    %2251 = vmatmul.mubr.bf16.gmra.mrb[0].mxu0 %v2000
    %v2252 = vpop.f32.mrb[0].mxu0
    %v2253 = vadd.f32 0.0, %v2252
    %v2254 = vpop.f32.mrb[0].mxu0
    %v2255 = vpop.f32.mrb[0].mxu0
    %v2256 = vadd.f32 0.0, %v2255
    %v2257 = vpop.f32.mrb[0].mxu0
    %2258 = vdwg.mxu0
    %v2259 = vmul.f32 %v2133, 2.0
    %v2260 = vmul.f32 %v2136, 2.0
    %v2261 = vmul.f32 %v2141, 2.0
    %v2262 = vmul.f32 %v2144, 2.0
    %v2263 = vmul.f32 %v2149, 2.0
    %v2264 = vmul.f32 %v2152, 2.0
    %v2265 = vmul.f32 %v2157, 2.0
    %v2266 = vmul.f32 %v2160, 2.0
    %v2267 = vmul.f32 %v2165, 2.0
    %v2268 = vmul.f32 %v2168, 2.0
    %v2269 = vmul.f32 %v2173, 2.0
    %v2270 = vmul.f32 %v2176, 2.0
    %v2271 = vmul.f32 %v2181, 2.0
    %v2272 = vmul.f32 %v2184, 2.0
    %v2273 = vmul.f32 %v2189, 2.0
    %v2274 = vmul.f32 %v2192, 2.0
    %v2275 = vmul.f32 %v2197, 2.0
    %v2276 = vmul.f32 %v2200, 2.0
    %v2277 = vmul.f32 %v2205, 2.0
    %v2278 = vmul.f32 %v2208, 2.0
    %v2279 = vmul.f32 %v2213, 2.0
    %v2280 = vmul.f32 %v2216, 2.0
    %v2281 = vmul.f32 %v2221, 2.0
    %v2282 = vmul.f32 %v2224, 2.0
    %v2283 = vmul.f32 %v2229, 2.0
    %v2284 = vmul.f32 %v2232, 2.0
    %v2285 = vmul.f32 %v2237, 2.0
    %v2286 = vmul.f32 %v2240, 2.0
    %v2287 = vmul.f32 %v2245, 2.0
    %v2288 = vmul.f32 %v2248, 2.0
    %v2289 = vmul.f32 %v2253, 2.0
    %v2290 = vmul.f32 %v2256, 2.0
    %v2291 = vpack.c.bf16 %v2260, %v2259
    %v2292 = vpack.c.bf16 %v2262, %v2261
    %v2293 = vpack.c.bf16 %v2264, %v2263
    %v2294 = vpack.c.bf16 %v2266, %v2265
    %v2295 = vpack.c.bf16 %v2268, %v2267
    %v2296 = vpack.c.bf16 %v2270, %v2269
    %v2297 = vpack.c.bf16 %v2272, %v2271
    %v2298 = vpack.c.bf16 %v2274, %v2273
    %v2299 = vpack.c.bf16 %v2276, %v2275
    %v2300 = vpack.c.bf16 %v2278, %v2277
    %v2301 = vpack.c.bf16 %v2280, %v2279
    %v2302 = vpack.c.bf16 %v2282, %v2281
    %v2303 = vpack.c.bf16 %v2284, %v2283
    %v2304 = vpack.c.bf16 %v2286, %v2285
    %v2305 = vpack.c.bf16 %v2288, %v2287
    %v2306 = vpack.c.bf16 %v2290, %v2289
    %2323 = vrot.lane.b32.xlu0 %v2291, 112
    %v2324 = vpop.permute.xlu0 %2323
    %2325 = vrot.lane.b32.xlu0 %v2292, 112
    %v2326 = vpop.permute.xlu0 %2325
    %2327 = vrot.lane.b32.xlu0 %v2293, 112
    %v2328 = vpop.permute.xlu0 %2327
    %2329 = vrot.lane.b32.xlu0 %v2294, 112
    %v2330 = vpop.permute.xlu0 %2329
    %2331 = vrot.lane.b32.xlu0 %v2295, 112
    %v2332 = vpop.permute.xlu0 %2331
    %2333 = vrot.lane.b32.xlu0 %v2296, 112
    %v2334 = vpop.permute.xlu0 %2333
    %2335 = vrot.lane.b32.xlu0 %v2297, 112
    %v2336 = vpop.permute.xlu0 %2335
    %2337 = vrot.lane.b32.xlu0 %v2298, 112
    %v2338 = vpop.permute.xlu0 %2337
    %2339 = vrot.lane.b32.xlu0 %v2299, 112
    %v2340 = vpop.permute.xlu0 %2339
    %2341 = vrot.lane.b32.xlu0 %v2300, 112
    %v2342 = vpop.permute.xlu0 %2341
    %2343 = vrot.lane.b32.xlu0 %v2301, 112
    %v2344 = vpop.permute.xlu0 %2343
    %2345 = vrot.lane.b32.xlu0 %v2302, 112
    %v2346 = vpop.permute.xlu0 %2345
    %2347 = vrot.lane.b32.xlu0 %v2303, 112
    %v2348 = vpop.permute.xlu0 %2347
    %2349 = vrot.lane.b32.xlu0 %v2304, 112
    %v2350 = vpop.permute.xlu0 %2349
    %2351 = vrot.lane.b32.xlu0 %v2305, 112
    %v2352 = vpop.permute.xlu0 %2351
    %2353 = vrot.lane.b32.xlu0 %v2306, 112
    %v2354 = vpop.permute.xlu0 %2353
    %2371 = vmatprep.subr.bf16.mxu0 0
    %2372 = vmatpush1.bf16.msra.mxu0 %v2324
    %2373 = vmatprep.subr.bf16.mxu0 0
    %2374 = vmatpush1.bf16.msra.mxu0 %v2326
    %2375 = vmatprep.subr.bf16.mxu0 0
    %2376 = vmatpush1.bf16.msra.mxu0 %v2328
    %2377 = vmatprep.subr.bf16.mxu0 0
    %2378 = vmatpush1.bf16.msra.mxu0 %v2330
    %2379 = vmatprep.subr.bf16.mxu0 0
    %2380 = vmatpush1.bf16.msra.mxu0 %v2332
    %2381 = vmatprep.subr.bf16.mxu0 0
    %2382 = vmatpush1.bf16.msra.mxu0 %v2334
    %2383 = vmatprep.subr.bf16.mxu0 0
    %2384 = vmatpush1.bf16.msra.mxu0 %v2336
    %2385 = vmatprep.subr.bf16.mxu0 0
    %2386 = vmatpush1.bf16.msra.mxu0 %v2338
    %2387 = vmatprep.subr.bf16.mxu0 0
    %2388 = vmatpush1.bf16.msra.mxu0 %v2340
    %2389 = vmatprep.subr.bf16.mxu0 0
    %2390 = vmatpush1.bf16.msra.mxu0 %v2342
    %2391 = vmatprep.subr.bf16.mxu0 0
    %2392 = vmatpush1.bf16.msra.mxu0 %v2344
    %2393 = vmatprep.subr.bf16.mxu0 0
    %2394 = vmatpush1.bf16.msra.mxu0 %v2346
    %2395 = vmatprep.subr.bf16.mxu0 0
    %2396 = vmatpush1.bf16.msra.mxu0 %v2348
    %2397 = vmatprep.subr.bf16.mxu0 0
    %2398 = vmatpush1.bf16.msra.mxu0 %v2350
    %2399 = vmatprep.subr.bf16.mxu0 0
    %2400 = vmatpush1.bf16.msra.mxu0 %v2352
    %2401 = vmatprep.subr.bf16.mxu0 0
    %2402 = vmatpush1.bf16.msra.mxu0 %v2354
    %2403 = vmatprep.mubr.bf16.mxu0 %v1971
    %2404 = vmatmul.mubr.bf16.gmra.mrb[0].mxu0 %v1970
    %v2405 = vpop.f32.mrb[0].mxu0
    %v2406 = vadd.f32 0.0, %v2405
    %v2407 = vpop.f32.mrb[0].mxu0
    %v2408 = vpop.f32.mrb[0].mxu0
    %v2409 = vadd.f32 0.0, %v2408
    %v2410 = vpop.f32.mrb[0].mxu0
    %2411 = vmatprep.mubr.bf16.mxu0 %v1973
    %2412 = vmatmul.mubr.bf16.gmra.mrb[0].mxu0 %v1972
    %v2413 = vpop.f32.mrb[0].mxu0
    %v2414 = vadd.f32 0.0, %v2413
    %v2415 = vpop.f32.mrb[0].mxu0
    %v2416 = vpop.f32.mrb[0].mxu0
    %v2417 = vadd.f32 0.0, %v2416
    %v2418 = vpop.f32.mrb[0].mxu0
    %2419 = vmatprep.mubr.bf16.mxu0 %v1975
    %2420 = vmatmul.mubr.bf16.gmra.mrb[0].mxu0 %v1974
    %v2421 = vpop.f32.mrb[0].mxu0
    %v2422 = vadd.f32 0.0, %v2421
    %v2423 = vpop.f32.mrb[0].mxu0
    %v2424 = vpop.f32.mrb[0].mxu0
    %v2425 = vadd.f32 0.0, %v2424
    %v2426 = vpop.f32.mrb[0].mxu0
    %2427 = vmatprep.mubr.bf16.mxu0 %v1977
    %2428 = vmatmul.mubr.bf16.gmra.mrb[0].mxu0 %v1976
    %v2429 = vpop.f32.mrb[0].mxu0
    %v2430 = vadd.f32 0.0, %v2429
    %v2431 = vpop.f32.mrb[0].mxu0
    %v2432 = vpop.f32.mrb[0].mxu0
    %v2433 = vadd.f32 0.0, %v2432
    %v2434 = vpop.f32.mrb[0].mxu0
    %2435 = vmatprep.mubr.bf16.mxu0 %v1979
    %2436 = vmatmul.mubr.bf16.gmra.mrb[0].mxu0 %v1978
    %v2437 = vpop.f32.mrb[0].mxu0
    %v2438 = vadd.f32 0.0, %v2437
    %v2439 = vpop.f32.mrb[0].mxu0
    %v2440 = vpop.f32.mrb[0].mxu0
    %v2441 = vadd.f32 0.0, %v2440
    %v2442 = vpop.f32.mrb[0].mxu0
    %2443 = vmatprep.mubr.bf16.mxu0 %v1981
    %2444 = vmatmul.mubr.bf16.gmra.mrb[0].mxu0 %v1980
    %v2445 = vpop.f32.mrb[0].mxu0
    %v2446 = vadd.f32 0.0, %v2445
    %v2447 = vpop.f32.mrb[0].mxu0
    %v2448 = vpop.f32.mrb[0].mxu0
    %v2449 = vadd.f32 0.0, %v2448
    %v2450 = vpop.f32.mrb[0].mxu0
    %2451 = vmatprep.mubr.bf16.mxu0 %v1983
    %2452 = vmatmul.mubr.bf16.gmra.mrb[0].mxu0 %v1982
    %v2453 = vpop.f32.mrb[0].mxu0
    %v2454 = vadd.f32 0.0, %v2453
    %v2455 = vpop.f32.mrb[0].mxu0
    %v2456 = vpop.f32.mrb[0].mxu0
    %v2457 = vadd.f32 0.0, %v2456
    %v2458 = vpop.f32.mrb[0].mxu0
    %2459 = vmatprep.mubr.bf16.mxu0 %v1985
    %2460 = vmatmul.mubr.bf16.gmra.mrb[0].mxu0 %v1984
    %v2461 = vpop.f32.mrb[0].mxu0
    %v2462 = vadd.f32 0.0, %v2461
    %v2463 = vpop.f32.mrb[0].mxu0
    %v2464 = vpop.f32.mrb[0].mxu0
    %v2465 = vadd.f32 0.0, %v2464
    %v2466 = vpop.f32.mrb[0].mxu0
    %2467 = vmatprep.mubr.bf16.mxu0 %v1987
    %2468 = vmatmul.mubr.bf16.gmra.mrb[0].mxu0 %v1986
    %v2469 = vpop.f32.mrb[0].mxu0
    %v2470 = vadd.f32 0.0, %v2469
    %v2471 = vpop.f32.mrb[0].mxu0
    %v2472 = vpop.f32.mrb[0].mxu0
    %v2473 = vadd.f32 0.0, %v2472
    %v2474 = vpop.f32.mrb[0].mxu0
    %2475 = vmatprep.mubr.bf16.mxu0 %v1989
    %2476 = vmatmul.mubr.bf16.gmra.mrb[0].mxu0 %v1988
    %v2477 = vpop.f32.mrb[0].mxu0
    %v2478 = vadd.f32 0.0, %v2477
    %v2479 = vpop.f32.mrb[0].mxu0
    %v2480 = vpop.f32.mrb[0].mxu0
    %v2481 = vadd.f32 0.0, %v2480
    %v2482 = vpop.f32.mrb[0].mxu0
    %2483 = vmatprep.mubr.bf16.mxu0 %v1991
    %2484 = vmatmul.mubr.bf16.gmra.mrb[0].mxu0 %v1990
    %v2485 = vpop.f32.mrb[0].mxu0
    %v2486 = vadd.f32 0.0, %v2485
    %v2487 = vpop.f32.mrb[0].mxu0
    %v2488 = vpop.f32.mrb[0].mxu0
    %v2489 = vadd.f32 0.0, %v2488
    %v2490 = vpop.f32.mrb[0].mxu0
    %2491 = vmatprep.mubr.bf16.mxu0 %v1993
    %2492 = vmatmul.mubr.bf16.gmra.mrb[0].mxu0 %v1992
    %v2493 = vpop.f32.mrb[0].mxu0
    %v2494 = vadd.f32 0.0, %v2493
    %v2495 = vpop.f32.mrb[0].mxu0
    %v2496 = vpop.f32.mrb[0].mxu0
    %v2497 = vadd.f32 0.0, %v2496
    %v2498 = vpop.f32.mrb[0].mxu0
    %2499 = vmatprep.mubr.bf16.mxu0 %v1995
    %2500 = vmatmul.mubr.bf16.gmra.mrb[0].mxu0 %v1994
    %v2501 = vpop.f32.mrb[0].mxu0
    %v2502 = vadd.f32 0.0, %v2501
    %v2503 = vpop.f32.mrb[0].mxu0
    %v2504 = vpop.f32.mrb[0].mxu0
    %v2505 = vadd.f32 0.0, %v2504
    %v2506 = vpop.f32.mrb[0].mxu0
    %2507 = vmatprep.mubr.bf16.mxu0 %v1997
    %2508 = vmatmul.mubr.bf16.gmra.mrb[0].mxu0 %v1996
    %v2509 = vpop.f32.mrb[0].mxu0
    %v2510 = vadd.f32 0.0, %v2509
    %v2511 = vpop.f32.mrb[0].mxu0
    %v2512 = vpop.f32.mrb[0].mxu0
    %v2513 = vadd.f32 0.0, %v2512
    %v2514 = vpop.f32.mrb[0].mxu0
    %2515 = vmatprep.mubr.bf16.mxu0 %v1999
    %2516 = vmatmul.mubr.bf16.gmra.mrb[0].mxu0 %v1998
    %v2517 = vpop.f32.mrb[0].mxu0
    %v2518 = vadd.f32 0.0, %v2517
    %v2519 = vpop.f32.mrb[0].mxu0
    %v2520 = vpop.f32.mrb[0].mxu0
    %v2521 = vadd.f32 0.0, %v2520
    %v2522 = vpop.f32.mrb[0].mxu0
    %2523 = vmatprep.mubr.bf16.mxu0 %v2001
    %2524 = vmatmul.mubr.bf16.gmra.mrb[0].mxu0 %v2000
    %v2525 = vpop.f32.mrb[0].mxu0
    %v2526 = vadd.f32 0.0, %v2525
    %v2527 = vpop.f32.mrb[0].mxu0
    %v2528 = vpop.f32.mrb[0].mxu0
    %v2529 = vadd.f32 0.0, %v2528
    %v2530 = vpop.f32.mrb[0].mxu0
    %2531 = vdwg.mxu0
    %v2532 = vadd.f32 %v1668, %v2133
    %v2533 = vadd.f32 %v1673, %v2136
    %v2534 = vadd.f32 %v1678, %v2141
    %v2535 = vadd.f32 %v1683, %v2144
    %v2536 = vadd.f32 %v1688, %v2149
    %v2537 = vadd.f32 %v1693, %v2152
    %v2538 = vadd.f32 %v1698, %v2157
    %v2539 = vadd.f32 %v1703, %v2160
    %v2540 = vadd.f32 %v1708, %v2165
    %v2541 = vadd.f32 %v1713, %v2168
    %v2542 = vadd.f32 %v1718, %v2173
    %v2543 = vadd.f32 %v1723, %v2176
    %v2544 = vadd.f32 %v1728, %v2181
    %v2545 = vadd.f32 %v1733, %v2184
    %v2546 = vadd.f32 %v1738, %v2189
    %v2547 = vadd.f32 %v1743, %v2192
    %v2548 = vadd.f32 %v1748, %v2197
    %v2549 = vadd.f32 %v1753, %v2200
    %v2550 = vadd.f32 %v1758, %v2205
    %v2551 = vadd.f32 %v1763, %v2208
    %v2552 = vadd.f32 %v1768, %v2213
    %v2553 = vadd.f32 %v1773, %v2216
    %v2554 = vadd.f32 %v1778, %v2221
    %v2555 = vadd.f32 %v1783, %v2224
    %v2556 = vadd.f32 %v1788, %v2229
    %v2557 = vadd.f32 %v1793, %v2232
    %v2558 = vadd.f32 %v1798, %v2237
    %v2559 = vadd.f32 %v1803, %v2240
    %v2560 = vadd.f32 %v1808, %v2245
    %v2561 = vadd.f32 %v1813, %v2248
    %v2562 = vadd.f32 %v1818, %v2253
    %v2563 = vadd.f32 %v1823, %v2256
    %v2564 = vadd.f32 %v2532, %v2406
    %v2565 = vadd.f32 %v2533, %v2409
    %v2566 = vadd.f32 %v2534, %v2414
    %v2567 = vadd.f32 %v2535, %v2417
    %v2568 = vadd.f32 %v2536, %v2422
    %v2569 = vadd.f32 %v2537, %v2425
    %v2570 = vadd.f32 %v2538, %v2430
    %v2571 = vadd.f32 %v2539, %v2433
    %v2572 = vadd.f32 %v2540, %v2438
    %v2573 = vadd.f32 %v2541, %v2441
    %v2574 = vadd.f32 %v2542, %v2446
    %v2575 = vadd.f32 %v2543, %v2449
    %v2576 = vadd.f32 %v2544, %v2454
    %v2577 = vadd.f32 %v2545, %v2457
    %v2578 = vadd.f32 %v2546, %v2462
    %v2579 = vadd.f32 %v2547, %v2465
    %v2580 = vadd.f32 %v2548, %v2470
    %v2581 = vadd.f32 %v2549, %v2473
    %v2582 = vadd.f32 %v2550, %v2478
    %v2583 = vadd.f32 %v2551, %v2481
    %v2584 = vadd.f32 %v2552, %v2486
    %v2585 = vadd.f32 %v2553, %v2489
    %v2586 = vadd.f32 %v2554, %v2494
    %v2587 = vadd.f32 %v2555, %v2497
    %v2588 = vadd.f32 %v2556, %v2502
    %v2589 = vadd.f32 %v2557, %v2505
    %v2590 = vadd.f32 %v2558, %v2510
    %v2591 = vadd.f32 %v2559, %v2513
    %v2592 = vadd.f32 %v2560, %v2518
    %v2593 = vadd.f32 %v2561, %v2521
    %v2594 = vadd.f32 %v2562, %v2526
    %v2595 = vadd.f32 %v2563, %v2529
    %v2596 = vld [vmem:[%s11] sm:$0x1]
    %v2598 = vlaneseq
    %v2599 = vshrl.u32 %v2598, 7
    %v2600 = vsub.s32 0, %v2599
    %v2601 = vrot.slane %v2596, %v2600
    %v2603 = vadd.f32 %v2564, %v2601
    %v2604 = vadd.f32 %v2565, %v2601
    %v2605 = vadd.f32 %v2566, %v2601
    %v2606 = vadd.f32 %v2567, %v2601
    %v2607 = vadd.f32 %v2568, %v2601
    %v2608 = vadd.f32 %v2569, %v2601
    %v2609 = vadd.f32 %v2570, %v2601
    %v2610 = vadd.f32 %v2571, %v2601
    %v2611 = vadd.f32 %v2572, %v2601
    %v2612 = vadd.f32 %v2573, %v2601
    %v2613 = vadd.f32 %v2574, %v2601
    %v2614 = vadd.f32 %v2575, %v2601
    %v2615 = vadd.f32 %v2576, %v2601
    %v2616 = vadd.f32 %v2577, %v2601
    %v2617 = vadd.f32 %v2578, %v2601
    %v2618 = vadd.f32 %v2579, %v2601
    %v2619 = vadd.f32 %v2580, %v2601
    %v2620 = vadd.f32 %v2581, %v2601
    %v2621 = vadd.f32 %v2582, %v2601
    %v2622 = vadd.f32 %v2583, %v2601
    %v2623 = vadd.f32 %v2584, %v2601
    %v2624 = vadd.f32 %v2585, %v2601
    %v2625 = vadd.f32 %v2586, %v2601
    %v2626 = vadd.f32 %v2587, %v2601
    %v2627 = vadd.f32 %v2588, %v2601
    %v2628 = vadd.f32 %v2589, %v2601
    %v2629 = vadd.f32 %v2590, %v2601
    %v2630 = vadd.f32 %v2591, %v2601
    %v2631 = vadd.f32 %v2592, %v2601
    %v2632 = vadd.f32 %v2593, %v2601
    %v2633 = vadd.f32 %v2594, %v2601
    %v2634 = vadd.f32 %v2595, %v2601
    %v2635 = vmax.f32 %v2603, -1.0
    %v2636 = vmax.f32 %v2604, -1.0
    %v2637 = vmax.f32 %v2605, -1.0
    %v2638 = vmax.f32 %v2606, -1.0
    %v2639 = vmax.f32 %v2607, -1.0
    %v2640 = vmax.f32 %v2608, -1.0
    %v2641 = vmax.f32 %v2609, -1.0
    %v2642 = vmax.f32 %v2610, -1.0
    %v2643 = vmax.f32 %v2611, -1.0
    %v2644 = vmax.f32 %v2612, -1.0
    %v2645 = vmax.f32 %v2613, -1.0
    %v2646 = vmax.f32 %v2614, -1.0
    %v2647 = vmax.f32 %v2615, -1.0
    %v2648 = vmax.f32 %v2616, -1.0
    %v2649 = vmax.f32 %v2617, -1.0
    %v2650 = vmax.f32 %v2618, -1.0
    %v2651 = vmax.f32 %v2619, -1.0
    %v2652 = vmax.f32 %v2620, -1.0
    %v2653 = vmax.f32 %v2621, -1.0
    %v2654 = vmax.f32 %v2622, -1.0
    %v2655 = vmax.f32 %v2623, -1.0
    %v2656 = vmax.f32 %v2624, -1.0
    %v2657 = vmax.f32 %v2625, -1.0
    %v2658 = vmax.f32 %v2626, -1.0
    %v2659 = vmax.f32 %v2627, -1.0
    %v2660 = vmax.f32 %v2628, -1.0
    %v2661 = vmax.f32 %v2629, -1.0
    %v2662 = vmax.f32 %v2630, -1.0
    %v2663 = vmax.f32 %v2631, -1.0
    %v2664 = vmax.f32 %v2632, -1.0
    %v2665 = vmax.f32 %v2633, -1.0
    %v2666 = vmax.f32 %v2634, -1.0
    %v2667 = vmin.f32 %v2635, 1.0
    %v2668 = vmin.f32 %v2636, 1.0
    %v2669 = vmin.f32 %v2637, 1.0
    %v2670 = vmin.f32 %v2638, 1.0
    %v2671 = vmin.f32 %v2639, 1.0
    %v2672 = vmin.f32 %v2640, 1.0
    %v2673 = vmin.f32 %v2641, 1.0
    %v2674 = vmin.f32 %v2642, 1.0
    %v2675 = vmin.f32 %v2643, 1.0
    %v2676 = vmin.f32 %v2644, 1.0
    %v2677 = vmin.f32 %v2645, 1.0
    %v2678 = vmin.f32 %v2646, 1.0
    %v2679 = vmin.f32 %v2647, 1.0
    %v2680 = vmin.f32 %v2648, 1.0
    %v2681 = vmin.f32 %v2649, 1.0
    %v2682 = vmin.f32 %v2650, 1.0
    %v2683 = vmin.f32 %v2651, 1.0
    %v2684 = vmin.f32 %v2652, 1.0
    %v2685 = vmin.f32 %v2653, 1.0
    %v2686 = vmin.f32 %v2654, 1.0
    %v2687 = vmin.f32 %v2655, 1.0
    %v2688 = vmin.f32 %v2656, 1.0
    %v2689 = vmin.f32 %v2657, 1.0
    %v2690 = vmin.f32 %v2658, 1.0
    %v2691 = vmin.f32 %v2659, 1.0
    %v2692 = vmin.f32 %v2660, 1.0
    %v2693 = vmin.f32 %v2661, 1.0
    %v2694 = vmin.f32 %v2662, 1.0
    %v2695 = vmin.f32 %v2663, 1.0
    %v2696 = vmin.f32 %v2664, 1.0
    %v2697 = vmin.f32 %v2665, 1.0
    %v2698 = vmin.f32 %v2666, 1.0
    %vm2699 = vcmask 130048
    %2700 = vst.msk [vmem:[#allocation2] sm:$0xff] %vm2699, %v2667
    %2701 = vst.msk [vmem:[#allocation2 + $0x8] sm:$0xff] %vm2699, %v2668
    %2702 = vst.msk [vmem:[#allocation2 + $0x10] sm:$0xff] %vm2699, %v2669
    %2703 = vst.msk [vmem:[#allocation2 + $0x18] sm:$0xff] %vm2699, %v2670
    %2704 = vst.msk [vmem:[#allocation2 + $0x20] sm:$0xff] %vm2699, %v2671
    %2705 = vst.msk [vmem:[#allocation2 + $0x28] sm:$0xff] %vm2699, %v2672
    %2706 = vst.msk [vmem:[#allocation2 + $0x30] sm:$0xff] %vm2699, %v2673
    %2707 = vst.msk [vmem:[#allocation2 + $0x38] sm:$0xff] %vm2699, %v2674
    %2708 = vst.msk [vmem:[#allocation2 + $0x40] sm:$0xff] %vm2699, %v2675
    %2709 = vst.msk [vmem:[#allocation2 + $0x48] sm:$0xff] %vm2699, %v2676
    %2710 = vst.msk [vmem:[#allocation2 + $0x50] sm:$0xff] %vm2699, %v2677
    %2711 = vst.msk [vmem:[#allocation2 + $0x58] sm:$0xff] %vm2699, %v2678
    %2712 = vst.msk [vmem:[#allocation2 + $0x60] sm:$0xff] %vm2699, %v2679
    %2713 = vst.msk [vmem:[#allocation2 + $0x68] sm:$0xff] %vm2699, %v2680
    %2714 = vst.msk [vmem:[#allocation2 + $0x70] sm:$0xff] %vm2699, %v2681
    %2715 = vst.msk [vmem:[#allocation2 + $0x78] sm:$0xff] %vm2699, %v2682
    %2716 = vst.msk [vmem:[#allocation2 + $0x80] sm:$0xff] %vm2699, %v2683
    %2717 = vst.msk [vmem:[#allocation2 + $0x88] sm:$0xff] %vm2699, %v2684
    %2718 = vst.msk [vmem:[#allocation2 + $0x90] sm:$0xff] %vm2699, %v2685
    %2719 = vst.msk [vmem:[#allocation2 + $0x98] sm:$0xff] %vm2699, %v2686
    %2720 = vst.msk [vmem:[#allocation2 + $0xa0] sm:$0xff] %vm2699, %v2687
    %2721 = vst.msk [vmem:[#allocation2 + $0xa8] sm:$0xff] %vm2699, %v2688
    %2722 = vst.msk [vmem:[#allocation2 + $0xb0] sm:$0xff] %vm2699, %v2689
    %2723 = vst.msk [vmem:[#allocation2 + $0xb8] sm:$0xff] %vm2699, %v2690
    %2724 = vst.msk [vmem:[#allocation2 + $0xc0] sm:$0xff] %vm2699, %v2691
    %2725 = vst.msk [vmem:[#allocation2 + $0xc8] sm:$0xff] %vm2699, %v2692
    %2726 = vst.msk [vmem:[#allocation2 + $0xd0] sm:$0xff] %vm2699, %v2693
    %2727 = vst.msk [vmem:[#allocation2 + $0xd8] sm:$0xff] %vm2699, %v2694
    %2728 = vst.msk [vmem:[#allocation2 + $0xe0] sm:$0xff] %vm2699, %v2695
    %2729 = vst.msk [vmem:[#allocation2 + $0xe8] sm:$0xff] %vm2699, %v2696
    %2730 = vst.msk [vmem:[#allocation2 + $0xf0] sm:$0xff] %vm2699, %v2697
    %2731 = vst.msk [vmem:[#allocation2 + $0xf8] sm:$0xff] %vm2699, %v2698
    %v2732 = vmul.f32 %v2667, %v2667
    %v2733 = vmul.f32 %v2668, %v2668
    %v2734 = vmul.f32 %v2669, %v2669
    %v2735 = vmul.f32 %v2670, %v2670
    %v2736 = vmul.f32 %v2671, %v2671
    %v2737 = vmul.f32 %v2672, %v2672
    %v2738 = vmul.f32 %v2673, %v2673
    %v2739 = vmul.f32 %v2674, %v2674
    %v2740 = vmul.f32 %v2675, %v2675
    %v2741 = vmul.f32 %v2676, %v2676
    %v2742 = vmul.f32 %v2677, %v2677
    %v2743 = vmul.f32 %v2678, %v2678
    %v2744 = vmul.f32 %v2679, %v2679
    %v2745 = vmul.f32 %v2680, %v2680
    %v2746 = vmul.f32 %v2681, %v2681
    %v2747 = vmul.f32 %v2682, %v2682
    %v2748 = vmul.f32 %v2683, %v2683
    %v2749 = vmul.f32 %v2684, %v2684
    %v2750 = vmul.f32 %v2685, %v2685
    %v2751 = vmul.f32 %v2686, %v2686
    %v2752 = vmul.f32 %v2687, %v2687
    %v2753 = vmul.f32 %v2688, %v2688
    %v2754 = vmul.f32 %v2689, %v2689
    %v2755 = vmul.f32 %v2690, %v2690
    %v2756 = vmul.f32 %v2691, %v2691
    %v2757 = vmul.f32 %v2692, %v2692
    %v2758 = vmul.f32 %v2693, %v2693
    %v2759 = vmul.f32 %v2694, %v2694
    %v2760 = vmul.f32 %v2695, %v2695
    %v2761 = vmul.f32 %v2696, %v2696
    %v2762 = vmul.f32 %v2697, %v2697
    %v2763 = vmul.f32 %v2698, %v2698
    %2764 = vmatprep.subr.mxu0 0.0
    %2765 = vmatpush1.msra.mxu0 %v2732
    %2766 = vmatprep.subr.mxu0 0.0
    %2767 = vmatpush1.msra.mxu0 %v2733
    %2768 = vmatprep.subr.mxu0 0.0
    %2769 = vmatpush1.msra.mxu0 %v2734
    %2770 = vmatprep.subr.mxu0 0.0
    %2771 = vmatpush1.msra.mxu0 %v2735
    %2772 = vmatprep.subr.mxu0 0.0
    %2773 = vmatpush1.msra.mxu0 %v2736
    %2774 = vmatprep.subr.mxu0 0.0
    %2775 = vmatpush1.msra.mxu0 %v2737
    %2776 = vmatprep.subr.mxu0 0.0
    %2777 = vmatpush1.msra.mxu0 %v2738
    %2778 = vmatprep.subr.mxu0 0.0
    %2779 = vmatpush1.msra.mxu0 %v2739
    %2780 = vmatprep.subr.mxu0 0.0
    %2781 = vmatpush1.msra.mxu0 %v2740
    %2782 = vmatprep.subr.mxu0 0.0
    %2783 = vmatpush1.msra.mxu0 %v2741
    %2784 = vmatprep.subr.mxu0 0.0
    %2785 = vmatpush1.msra.mxu0 %v2742
    %2786 = vmatprep.subr.mxu0 0.0
    %2787 = vmatpush1.msra.mxu0 %v2743
    %2788 = vmatprep.subr.mxu0 0.0
    %2789 = vmatpush1.msra.mxu0 %v2744
    %2790 = vmatprep.subr.mxu0 0.0
    %2791 = vmatpush1.msra.mxu0 %v2745
    %2792 = vmatprep.subr.mxu0 0.0
    %2793 = vmatpush1.msra.mxu0 %v2746
    %2794 = vmatprep.subr.mxu0 0.0
    %2795 = vmatpush1.msra.mxu0 %v2747
    %2796 = vmatprep.subr.mxu0 0.0
    %2797 = vmatpush1.msra.mxu0 %v2748
    %2798 = vmatprep.subr.mxu0 0.0
    %2799 = vmatpush1.msra.mxu0 %v2749
    %2800 = vmatprep.subr.mxu0 0.0
    %2801 = vmatpush1.msra.mxu0 %v2750
    %2802 = vmatprep.subr.mxu0 0.0
    %2803 = vmatpush1.msra.mxu0 %v2751
    %2804 = vmatprep.subr.mxu0 0.0
    %2805 = vmatpush1.msra.mxu0 %v2752
    %2806 = vmatprep.subr.mxu0 0.0
    %2807 = vmatpush1.msra.mxu0 %v2753
    %2808 = vmatprep.subr.mxu0 0.0
    %2809 = vmatpush1.msra.mxu0 %v2754
    %2810 = vmatprep.subr.mxu0 0.0
    %2811 = vmatpush1.msra.mxu0 %v2755
    %2812 = vmatprep.subr.mxu0 0.0
    %2813 = vmatpush1.msra.mxu0 %v2756
    %2814 = vmatprep.subr.mxu0 0.0
    %2815 = vmatpush1.msra.mxu0 %v2757
    %2816 = vmatprep.subr.mxu0 0.0
    %2817 = vmatpush1.msra.mxu0 %v2758
    %2818 = vmatprep.subr.mxu0 0.0
    %2819 = vmatpush1.msra.mxu0 %v2759
    %2820 = vmatprep.subr.mxu0 0.0
    %2821 = vmatpush1.msra.mxu0 %v2760
    %2822 = vmatprep.subr.mxu0 0.0
    %2823 = vmatpush1.msra.mxu0 %v2761
    %2824 = vmatprep.subr.mxu0 0.0
    %2825 = vmatpush1.msra.mxu0 %v2762
    %2826 = vmatprep.subr.mxu0 0.0
    %2827 = vmatpush1.msra.mxu0 %v2763
    %2828 = vmatprep.mubr.f32.mxu0 %v487
    %2829 = vmatmul.mubr.f32.gmra.mrb[0].mxu0 %v486
    %v2830 = vpop.f32.mrb[0].mxu0
    %v2831 = vadd.f32 0.0, %v2830
    %v2832 = vpop.f32.mrb[0].mxu0
    %2833 = vdwg.mxu0
    %v2834 = vmul.f32 %v2831, %v563
    %v2835 = vrsqrt.pop %v2834
    %v2836 = vmul.f32 %v2834, %v2835
    %vm2837 = vcmp.eq.f32.partialorder %v2834, inf
    %v2838 = vsel %vm2837, %v2834, %v2836
    %vm2839 = vcmp.eq.f32.partialorder %v2834, 0.0
    %v2840 = vand.u32 %v2834, 2147483648
    %v2841 = vsel %vm2839, %v2840, %v2838
    loop: start=0, step=1, limit=2
    $region58: #{tpu_custom_call.1} parent=1 // loop_pre_header
      _
    $region59: #{tpu_custom_call.1} parent=1 // loop_header
      %s2843 = sphi 0, %s2847
      %p2844 = scmp.ge.s32.totalorder %s2843, 2
      %v2848 = vphi -1.0, %v5989
      %v2849 = vphi 1.0, %v6373
    $region60: #{tpu_custom_call.1} parent=1 // loop_header_branch
      %2846 = sbr.rel (%p2844) target = $region64
    $region61: #{tpu_custom_call.1} parent=1 // loop_body
      %s2850 = smul.u32 %s2843, 128
      %s2851 = scalar_lea.vmem [#allocation2], %s2850
      %v2852 = vld [vmem:[%s2851] sm:$0xff]
      %v2853 = vld [vmem:[%s2851 + $0x8] sm:$0xff]
      %v2854 = vld [vmem:[%s2851 + $0x10] sm:$0xff]
      %v2855 = vld [vmem:[%s2851 + $0x18] sm:$0xff]
      %v2856 = vld [vmem:[%s2851 + $0x20] sm:$0xff]
      %v2857 = vld [vmem:[%s2851 + $0x28] sm:$0xff]
      %v2858 = vld [vmem:[%s2851 + $0x30] sm:$0xff]
      %v2859 = vld [vmem:[%s2851 + $0x38] sm:$0xff]
      %v2860 = vld [vmem:[%s2851 + $0x40] sm:$0xff]
      %v2861 = vld [vmem:[%s2851 + $0x48] sm:$0xff]
      %v2862 = vld [vmem:[%s2851 + $0x50] sm:$0xff]
      %v2863 = vld [vmem:[%s2851 + $0x58] sm:$0xff]
      %v2864 = vld [vmem:[%s2851 + $0x60] sm:$0xff]
      %v2865 = vld [vmem:[%s2851 + $0x68] sm:$0xff]
      %v2866 = vld [vmem:[%s2851 + $0x70] sm:$0xff]
      %v2867 = vld [vmem:[%s2851 + $0x78] sm:$0xff]
      %s2868 = scalar_lea.vmem %s7, %s2850
      %v2869 = vld [vmem:[%s2868] sm:$0xff]
      %v2870 = vld [vmem:[%s2868 + $0x8] sm:$0xff]
      %v2871 = vld [vmem:[%s2868 + $0x10] sm:$0xff]
      %v2872 = vld [vmem:[%s2868 + $0x18] sm:$0xff]
      %v2873 = vld [vmem:[%s2868 + $0x20] sm:$0xff]
      %v2874 = vld [vmem:[%s2868 + $0x28] sm:$0xff]
      %v2875 = vld [vmem:[%s2868 + $0x30] sm:$0xff]
      %v2876 = vld [vmem:[%s2868 + $0x38] sm:$0xff]
      %v2877 = vld [vmem:[%s2868 + $0x40] sm:$0xff]
      %v2878 = vld [vmem:[%s2868 + $0x48] sm:$0xff]
      %v2879 = vld [vmem:[%s2868 + $0x50] sm:$0xff]
      %v2880 = vld [vmem:[%s2868 + $0x58] sm:$0xff]
      %v2881 = vld [vmem:[%s2868 + $0x60] sm:$0xff]
      %v2882 = vld [vmem:[%s2868 + $0x68] sm:$0xff]
      %v2883 = vld [vmem:[%s2868 + $0x70] sm:$0xff]
      %v2884 = vld [vmem:[%s2868 + $0x78] sm:$0xff]
      %v2885 = vlaneseq
      %v2886 = vshrl.u32 %v2885, 7
      %v2887 = vsub.s32 0, %v2886
      %v2888 = vrot.slane %v2869, %v2887
      %2890 = vbcast.lane.b32.xlu0 %v2888, 256
      %v2891 = vpop.permute.xlu0 %2890
      %v2892 = vlaneseq
      %v2893 = vshrl.u32 %v2892, 7
      %v2894 = vsub.s32 1, %v2893
      %v2895 = vrot.slane %v2869, %v2894
      %2897 = vbcast.lane.b32.xlu0 %v2895, 256
      %v2898 = vpop.permute.xlu0 %2897
      %v2899 = vlaneseq
      %v2900 = vshrl.u32 %v2899, 7
      %v2901 = vsub.s32 2, %v2900
      %v2902 = vrot.slane %v2869, %v2901
      %2904 = vbcast.lane.b32.xlu0 %v2902, 256
      %v2905 = vpop.permute.xlu0 %2904
      %v2906 = vlaneseq
      %v2907 = vshrl.u32 %v2906, 7
      %v2908 = vsub.s32 3, %v2907
      %v2909 = vrot.slane %v2869, %v2908
      %2911 = vbcast.lane.b32.xlu0 %v2909, 256
      %v2912 = vpop.permute.xlu0 %2911
      %v2913 = vlaneseq
      %v2914 = vshrl.u32 %v2913, 7
      %v2915 = vsub.s32 4, %v2914
      %v2916 = vrot.slane %v2869, %v2915
      %2918 = vbcast.lane.b32.xlu0 %v2916, 256
      %v2919 = vpop.permute.xlu0 %2918
      %v2920 = vlaneseq
      %v2921 = vshrl.u32 %v2920, 7
      %v2922 = vsub.s32 5, %v2921
      %v2923 = vrot.slane %v2869, %v2922
      %2925 = vbcast.lane.b32.xlu0 %v2923, 256
      %v2926 = vpop.permute.xlu0 %2925
      %v2927 = vlaneseq
      %v2928 = vshrl.u32 %v2927, 7
      %v2929 = vsub.s32 6, %v2928
      %v2930 = vrot.slane %v2869, %v2929
      %2932 = vbcast.lane.b32.xlu0 %v2930, 256
      %v2933 = vpop.permute.xlu0 %2932
      %v2934 = vlaneseq
      %v2935 = vshrl.u32 %v2934, 7
      %v2936 = vsub.s32 7, %v2935
      %v2937 = vrot.slane %v2869, %v2936
      %2939 = vbcast.lane.b32.xlu0 %v2937, 256
      %v2940 = vpop.permute.xlu0 %2939
      %v2941 = vlaneseq
      %v2942 = vshrl.u32 %v2941, 7
      %v2943 = vsub.s32 0, %v2942
      %v2944 = vrot.slane %v2870, %v2943
      %2946 = vbcast.lane.b32.xlu0 %v2944, 256
      %v2947 = vpop.permute.xlu0 %2946
      %v2948 = vlaneseq
      %v2949 = vshrl.u32 %v2948, 7
      %v2950 = vsub.s32 1, %v2949
      %v2951 = vrot.slane %v2870, %v2950
      %2953 = vbcast.lane.b32.xlu0 %v2951, 256
      %v2954 = vpop.permute.xlu0 %2953
      %v2955 = vlaneseq
      %v2956 = vshrl.u32 %v2955, 7
      %v2957 = vsub.s32 2, %v2956
      %v2958 = vrot.slane %v2870, %v2957
      %2960 = vbcast.lane.b32.xlu0 %v2958, 256
      %v2961 = vpop.permute.xlu0 %2960
      %v2962 = vlaneseq
      %v2963 = vshrl.u32 %v2962, 7
      %v2964 = vsub.s32 3, %v2963
      %v2965 = vrot.slane %v2870, %v2964
      %2967 = vbcast.lane.b32.xlu0 %v2965, 256
      %v2968 = vpop.permute.xlu0 %2967
      %v2969 = vlaneseq
      %v2970 = vshrl.u32 %v2969, 7
      %v2971 = vsub.s32 4, %v2970
      %v2972 = vrot.slane %v2870, %v2971
      %2974 = vbcast.lane.b32.xlu0 %v2972, 256
      %v2975 = vpop.permute.xlu0 %2974
      %v2976 = vlaneseq
      %v2977 = vshrl.u32 %v2976, 7
      %v2978 = vsub.s32 5, %v2977
      %v2979 = vrot.slane %v2870, %v2978
      %2981 = vbcast.lane.b32.xlu0 %v2979, 256
      %v2982 = vpop.permute.xlu0 %2981
      %v2983 = vlaneseq
      %v2984 = vshrl.u32 %v2983, 7
      %v2985 = vsub.s32 6, %v2984
      %v2986 = vrot.slane %v2870, %v2985
      %2988 = vbcast.lane.b32.xlu0 %v2986, 256
      %v2989 = vpop.permute.xlu0 %2988
      %v2990 = vlaneseq
      %v2991 = vshrl.u32 %v2990, 7
      %v2992 = vsub.s32 7, %v2991
      %v2993 = vrot.slane %v2870, %v2992
      %2995 = vbcast.lane.b32.xlu0 %v2993, 256
      %v2996 = vpop.permute.xlu0 %2995
      %v2997 = vlaneseq
      %v2998 = vshrl.u32 %v2997, 7
      %v2999 = vsub.s32 0, %v2998
      %v3000 = vrot.slane %v2871, %v2999
      %3002 = vbcast.lane.b32.xlu0 %v3000, 256
      %v3003 = vpop.permute.xlu0 %3002
      %v3004 = vlaneseq
      %v3005 = vshrl.u32 %v3004, 7
      %v3006 = vsub.s32 1, %v3005
      %v3007 = vrot.slane %v2871, %v3006
      %3009 = vbcast.lane.b32.xlu0 %v3007, 256
      %v3010 = vpop.permute.xlu0 %3009
      %v3011 = vlaneseq
      %v3012 = vshrl.u32 %v3011, 7
      %v3013 = vsub.s32 2, %v3012
      %v3014 = vrot.slane %v2871, %v3013
      %3016 = vbcast.lane.b32.xlu0 %v3014, 256
      %v3017 = vpop.permute.xlu0 %3016
      %v3018 = vlaneseq
      %v3019 = vshrl.u32 %v3018, 7
      %v3020 = vsub.s32 3, %v3019
      %v3021 = vrot.slane %v2871, %v3020
      %3023 = vbcast.lane.b32.xlu0 %v3021, 256
      %v3024 = vpop.permute.xlu0 %3023
      %v3025 = vlaneseq
      %v3026 = vshrl.u32 %v3025, 7
      %v3027 = vsub.s32 4, %v3026
      %v3028 = vrot.slane %v2871, %v3027
      %3030 = vbcast.lane.b32.xlu0 %v3028, 256
      %v3031 = vpop.permute.xlu0 %3030
      %v3032 = vlaneseq
      %v3033 = vshrl.u32 %v3032, 7
      %v3034 = vsub.s32 5, %v3033
      %v3035 = vrot.slane %v2871, %v3034
      %3037 = vbcast.lane.b32.xlu0 %v3035, 256
      %v3038 = vpop.permute.xlu0 %3037
      %v3039 = vlaneseq
      %v3040 = vshrl.u32 %v3039, 7
      %v3041 = vsub.s32 6, %v3040
      %v3042 = vrot.slane %v2871, %v3041
      %3044 = vbcast.lane.b32.xlu0 %v3042, 256
      %v3045 = vpop.permute.xlu0 %3044
      %v3046 = vlaneseq
      %v3047 = vshrl.u32 %v3046, 7
      %v3048 = vsub.s32 7, %v3047
      %v3049 = vrot.slane %v2871, %v3048
      %3051 = vbcast.lane.b32.xlu0 %v3049, 256
      %v3052 = vpop.permute.xlu0 %3051
      %v3053 = vlaneseq
      %v3054 = vshrl.u32 %v3053, 7
      %v3055 = vsub.s32 0, %v3054
      %v3056 = vrot.slane %v2872, %v3055
      %3058 = vbcast.lane.b32.xlu0 %v3056, 256
      %v3059 = vpop.permute.xlu0 %3058
      %v3060 = vlaneseq
      %v3061 = vshrl.u32 %v3060, 7
      %v3062 = vsub.s32 1, %v3061
      %v3063 = vrot.slane %v2872, %v3062
      %3065 = vbcast.lane.b32.xlu0 %v3063, 256
      %v3066 = vpop.permute.xlu0 %3065
      %v3067 = vlaneseq
      %v3068 = vshrl.u32 %v3067, 7
      %v3069 = vsub.s32 2, %v3068
      %v3070 = vrot.slane %v2872, %v3069
      %3072 = vbcast.lane.b32.xlu0 %v3070, 256
      %v3073 = vpop.permute.xlu0 %3072
      %v3074 = vlaneseq
      %v3075 = vshrl.u32 %v3074, 7
      %v3076 = vsub.s32 3, %v3075
      %v3077 = vrot.slane %v2872, %v3076
      %3079 = vbcast.lane.b32.xlu0 %v3077, 256
      %v3080 = vpop.permute.xlu0 %3079
      %v3081 = vlaneseq
      %v3082 = vshrl.u32 %v3081, 7
      %v3083 = vsub.s32 4, %v3082
      %v3084 = vrot.slane %v2872, %v3083
      %3086 = vbcast.lane.b32.xlu0 %v3084, 256
      %v3087 = vpop.permute.xlu0 %3086
      %v3088 = vlaneseq
      %v3089 = vshrl.u32 %v3088, 7
      %v3090 = vsub.s32 5, %v3089
      %v3091 = vrot.slane %v2872, %v3090
      %3093 = vbcast.lane.b32.xlu0 %v3091, 256
      %v3094 = vpop.permute.xlu0 %3093
      %v3095 = vlaneseq
      %v3096 = vshrl.u32 %v3095, 7
      %v3097 = vsub.s32 6, %v3096
      %v3098 = vrot.slane %v2872, %v3097
      %3100 = vbcast.lane.b32.xlu0 %v3098, 256
      %v3101 = vpop.permute.xlu0 %3100
      %v3102 = vlaneseq
      %v3103 = vshrl.u32 %v3102, 7
      %v3104 = vsub.s32 7, %v3103
      %v3105 = vrot.slane %v2872, %v3104
      %3107 = vbcast.lane.b32.xlu0 %v3105, 256
      %v3108 = vpop.permute.xlu0 %3107
      %v3109 = vlaneseq
      %v3110 = vshrl.u32 %v3109, 7
      %v3111 = vsub.s32 0, %v3110
      %v3112 = vrot.slane %v2873, %v3111
      %3114 = vbcast.lane.b32.xlu0 %v3112, 256
      %v3115 = vpop.permute.xlu0 %3114
      %v3116 = vlaneseq
      %v3117 = vshrl.u32 %v3116, 7
      %v3118 = vsub.s32 1, %v3117
      %v3119 = vrot.slane %v2873, %v3118
      %3121 = vbcast.lane.b32.xlu0 %v3119, 256
      %v3122 = vpop.permute.xlu0 %3121
      %v3123 = vlaneseq
      %v3124 = vshrl.u32 %v3123, 7
      %v3125 = vsub.s32 2, %v3124
      %v3126 = vrot.slane %v2873, %v3125
      %3128 = vbcast.lane.b32.xlu0 %v3126, 256
      %v3129 = vpop.permute.xlu0 %3128
      %v3130 = vlaneseq
      %v3131 = vshrl.u32 %v3130, 7
      %v3132 = vsub.s32 3, %v3131
      %v3133 = vrot.slane %v2873, %v3132
      %3135 = vbcast.lane.b32.xlu0 %v3133, 256
      %v3136 = vpop.permute.xlu0 %3135
      %v3137 = vlaneseq
      %v3138 = vshrl.u32 %v3137, 7
      %v3139 = vsub.s32 4, %v3138
      %v3140 = vrot.slane %v2873, %v3139
      %3142 = vbcast.lane.b32.xlu0 %v3140, 256
      %v3143 = vpop.permute.xlu0 %3142
      %v3144 = vlaneseq
      %v3145 = vshrl.u32 %v3144, 7
      %v3146 = vsub.s32 5, %v3145
      %v3147 = vrot.slane %v2873, %v3146
      %3149 = vbcast.lane.b32.xlu0 %v3147, 256
      %v3150 = vpop.permute.xlu0 %3149
      %v3151 = vlaneseq
      %v3152 = vshrl.u32 %v3151, 7
      %v3153 = vsub.s32 6, %v3152
      %v3154 = vrot.slane %v2873, %v3153
      %3156 = vbcast.lane.b32.xlu0 %v3154, 256
      %v3157 = vpop.permute.xlu0 %3156
      %v3158 = vlaneseq
      %v3159 = vshrl.u32 %v3158, 7
      %v3160 = vsub.s32 7, %v3159
      %v3161 = vrot.slane %v2873, %v3160
      %3163 = vbcast.lane.b32.xlu0 %v3161, 256
      %v3164 = vpop.permute.xlu0 %3163
      %v3165 = vlaneseq
      %v3166 = vshrl.u32 %v3165, 7
      %v3167 = vsub.s32 0, %v3166
      %v3168 = vrot.slane %v2874, %v3167
      %3170 = vbcast.lane.b32.xlu0 %v3168, 256
      %v3171 = vpop.permute.xlu0 %3170
      %v3172 = vlaneseq
      %v3173 = vshrl.u32 %v3172, 7
      %v3174 = vsub.s32 1, %v3173
      %v3175 = vrot.slane %v2874, %v3174
      %3177 = vbcast.lane.b32.xlu0 %v3175, 256
      %v3178 = vpop.permute.xlu0 %3177
      %v3179 = vlaneseq
      %v3180 = vshrl.u32 %v3179, 7
      %v3181 = vsub.s32 2, %v3180
      %v3182 = vrot.slane %v2874, %v3181
      %3184 = vbcast.lane.b32.xlu0 %v3182, 256
      %v3185 = vpop.permute.xlu0 %3184
      %v3186 = vlaneseq
      %v3187 = vshrl.u32 %v3186, 7
      %v3188 = vsub.s32 3, %v3187
      %v3189 = vrot.slane %v2874, %v3188
      %3191 = vbcast.lane.b32.xlu0 %v3189, 256
      %v3192 = vpop.permute.xlu0 %3191
      %v3193 = vlaneseq
      %v3194 = vshrl.u32 %v3193, 7
      %v3195 = vsub.s32 4, %v3194
      %v3196 = vrot.slane %v2874, %v3195
      %3198 = vbcast.lane.b32.xlu0 %v3196, 256
      %v3199 = vpop.permute.xlu0 %3198
      %v3200 = vlaneseq
      %v3201 = vshrl.u32 %v3200, 7
      %v3202 = vsub.s32 5, %v3201
      %v3203 = vrot.slane %v2874, %v3202
      %3205 = vbcast.lane.b32.xlu0 %v3203, 256
      %v3206 = vpop.permute.xlu0 %3205
      %v3207 = vlaneseq
      %v3208 = vshrl.u32 %v3207, 7
      %v3209 = vsub.s32 6, %v3208
      %v3210 = vrot.slane %v2874, %v3209
      %3212 = vbcast.lane.b32.xlu0 %v3210, 256
      %v3213 = vpop.permute.xlu0 %3212
      %v3214 = vlaneseq
      %v3215 = vshrl.u32 %v3214, 7
      %v3216 = vsub.s32 7, %v3215
      %v3217 = vrot.slane %v2874, %v3216
      %3219 = vbcast.lane.b32.xlu0 %v3217, 256
      %v3220 = vpop.permute.xlu0 %3219
      %v3221 = vlaneseq
      %v3222 = vshrl.u32 %v3221, 7
      %v3223 = vsub.s32 0, %v3222
      %v3224 = vrot.slane %v2875, %v3223
      %3226 = vbcast.lane.b32.xlu0 %v3224, 256
      %v3227 = vpop.permute.xlu0 %3226
      %v3228 = vlaneseq
      %v3229 = vshrl.u32 %v3228, 7
      %v3230 = vsub.s32 1, %v3229
      %v3231 = vrot.slane %v2875, %v3230
      %3233 = vbcast.lane.b32.xlu0 %v3231, 256
      %v3234 = vpop.permute.xlu0 %3233
      %v3235 = vlaneseq
      %v3236 = vshrl.u32 %v3235, 7
      %v3237 = vsub.s32 2, %v3236
      %v3238 = vrot.slane %v2875, %v3237
      %3240 = vbcast.lane.b32.xlu0 %v3238, 256
      %v3241 = vpop.permute.xlu0 %3240
      %v3242 = vlaneseq
      %v3243 = vshrl.u32 %v3242, 7
      %v3244 = vsub.s32 3, %v3243
      %v3245 = vrot.slane %v2875, %v3244
      %3247 = vbcast.lane.b32.xlu0 %v3245, 256
      %v3248 = vpop.permute.xlu0 %3247
      %v3249 = vlaneseq
      %v3250 = vshrl.u32 %v3249, 7
      %v3251 = vsub.s32 4, %v3250
      %v3252 = vrot.slane %v2875, %v3251
      %3254 = vbcast.lane.b32.xlu0 %v3252, 256
      %v3255 = vpop.permute.xlu0 %3254
      %v3256 = vlaneseq
      %v3257 = vshrl.u32 %v3256, 7
      %v3258 = vsub.s32 5, %v3257
      %v3259 = vrot.slane %v2875, %v3258
      %3261 = vbcast.lane.b32.xlu0 %v3259, 256
      %v3262 = vpop.permute.xlu0 %3261
      %v3263 = vlaneseq
      %v3264 = vshrl.u32 %v3263, 7
      %v3265 = vsub.s32 6, %v3264
      %v3266 = vrot.slane %v2875, %v3265
      %3268 = vbcast.lane.b32.xlu0 %v3266, 256
      %v3269 = vpop.permute.xlu0 %3268
      %v3270 = vlaneseq
      %v3271 = vshrl.u32 %v3270, 7
      %v3272 = vsub.s32 7, %v3271
      %v3273 = vrot.slane %v2875, %v3272
      %3275 = vbcast.lane.b32.xlu0 %v3273, 256
      %v3276 = vpop.permute.xlu0 %3275
      %v3277 = vlaneseq
      %v3278 = vshrl.u32 %v3277, 7
      %v3279 = vsub.s32 0, %v3278
      %v3280 = vrot.slane %v2876, %v3279
      %3282 = vbcast.lane.b32.xlu0 %v3280, 256
      %v3283 = vpop.permute.xlu0 %3282
      %v3284 = vlaneseq
      %v3285 = vshrl.u32 %v3284, 7
      %v3286 = vsub.s32 1, %v3285
      %v3287 = vrot.slane %v2876, %v3286
      %3289 = vbcast.lane.b32.xlu0 %v3287, 256
      %v3290 = vpop.permute.xlu0 %3289
      %v3291 = vlaneseq
      %v3292 = vshrl.u32 %v3291, 7
      %v3293 = vsub.s32 2, %v3292
      %v3294 = vrot.slane %v2876, %v3293
      %3296 = vbcast.lane.b32.xlu0 %v3294, 256
      %v3297 = vpop.permute.xlu0 %3296
      %v3298 = vlaneseq
      %v3299 = vshrl.u32 %v3298, 7
      %v3300 = vsub.s32 3, %v3299
      %v3301 = vrot.slane %v2876, %v3300
      %3303 = vbcast.lane.b32.xlu0 %v3301, 256
      %v3304 = vpop.permute.xlu0 %3303
      %v3305 = vlaneseq
      %v3306 = vshrl.u32 %v3305, 7
      %v3307 = vsub.s32 4, %v3306
      %v3308 = vrot.slane %v2876, %v3307
      %3310 = vbcast.lane.b32.xlu0 %v3308, 256
      %v3311 = vpop.permute.xlu0 %3310
      %v3312 = vlaneseq
      %v3313 = vshrl.u32 %v3312, 7
      %v3314 = vsub.s32 5, %v3313
      %v3315 = vrot.slane %v2876, %v3314
      %3317 = vbcast.lane.b32.xlu0 %v3315, 256
      %v3318 = vpop.permute.xlu0 %3317
      %v3319 = vlaneseq
      %v3320 = vshrl.u32 %v3319, 7
      %v3321 = vsub.s32 6, %v3320
      %v3322 = vrot.slane %v2876, %v3321
      %3324 = vbcast.lane.b32.xlu0 %v3322, 256
      %v3325 = vpop.permute.xlu0 %3324
      %v3326 = vlaneseq
      %v3327 = vshrl.u32 %v3326, 7
      %v3328 = vsub.s32 7, %v3327
      %v3329 = vrot.slane %v2876, %v3328
      %3331 = vbcast.lane.b32.xlu0 %v3329, 256
      %v3332 = vpop.permute.xlu0 %3331
      %v3333 = vlaneseq
      %v3334 = vshrl.u32 %v3333, 7
      %v3335 = vsub.s32 0, %v3334
      %v3336 = vrot.slane %v2877, %v3335
      %3338 = vbcast.lane.b32.xlu0 %v3336, 256
      %v3339 = vpop.permute.xlu0 %3338
      %v3340 = vlaneseq
      %v3341 = vshrl.u32 %v3340, 7
      %v3342 = vsub.s32 1, %v3341
      %v3343 = vrot.slane %v2877, %v3342
      %3345 = vbcast.lane.b32.xlu0 %v3343, 256
      %v3346 = vpop.permute.xlu0 %3345
      %v3347 = vlaneseq
      %v3348 = vshrl.u32 %v3347, 7
      %v3349 = vsub.s32 2, %v3348
      %v3350 = vrot.slane %v2877, %v3349
      %3352 = vbcast.lane.b32.xlu0 %v3350, 256
      %v3353 = vpop.permute.xlu0 %3352
      %v3354 = vlaneseq
      %v3355 = vshrl.u32 %v3354, 7
      %v3356 = vsub.s32 3, %v3355
      %v3357 = vrot.slane %v2877, %v3356
      %3359 = vbcast.lane.b32.xlu0 %v3357, 256
      %v3360 = vpop.permute.xlu0 %3359
      %v3361 = vlaneseq
      %v3362 = vshrl.u32 %v3361, 7
      %v3363 = vsub.s32 4, %v3362
      %v3364 = vrot.slane %v2877, %v3363
      %3366 = vbcast.lane.b32.xlu0 %v3364, 256
      %v3367 = vpop.permute.xlu0 %3366
      %v3368 = vlaneseq
      %v3369 = vshrl.u32 %v3368, 7
      %v3370 = vsub.s32 5, %v3369
      %v3371 = vrot.slane %v2877, %v3370
      %3373 = vbcast.lane.b32.xlu0 %v3371, 256
      %v3374 = vpop.permute.xlu0 %3373
      %v3375 = vlaneseq
      %v3376 = vshrl.u32 %v3375, 7
      %v3377 = vsub.s32 6, %v3376
      %v3378 = vrot.slane %v2877, %v3377
      %3380 = vbcast.lane.b32.xlu0 %v3378, 256
      %v3381 = vpop.permute.xlu0 %3380
      %v3382 = vlaneseq
      %v3383 = vshrl.u32 %v3382, 7
      %v3384 = vsub.s32 7, %v3383
      %v3385 = vrot.slane %v2877, %v3384
      %3387 = vbcast.lane.b32.xlu0 %v3385, 256
      %v3388 = vpop.permute.xlu0 %3387
      %v3389 = vlaneseq
      %v3390 = vshrl.u32 %v3389, 7
      %v3391 = vsub.s32 0, %v3390
      %v3392 = vrot.slane %v2878, %v3391
      %3394 = vbcast.lane.b32.xlu0 %v3392, 256
      %v3395 = vpop.permute.xlu0 %3394
      %v3396 = vlaneseq
      %v3397 = vshrl.u32 %v3396, 7
      %v3398 = vsub.s32 1, %v3397
      %v3399 = vrot.slane %v2878, %v3398
      %3401 = vbcast.lane.b32.xlu0 %v3399, 256
      %v3402 = vpop.permute.xlu0 %3401
      %v3403 = vlaneseq
      %v3404 = vshrl.u32 %v3403, 7
      %v3405 = vsub.s32 2, %v3404
      %v3406 = vrot.slane %v2878, %v3405
      %3408 = vbcast.lane.b32.xlu0 %v3406, 256
      %v3409 = vpop.permute.xlu0 %3408
      %v3410 = vlaneseq
      %v3411 = vshrl.u32 %v3410, 7
      %v3412 = vsub.s32 3, %v3411
      %v3413 = vrot.slane %v2878, %v3412
      %3415 = vbcast.lane.b32.xlu0 %v3413, 256
      %v3416 = vpop.permute.xlu0 %3415
      %v3417 = vlaneseq
      %v3418 = vshrl.u32 %v3417, 7
      %v3419 = vsub.s32 4, %v3418
      %v3420 = vrot.slane %v2878, %v3419
      %3422 = vbcast.lane.b32.xlu0 %v3420, 256
      %v3423 = vpop.permute.xlu0 %3422
      %v3424 = vlaneseq
      %v3425 = vshrl.u32 %v3424, 7
      %v3426 = vsub.s32 5, %v3425
      %v3427 = vrot.slane %v2878, %v3426
      %3429 = vbcast.lane.b32.xlu0 %v3427, 256
      %v3430 = vpop.permute.xlu0 %3429
      %v3431 = vlaneseq
      %v3432 = vshrl.u32 %v3431, 7
      %v3433 = vsub.s32 6, %v3432
      %v3434 = vrot.slane %v2878, %v3433
      %3436 = vbcast.lane.b32.xlu0 %v3434, 256
      %v3437 = vpop.permute.xlu0 %3436
      %v3438 = vlaneseq
      %v3439 = vshrl.u32 %v3438, 7
      %v3440 = vsub.s32 7, %v3439
      %v3441 = vrot.slane %v2878, %v3440
      %3443 = vbcast.lane.b32.xlu0 %v3441, 256
      %v3444 = vpop.permute.xlu0 %3443
      %v3445 = vlaneseq
      %v3446 = vshrl.u32 %v3445, 7
      %v3447 = vsub.s32 0, %v3446
      %v3448 = vrot.slane %v2879, %v3447
      %3450 = vbcast.lane.b32.xlu0 %v3448, 256
      %v3451 = vpop.permute.xlu0 %3450
      %v3452 = vlaneseq
      %v3453 = vshrl.u32 %v3452, 7
      %v3454 = vsub.s32 1, %v3453
      %v3455 = vrot.slane %v2879, %v3454
      %3457 = vbcast.lane.b32.xlu0 %v3455, 256
      %v3458 = vpop.permute.xlu0 %3457
      %v3459 = vlaneseq
      %v3460 = vshrl.u32 %v3459, 7
      %v3461 = vsub.s32 2, %v3460
      %v3462 = vrot.slane %v2879, %v3461
      %3464 = vbcast.lane.b32.xlu0 %v3462, 256
      %v3465 = vpop.permute.xlu0 %3464
      %v3466 = vlaneseq
      %v3467 = vshrl.u32 %v3466, 7
      %v3468 = vsub.s32 3, %v3467
      %v3469 = vrot.slane %v2879, %v3468
      %3471 = vbcast.lane.b32.xlu0 %v3469, 256
      %v3472 = vpop.permute.xlu0 %3471
      %v3473 = vlaneseq
      %v3474 = vshrl.u32 %v3473, 7
      %v3475 = vsub.s32 4, %v3474
      %v3476 = vrot.slane %v2879, %v3475
      %3478 = vbcast.lane.b32.xlu0 %v3476, 256
      %v3479 = vpop.permute.xlu0 %3478
      %v3480 = vlaneseq
      %v3481 = vshrl.u32 %v3480, 7
      %v3482 = vsub.s32 5, %v3481
      %v3483 = vrot.slane %v2879, %v3482
      %3485 = vbcast.lane.b32.xlu0 %v3483, 256
      %v3486 = vpop.permute.xlu0 %3485
      %v3487 = vlaneseq
      %v3488 = vshrl.u32 %v3487, 7
      %v3489 = vsub.s32 6, %v3488
      %v3490 = vrot.slane %v2879, %v3489
      %3492 = vbcast.lane.b32.xlu0 %v3490, 256
      %v3493 = vpop.permute.xlu0 %3492
      %v3494 = vlaneseq
      %v3495 = vshrl.u32 %v3494, 7
      %v3496 = vsub.s32 7, %v3495
      %v3497 = vrot.slane %v2879, %v3496
      %3499 = vbcast.lane.b32.xlu0 %v3497, 256
      %v3500 = vpop.permute.xlu0 %3499
      %v3501 = vlaneseq
      %v3502 = vshrl.u32 %v3501, 7
      %v3503 = vsub.s32 0, %v3502
      %v3504 = vrot.slane %v2880, %v3503
      %3506 = vbcast.lane.b32.xlu0 %v3504, 256
      %v3507 = vpop.permute.xlu0 %3506
      %v3508 = vlaneseq
      %v3509 = vshrl.u32 %v3508, 7
      %v3510 = vsub.s32 1, %v3509
      %v3511 = vrot.slane %v2880, %v3510
      %3513 = vbcast.lane.b32.xlu0 %v3511, 256
      %v3514 = vpop.permute.xlu0 %3513
      %v3515 = vlaneseq
      %v3516 = vshrl.u32 %v3515, 7
      %v3517 = vsub.s32 2, %v3516
      %v3518 = vrot.slane %v2880, %v3517
      %3520 = vbcast.lane.b32.xlu0 %v3518, 256
      %v3521 = vpop.permute.xlu0 %3520
      %v3522 = vlaneseq
      %v3523 = vshrl.u32 %v3522, 7
      %v3524 = vsub.s32 3, %v3523
      %v3525 = vrot.slane %v2880, %v3524
      %3527 = vbcast.lane.b32.xlu0 %v3525, 256
      %v3528 = vpop.permute.xlu0 %3527
      %v3529 = vlaneseq
      %v3530 = vshrl.u32 %v3529, 7
      %v3531 = vsub.s32 4, %v3530
      %v3532 = vrot.slane %v2880, %v3531
      %3534 = vbcast.lane.b32.xlu0 %v3532, 256
      %v3535 = vpop.permute.xlu0 %3534
      %v3536 = vlaneseq
      %v3537 = vshrl.u32 %v3536, 7
      %v3538 = vsub.s32 5, %v3537
      %v3539 = vrot.slane %v2880, %v3538
      %3541 = vbcast.lane.b32.xlu0 %v3539, 256
      %v3542 = vpop.permute.xlu0 %3541
      %v3543 = vlaneseq
      %v3544 = vshrl.u32 %v3543, 7
      %v3545 = vsub.s32 6, %v3544
      %v3546 = vrot.slane %v2880, %v3545
      %3548 = vbcast.lane.b32.xlu0 %v3546, 256
      %v3549 = vpop.permute.xlu0 %3548
      %v3550 = vlaneseq
      %v3551 = vshrl.u32 %v3550, 7
      %v3552 = vsub.s32 7, %v3551
      %v3553 = vrot.slane %v2880, %v3552
      %3555 = vbcast.lane.b32.xlu0 %v3553, 256
      %v3556 = vpop.permute.xlu0 %3555
      %v3557 = vlaneseq
      %v3558 = vshrl.u32 %v3557, 7
      %v3559 = vsub.s32 0, %v3558
      %v3560 = vrot.slane %v2881, %v3559
      %3562 = vbcast.lane.b32.xlu0 %v3560, 256
      %v3563 = vpop.permute.xlu0 %3562
      %v3564 = vlaneseq
      %v3565 = vshrl.u32 %v3564, 7
      %v3566 = vsub.s32 1, %v3565
      %v3567 = vrot.slane %v2881, %v3566
      %3569 = vbcast.lane.b32.xlu0 %v3567, 256
      %v3570 = vpop.permute.xlu0 %3569
      %v3571 = vlaneseq
      %v3572 = vshrl.u32 %v3571, 7
      %v3573 = vsub.s32 2, %v3572
      %v3574 = vrot.slane %v2881, %v3573
      %3576 = vbcast.lane.b32.xlu0 %v3574, 256
      %v3577 = vpop.permute.xlu0 %3576
      %v3578 = vlaneseq
      %v3579 = vshrl.u32 %v3578, 7
      %v3580 = vsub.s32 3, %v3579
      %v3581 = vrot.slane %v2881, %v3580
      %3583 = vbcast.lane.b32.xlu0 %v3581, 256
      %v3584 = vpop.permute.xlu0 %3583
      %v3585 = vlaneseq
      %v3586 = vshrl.u32 %v3585, 7
      %v3587 = vsub.s32 4, %v3586
      %v3588 = vrot.slane %v2881, %v3587
      %3590 = vbcast.lane.b32.xlu0 %v3588, 256
      %v3591 = vpop.permute.xlu0 %3590
      %v3592 = vlaneseq
      %v3593 = vshrl.u32 %v3592, 7
      %v3594 = vsub.s32 5, %v3593
      %v3595 = vrot.slane %v2881, %v3594
      %3597 = vbcast.lane.b32.xlu0 %v3595, 256
      %v3598 = vpop.permute.xlu0 %3597
      %v3599 = vlaneseq
      %v3600 = vshrl.u32 %v3599, 7
      %v3601 = vsub.s32 6, %v3600
      %v3602 = vrot.slane %v2881, %v3601
      %3604 = vbcast.lane.b32.xlu0 %v3602, 256
      %v3605 = vpop.permute.xlu0 %3604
      %v3606 = vlaneseq
      %v3607 = vshrl.u32 %v3606, 7
      %v3608 = vsub.s32 7, %v3607
      %v3609 = vrot.slane %v2881, %v3608
      %3611 = vbcast.lane.b32.xlu0 %v3609, 256
      %v3612 = vpop.permute.xlu0 %3611
      %v3613 = vlaneseq
      %v3614 = vshrl.u32 %v3613, 7
      %v3615 = vsub.s32 0, %v3614
      %v3616 = vrot.slane %v2882, %v3615
      %3618 = vbcast.lane.b32.xlu0 %v3616, 256
      %v3619 = vpop.permute.xlu0 %3618
      %v3620 = vlaneseq
      %v3621 = vshrl.u32 %v3620, 7
      %v3622 = vsub.s32 1, %v3621
      %v3623 = vrot.slane %v2882, %v3622
      %3625 = vbcast.lane.b32.xlu0 %v3623, 256
      %v3626 = vpop.permute.xlu0 %3625
      %v3627 = vlaneseq
      %v3628 = vshrl.u32 %v3627, 7
      %v3629 = vsub.s32 2, %v3628
      %v3630 = vrot.slane %v2882, %v3629
      %3632 = vbcast.lane.b32.xlu0 %v3630, 256
      %v3633 = vpop.permute.xlu0 %3632
      %v3634 = vlaneseq
      %v3635 = vshrl.u32 %v3634, 7
      %v3636 = vsub.s32 3, %v3635
      %v3637 = vrot.slane %v2882, %v3636
      %3639 = vbcast.lane.b32.xlu0 %v3637, 256
      %v3640 = vpop.permute.xlu0 %3639
      %v3641 = vlaneseq
      %v3642 = vshrl.u32 %v3641, 7
      %v3643 = vsub.s32 4, %v3642
      %v3644 = vrot.slane %v2882, %v3643
      %3646 = vbcast.lane.b32.xlu0 %v3644, 256
      %v3647 = vpop.permute.xlu0 %3646
      %v3648 = vlaneseq
      %v3649 = vshrl.u32 %v3648, 7
      %v3650 = vsub.s32 5, %v3649
      %v3651 = vrot.slane %v2882, %v3650
      %3653 = vbcast.lane.b32.xlu0 %v3651, 256
      %v3654 = vpop.permute.xlu0 %3653
      %v3655 = vlaneseq
      %v3656 = vshrl.u32 %v3655, 7
      %v3657 = vsub.s32 6, %v3656
      %v3658 = vrot.slane %v2882, %v3657
      %3660 = vbcast.lane.b32.xlu0 %v3658, 256
      %v3661 = vpop.permute.xlu0 %3660
      %v3662 = vlaneseq
      %v3663 = vshrl.u32 %v3662, 7
      %v3664 = vsub.s32 7, %v3663
      %v3665 = vrot.slane %v2882, %v3664
      %3667 = vbcast.lane.b32.xlu0 %v3665, 256
      %v3668 = vpop.permute.xlu0 %3667
      %v3669 = vlaneseq
      %v3670 = vshrl.u32 %v3669, 7
      %v3671 = vsub.s32 0, %v3670
      %v3672 = vrot.slane %v2883, %v3671
      %3674 = vbcast.lane.b32.xlu0 %v3672, 256
      %v3675 = vpop.permute.xlu0 %3674
      %v3676 = vlaneseq
      %v3677 = vshrl.u32 %v3676, 7
      %v3678 = vsub.s32 1, %v3677
      %v3679 = vrot.slane %v2883, %v3678
      %3681 = vbcast.lane.b32.xlu0 %v3679, 256
      %v3682 = vpop.permute.xlu0 %3681
      %v3683 = vlaneseq
      %v3684 = vshrl.u32 %v3683, 7
      %v3685 = vsub.s32 2, %v3684
      %v3686 = vrot.slane %v2883, %v3685
      %3688 = vbcast.lane.b32.xlu0 %v3686, 256
      %v3689 = vpop.permute.xlu0 %3688
      %v3690 = vlaneseq
      %v3691 = vshrl.u32 %v3690, 7
      %v3692 = vsub.s32 3, %v3691
      %v3693 = vrot.slane %v2883, %v3692
      %3695 = vbcast.lane.b32.xlu0 %v3693, 256
      %v3696 = vpop.permute.xlu0 %3695
      %v3697 = vlaneseq
      %v3698 = vshrl.u32 %v3697, 7
      %v3699 = vsub.s32 4, %v3698
      %v3700 = vrot.slane %v2883, %v3699
      %3702 = vbcast.lane.b32.xlu0 %v3700, 256
      %v3703 = vpop.permute.xlu0 %3702
      %v3704 = vlaneseq
      %v3705 = vshrl.u32 %v3704, 7
      %v3706 = vsub.s32 5, %v3705
      %v3707 = vrot.slane %v2883, %v3706
      %3709 = vbcast.lane.b32.xlu0 %v3707, 256
      %v3710 = vpop.permute.xlu0 %3709
      %v3711 = vlaneseq
      %v3712 = vshrl.u32 %v3711, 7
      %v3713 = vsub.s32 6, %v3712
      %v3714 = vrot.slane %v2883, %v3713
      %3716 = vbcast.lane.b32.xlu0 %v3714, 256
      %v3717 = vpop.permute.xlu0 %3716
      %v3718 = vlaneseq
      %v3719 = vshrl.u32 %v3718, 7
      %v3720 = vsub.s32 7, %v3719
      %v3721 = vrot.slane %v2883, %v3720
      %3723 = vbcast.lane.b32.xlu0 %v3721, 256
      %v3724 = vpop.permute.xlu0 %3723
      %v3725 = vlaneseq
      %v3726 = vshrl.u32 %v3725, 7
      %v3727 = vsub.s32 0, %v3726
      %v3728 = vrot.slane %v2884, %v3727
      %3730 = vbcast.lane.b32.xlu0 %v3728, 256
      %v3731 = vpop.permute.xlu0 %3730
      %v3732 = vlaneseq
      %v3733 = vshrl.u32 %v3732, 7
      %v3734 = vsub.s32 1, %v3733
      %v3735 = vrot.slane %v2884, %v3734
      %3737 = vbcast.lane.b32.xlu0 %v3735, 256
      %v3738 = vpop.permute.xlu0 %3737
      %v3739 = vlaneseq
      %v3740 = vshrl.u32 %v3739, 7
      %v3741 = vsub.s32 2, %v3740
      %v3742 = vrot.slane %v2884, %v3741
      %3744 = vbcast.lane.b32.xlu0 %v3742, 256
      %v3745 = vpop.permute.xlu0 %3744
      %v3746 = vlaneseq
      %v3747 = vshrl.u32 %v3746, 7
      %v3748 = vsub.s32 3, %v3747
      %v3749 = vrot.slane %v2884, %v3748
      %3751 = vbcast.lane.b32.xlu0 %v3749, 256
      %v3752 = vpop.permute.xlu0 %3751
      %v3753 = vlaneseq
      %v3754 = vshrl.u32 %v3753, 7
      %v3755 = vsub.s32 4, %v3754
      %v3756 = vrot.slane %v2884, %v3755
      %3758 = vbcast.lane.b32.xlu0 %v3756, 256
      %v3759 = vpop.permute.xlu0 %3758
      %v3760 = vlaneseq
      %v3761 = vshrl.u32 %v3760, 7
      %v3762 = vsub.s32 5, %v3761
      %v3763 = vrot.slane %v2884, %v3762
      %3765 = vbcast.lane.b32.xlu0 %v3763, 256
      %v3766 = vpop.permute.xlu0 %3765
      %v3767 = vlaneseq
      %v3768 = vshrl.u32 %v3767, 7
      %v3769 = vsub.s32 6, %v3768
      %v3770 = vrot.slane %v2884, %v3769
      %3772 = vbcast.lane.b32.xlu0 %v3770, 256
      %v3773 = vpop.permute.xlu0 %3772
      %v3774 = vlaneseq
      %v3775 = vshrl.u32 %v3774, 7
      %v3776 = vsub.s32 7, %v3775
      %v3777 = vrot.slane %v2884, %v3776
      %3779 = vbcast.lane.b32.xlu0 %v3777, 256
      %v3780 = vpop.permute.xlu0 %3779
      %vm3781 = vcmp.gt.f32.partialorder %v2891, 0.0
      %vm3782 = vcmp.gt.f32.partialorder %v2898, 0.0
      %vm3783 = vcmp.gt.f32.partialorder %v2905, 0.0
      %vm3784 = vcmp.gt.f32.partialorder %v2912, 0.0
      %vm3785 = vcmp.gt.f32.partialorder %v2919, 0.0
      %vm3786 = vcmp.gt.f32.partialorder %v2926, 0.0
      %vm3787 = vcmp.gt.f32.partialorder %v2933, 0.0
      %vm3788 = vcmp.gt.f32.partialorder %v2940, 0.0
      %vm3789 = vcmp.gt.f32.partialorder %v2947, 0.0
      %vm3790 = vcmp.gt.f32.partialorder %v2954, 0.0
      %vm3791 = vcmp.gt.f32.partialorder %v2961, 0.0
      %vm3792 = vcmp.gt.f32.partialorder %v2968, 0.0
      %vm3793 = vcmp.gt.f32.partialorder %v2975, 0.0
      %vm3794 = vcmp.gt.f32.partialorder %v2982, 0.0
      %vm3795 = vcmp.gt.f32.partialorder %v2989, 0.0
      %vm3796 = vcmp.gt.f32.partialorder %v2996, 0.0
      %vm3797 = vcmp.gt.f32.partialorder %v3003, 0.0
      %vm3798 = vcmp.gt.f32.partialorder %v3010, 0.0
      %vm3799 = vcmp.gt.f32.partialorder %v3017, 0.0
      %vm3800 = vcmp.gt.f32.partialorder %v3024, 0.0
      %vm3801 = vcmp.gt.f32.partialorder %v3031, 0.0
      %vm3802 = vcmp.gt.f32.partialorder %v3038, 0.0
      %vm3803 = vcmp.gt.f32.partialorder %v3045, 0.0
      %vm3804 = vcmp.gt.f32.partialorder %v3052, 0.0
      %vm3805 = vcmp.gt.f32.partialorder %v3059, 0.0
      %vm3806 = vcmp.gt.f32.partialorder %v3066, 0.0
      %vm3807 = vcmp.gt.f32.partialorder %v3073, 0.0
      %vm3808 = vcmp.gt.f32.partialorder %v3080, 0.0
      %vm3809 = vcmp.gt.f32.partialorder %v3087, 0.0
      %vm3810 = vcmp.gt.f32.partialorder %v3094, 0.0
      %vm3811 = vcmp.gt.f32.partialorder %v3101, 0.0
      %vm3812 = vcmp.gt.f32.partialorder %v3108, 0.0
      %vm3813 = vcmp.gt.f32.partialorder %v3115, 0.0
      %vm3814 = vcmp.gt.f32.partialorder %v3122, 0.0
      %vm3815 = vcmp.gt.f32.partialorder %v3129, 0.0
      %vm3816 = vcmp.gt.f32.partialorder %v3136, 0.0
      %vm3817 = vcmp.gt.f32.partialorder %v3143, 0.0
      %vm3818 = vcmp.gt.f32.partialorder %v3150, 0.0
      %vm3819 = vcmp.gt.f32.partialorder %v3157, 0.0
      %vm3820 = vcmp.gt.f32.partialorder %v3164, 0.0
      %vm3821 = vcmp.gt.f32.partialorder %v3171, 0.0
      %vm3822 = vcmp.gt.f32.partialorder %v3178, 0.0
      %vm3823 = vcmp.gt.f32.partialorder %v3185, 0.0
      %vm3824 = vcmp.gt.f32.partialorder %v3192, 0.0
      %vm3825 = vcmp.gt.f32.partialorder %v3199, 0.0
      %vm3826 = vcmp.gt.f32.partialorder %v3206, 0.0
      %vm3827 = vcmp.gt.f32.partialorder %v3213, 0.0
      %vm3828 = vcmp.gt.f32.partialorder %v3220, 0.0
      %vm3829 = vcmp.gt.f32.partialorder %v3227, 0.0
      %vm3830 = vcmp.gt.f32.partialorder %v3234, 0.0
      %vm3831 = vcmp.gt.f32.partialorder %v3241, 0.0
      %vm3832 = vcmp.gt.f32.partialorder %v3248, 0.0
      %vm3833 = vcmp.gt.f32.partialorder %v3255, 0.0
      %vm3834 = vcmp.gt.f32.partialorder %v3262, 0.0
      %vm3835 = vcmp.gt.f32.partialorder %v3269, 0.0
      %vm3836 = vcmp.gt.f32.partialorder %v3276, 0.0
      %vm3837 = vcmp.gt.f32.partialorder %v3283, 0.0
      %vm3838 = vcmp.gt.f32.partialorder %v3290, 0.0
      %vm3839 = vcmp.gt.f32.partialorder %v3297, 0.0
      %vm3840 = vcmp.gt.f32.partialorder %v3304, 0.0
      %vm3841 = vcmp.gt.f32.partialorder %v3311, 0.0
      %vm3842 = vcmp.gt.f32.partialorder %v3318, 0.0
      %vm3843 = vcmp.gt.f32.partialorder %v3325, 0.0
      %vm3844 = vcmp.gt.f32.partialorder %v3332, 0.0
      %vm3845 = vcmp.gt.f32.partialorder %v3339, 0.0
      %vm3846 = vcmp.gt.f32.partialorder %v3346, 0.0
      %vm3847 = vcmp.gt.f32.partialorder %v3353, 0.0
      %vm3848 = vcmp.gt.f32.partialorder %v3360, 0.0
      %vm3849 = vcmp.gt.f32.partialorder %v3367, 0.0
      %vm3850 = vcmp.gt.f32.partialorder %v3374, 0.0
      %vm3851 = vcmp.gt.f32.partialorder %v3381, 0.0
      %vm3852 = vcmp.gt.f32.partialorder %v3388, 0.0
      %vm3853 = vcmp.gt.f32.partialorder %v3395, 0.0
      %vm3854 = vcmp.gt.f32.partialorder %v3402, 0.0
      %vm3855 = vcmp.gt.f32.partialorder %v3409, 0.0
      %vm3856 = vcmp.gt.f32.partialorder %v3416, 0.0
      %vm3857 = vcmp.gt.f32.partialorder %v3423, 0.0
      %vm3858 = vcmp.gt.f32.partialorder %v3430, 0.0
      %vm3859 = vcmp.gt.f32.partialorder %v3437, 0.0
      %vm3860 = vcmp.gt.f32.partialorder %v3444, 0.0
      %vm3861 = vcmp.gt.f32.partialorder %v3451, 0.0
      %vm3862 = vcmp.gt.f32.partialorder %v3458, 0.0
      %vm3863 = vcmp.gt.f32.partialorder %v3465, 0.0
      %vm3864 = vcmp.gt.f32.partialorder %v3472, 0.0
      %vm3865 = vcmp.gt.f32.partialorder %v3479, 0.0
      %vm3866 = vcmp.gt.f32.partialorder %v3486, 0.0
      %vm3867 = vcmp.gt.f32.partialorder %v3493, 0.0
      %vm3868 = vcmp.gt.f32.partialorder %v3500, 0.0
      %vm3869 = vcmp.gt.f32.partialorder %v3507, 0.0
      %vm3870 = vcmp.gt.f32.partialorder %v3514, 0.0
      %vm3871 = vcmp.gt.f32.partialorder %v3521, 0.0
      %vm3872 = vcmp.gt.f32.partialorder %v3528, 0.0
      %vm3873 = vcmp.gt.f32.partialorder %v3535, 0.0
      %vm3874 = vcmp.gt.f32.partialorder %v3542, 0.0
      %vm3875 = vcmp.gt.f32.partialorder %v3549, 0.0
      %vm3876 = vcmp.gt.f32.partialorder %v3556, 0.0
      %vm3877 = vcmp.gt.f32.partialorder %v3563, 0.0
      %vm3878 = vcmp.gt.f32.partialorder %v3570, 0.0
      %vm3879 = vcmp.gt.f32.partialorder %v3577, 0.0
      %vm3880 = vcmp.gt.f32.partialorder %v3584, 0.0
      %vm3881 = vcmp.gt.f32.partialorder %v3591, 0.0
      %vm3882 = vcmp.gt.f32.partialorder %v3598, 0.0
      %vm3883 = vcmp.gt.f32.partialorder %v3605, 0.0
      %vm3884 = vcmp.gt.f32.partialorder %v3612, 0.0
      %vm3885 = vcmp.gt.f32.partialorder %v3619, 0.0
      %vm3886 = vcmp.gt.f32.partialorder %v3626, 0.0
      %vm3887 = vcmp.gt.f32.partialorder %v3633, 0.0
      %vm3888 = vcmp.gt.f32.partialorder %v3640, 0.0
      %vm3889 = vcmp.gt.f32.partialorder %v3647, 0.0
      %vm3890 = vcmp.gt.f32.partialorder %v3654, 0.0
      %vm3891 = vcmp.gt.f32.partialorder %v3661, 0.0
      %vm3892 = vcmp.gt.f32.partialorder %v3668, 0.0
      %vm3893 = vcmp.gt.f32.partialorder %v3675, 0.0
      %vm3894 = vcmp.gt.f32.partialorder %v3682, 0.0
      %vm3895 = vcmp.gt.f32.partialorder %v3689, 0.0
      %vm3896 = vcmp.gt.f32.partialorder %v3696, 0.0
      %vm3897 = vcmp.gt.f32.partialorder %v3703, 0.0
      %vm3898 = vcmp.gt.f32.partialorder %v3710, 0.0
      %vm3899 = vcmp.gt.f32.partialorder %v3717, 0.0
      %vm3900 = vcmp.gt.f32.partialorder %v3724, 0.0
      %vm3901 = vcmp.gt.f32.partialorder %v3731, 0.0
      %vm3902 = vcmp.gt.f32.partialorder %v3738, 0.0
      %vm3903 = vcmp.gt.f32.partialorder %v3745, 0.0
      %vm3904 = vcmp.gt.f32.partialorder %v3752, 0.0
      %vm3905 = vcmp.gt.f32.partialorder %v3759, 0.0
      %vm3906 = vcmp.gt.f32.partialorder %v3766, 0.0
      %vm3907 = vcmp.gt.f32.partialorder %v3773, 0.0
      %vm3908 = vcmp.gt.f32.partialorder %v3780, 0.0
      %v3925 = vcombine.high %v2852, %v2852
      %v3927 = vunpack.c.l.s4 1966171168
      %v3928 = vunpack.c.0.s8 %v3927
      %v3929 = vlaneseq
      %v3930 = vshrl.u32 %v3929, 7
      %v3931 = vsub.s32 %v3928, %v3930
      %v3932 = vrot.slane %v2852, %v3931
      %v3934 = vunpack.c.l.s4 1966171168
      %v3935 = vunpack.c.0.s8 %v3934
      %v3936 = vlaneseq
      %v3937 = vshrl.u32 %v3936, 7
      %v3938 = vsub.s32 %v3935, %v3937
      %v3939 = vrot.slane %v3925, %v3938
      %v3940 = vcombine.high %v3932, %v3932
      %v3941 = vcombine.high %v3939, %v3939
      %v3943 = vunpack.c.l.s4 1966171168
      %v3944 = vunpack.c.0.s8 %v3943
      %v3945 = vlaneseq
      %v3946 = vshrl.u32 %v3945, 7
      %v3947 = vsub.s32 %v3944, %v3946
      %v3948 = vrot.slane %v3932, %v3947
      %v3950 = vunpack.c.l.s4 1966171168
      %v3951 = vunpack.c.0.s8 %v3950
      %v3952 = vlaneseq
      %v3953 = vshrl.u32 %v3952, 7
      %v3954 = vsub.s32 %v3951, %v3953
      %v3955 = vrot.slane %v3939, %v3954
      %v3957 = vunpack.c.l.s4 1966171168
      %v3958 = vunpack.c.0.s8 %v3957
      %v3959 = vlaneseq
      %v3960 = vshrl.u32 %v3959, 7
      %v3961 = vsub.s32 %v3958, %v3960
      %v3962 = vrot.slane %v3940, %v3961
      %v3964 = vunpack.c.l.s4 1966171168
      %v3965 = vunpack.c.0.s8 %v3964
      %v3966 = vlaneseq
      %v3967 = vshrl.u32 %v3966, 7
      %v3968 = vsub.s32 %v3965, %v3967
      %v3969 = vrot.slane %v3941, %v3968
      %v3970 = vcombine.high %v3948, %v3948
      %v3971 = vcombine.high %v3955, %v3955
      %v3972 = vcombine.high %v3962, %v3962
      %v3973 = vcombine.high %v3969, %v3969
      %v3974 = vcombine.high %v2853, %v2853
      %v3976 = vunpack.c.l.s4 1966171168
      %v3977 = vunpack.c.0.s8 %v3976
      %v3978 = vlaneseq
      %v3979 = vshrl.u32 %v3978, 7
      %v3980 = vsub.s32 %v3977, %v3979
      %v3981 = vrot.slane %v2853, %v3980
      %v3983 = vunpack.c.l.s4 1966171168
      %v3984 = vunpack.c.0.s8 %v3983
      %v3985 = vlaneseq
      %v3986 = vshrl.u32 %v3985, 7
      %v3987 = vsub.s32 %v3984, %v3986
      %v3988 = vrot.slane %v3974, %v3987
      %v3989 = vcombine.high %v3981, %v3981
      %v3990 = vcombine.high %v3988, %v3988
      %v3992 = vunpack.c.l.s4 1966171168
      %v3993 = vunpack.c.0.s8 %v3992
      %v3994 = vlaneseq
      %v3995 = vshrl.u32 %v3994, 7
      %v3996 = vsub.s32 %v3993, %v3995
      %v3997 = vrot.slane %v3981, %v3996
      %v3999 = vunpack.c.l.s4 1966171168
      %v4000 = vunpack.c.0.s8 %v3999
      %v4001 = vlaneseq
      %v4002 = vshrl.u32 %v4001, 7
      %v4003 = vsub.s32 %v4000, %v4002
      %v4004 = vrot.slane %v3988, %v4003
      %v4006 = vunpack.c.l.s4 1966171168
      %v4007 = vunpack.c.0.s8 %v4006
      %v4008 = vlaneseq
      %v4009 = vshrl.u32 %v4008, 7
      %v4010 = vsub.s32 %v4007, %v4009
      %v4011 = vrot.slane %v3989, %v4010
      %v4013 = vunpack.c.l.s4 1966171168
      %v4014 = vunpack.c.0.s8 %v4013
      %v4015 = vlaneseq
      %v4016 = vshrl.u32 %v4015, 7
      %v4017 = vsub.s32 %v4014, %v4016
      %v4018 = vrot.slane %v3990, %v4017
      %v4019 = vcombine.high %v3997, %v3997
      %v4020 = vcombine.high %v4004, %v4004
      %v4021 = vcombine.high %v4011, %v4011
      %v4022 = vcombine.high %v4018, %v4018
      %v4023 = vcombine.high %v2854, %v2854
      %v4025 = vunpack.c.l.s4 1966171168
      %v4026 = vunpack.c.0.s8 %v4025
      %v4027 = vlaneseq
      %v4028 = vshrl.u32 %v4027, 7
      %v4029 = vsub.s32 %v4026, %v4028
      %v4030 = vrot.slane %v2854, %v4029
      %v4032 = vunpack.c.l.s4 1966171168
      %v4033 = vunpack.c.0.s8 %v4032
      %v4034 = vlaneseq
      %v4035 = vshrl.u32 %v4034, 7
      %v4036 = vsub.s32 %v4033, %v4035
      %v4037 = vrot.slane %v4023, %v4036
      %v4038 = vcombine.high %v4030, %v4030
      %v4039 = vcombine.high %v4037, %v4037
      %v4041 = vunpack.c.l.s4 1966171168
      %v4042 = vunpack.c.0.s8 %v4041
      %v4043 = vlaneseq
      %v4044 = vshrl.u32 %v4043, 7
      %v4045 = vsub.s32 %v4042, %v4044
      %v4046 = vrot.slane %v4030, %v4045
      %v4048 = vunpack.c.l.s4 1966171168
      %v4049 = vunpack.c.0.s8 %v4048
      %v4050 = vlaneseq
      %v4051 = vshrl.u32 %v4050, 7
      %v4052 = vsub.s32 %v4049, %v4051
      %v4053 = vrot.slane %v4037, %v4052
      %v4055 = vunpack.c.l.s4 1966171168
      %v4056 = vunpack.c.0.s8 %v4055
      %v4057 = vlaneseq
      %v4058 = vshrl.u32 %v4057, 7
      %v4059 = vsub.s32 %v4056, %v4058
      %v4060 = vrot.slane %v4038, %v4059
      %v4062 = vunpack.c.l.s4 1966171168
      %v4063 = vunpack.c.0.s8 %v4062
      %v4064 = vlaneseq
      %v4065 = vshrl.u32 %v4064, 7
      %v4066 = vsub.s32 %v4063, %v4065
      %v4067 = vrot.slane %v4039, %v4066
      %v4068 = vcombine.high %v4046, %v4046
      %v4069 = vcombine.high %v4053, %v4053
      %v4070 = vcombine.high %v4060, %v4060
      %v4071 = vcombine.high %v4067, %v4067
      %v4072 = vcombine.high %v2855, %v2855
      %v4074 = vunpack.c.l.s4 1966171168
      %v4075 = vunpack.c.0.s8 %v4074
      %v4076 = vlaneseq
      %v4077 = vshrl.u32 %v4076, 7
      %v4078 = vsub.s32 %v4075, %v4077
      %v4079 = vrot.slane %v2855, %v4078
      %v4081 = vunpack.c.l.s4 1966171168
      %v4082 = vunpack.c.0.s8 %v4081
      %v4083 = vlaneseq
      %v4084 = vshrl.u32 %v4083, 7
      %v4085 = vsub.s32 %v4082, %v4084
      %v4086 = vrot.slane %v4072, %v4085
      %v4087 = vcombine.high %v4079, %v4079
      %v4088 = vcombine.high %v4086, %v4086
      %v4090 = vunpack.c.l.s4 1966171168
      %v4091 = vunpack.c.0.s8 %v4090
      %v4092 = vlaneseq
      %v4093 = vshrl.u32 %v4092, 7
      %v4094 = vsub.s32 %v4091, %v4093
      %v4095 = vrot.slane %v4079, %v4094
      %v4097 = vunpack.c.l.s4 1966171168
      %v4098 = vunpack.c.0.s8 %v4097
      %v4099 = vlaneseq
      %v4100 = vshrl.u32 %v4099, 7
      %v4101 = vsub.s32 %v4098, %v4100
      %v4102 = vrot.slane %v4086, %v4101
      %v4104 = vunpack.c.l.s4 1966171168
      %v4105 = vunpack.c.0.s8 %v4104
      %v4106 = vlaneseq
      %v4107 = vshrl.u32 %v4106, 7
      %v4108 = vsub.s32 %v4105, %v4107
      %v4109 = vrot.slane %v4087, %v4108
      %v4111 = vunpack.c.l.s4 1966171168
      %v4112 = vunpack.c.0.s8 %v4111
      %v4113 = vlaneseq
      %v4114 = vshrl.u32 %v4113, 7
      %v4115 = vsub.s32 %v4112, %v4114
      %v4116 = vrot.slane %v4088, %v4115
      %v4117 = vcombine.high %v4095, %v4095
      %v4118 = vcombine.high %v4102, %v4102
      %v4119 = vcombine.high %v4109, %v4109
      %v4120 = vcombine.high %v4116, %v4116
      %v4121 = vcombine.high %v2856, %v2856
      %v4123 = vunpack.c.l.s4 1966171168
      %v4124 = vunpack.c.0.s8 %v4123
      %v4125 = vlaneseq
      %v4126 = vshrl.u32 %v4125, 7
      %v4127 = vsub.s32 %v4124, %v4126
      %v4128 = vrot.slane %v2856, %v4127
      %v4130 = vunpack.c.l.s4 1966171168
      %v4131 = vunpack.c.0.s8 %v4130
      %v4132 = vlaneseq
      %v4133 = vshrl.u32 %v4132, 7
      %v4134 = vsub.s32 %v4131, %v4133
      %v4135 = vrot.slane %v4121, %v4134
      %v4136 = vcombine.high %v4128, %v4128
      %v4137 = vcombine.high %v4135, %v4135
      %v4139 = vunpack.c.l.s4 1966171168
      %v4140 = vunpack.c.0.s8 %v4139
      %v4141 = vlaneseq
      %v4142 = vshrl.u32 %v4141, 7
      %v4143 = vsub.s32 %v4140, %v4142
      %v4144 = vrot.slane %v4128, %v4143
      %v4146 = vunpack.c.l.s4 1966171168
      %v4147 = vunpack.c.0.s8 %v4146
      %v4148 = vlaneseq
      %v4149 = vshrl.u32 %v4148, 7
      %v4150 = vsub.s32 %v4147, %v4149
      %v4151 = vrot.slane %v4135, %v4150
      %v4153 = vunpack.c.l.s4 1966171168
      %v4154 = vunpack.c.0.s8 %v4153
      %v4155 = vlaneseq
      %v4156 = vshrl.u32 %v4155, 7
      %v4157 = vsub.s32 %v4154, %v4156
      %v4158 = vrot.slane %v4136, %v4157
      %v4160 = vunpack.c.l.s4 1966171168
      %v4161 = vunpack.c.0.s8 %v4160
      %v4162 = vlaneseq
      %v4163 = vshrl.u32 %v4162, 7
      %v4164 = vsub.s32 %v4161, %v4163
      %v4165 = vrot.slane %v4137, %v4164
      %v4166 = vcombine.high %v4144, %v4144
      %v4167 = vcombine.high %v4151, %v4151
      %v4168 = vcombine.high %v4158, %v4158
      %v4169 = vcombine.high %v4165, %v4165
      %v4170 = vcombine.high %v2857, %v2857
      %v4172 = vunpack.c.l.s4 1966171168
      %v4173 = vunpack.c.0.s8 %v4172
      %v4174 = vlaneseq
      %v4175 = vshrl.u32 %v4174, 7
      %v4176 = vsub.s32 %v4173, %v4175
      %v4177 = vrot.slane %v2857, %v4176
      %v4179 = vunpack.c.l.s4 1966171168
      %v4180 = vunpack.c.0.s8 %v4179
      %v4181 = vlaneseq
      %v4182 = vshrl.u32 %v4181, 7
      %v4183 = vsub.s32 %v4180, %v4182
      %v4184 = vrot.slane %v4170, %v4183
      %v4185 = vcombine.high %v4177, %v4177
      %v4186 = vcombine.high %v4184, %v4184
      %v4188 = vunpack.c.l.s4 1966171168
      %v4189 = vunpack.c.0.s8 %v4188
      %v4190 = vlaneseq
      %v4191 = vshrl.u32 %v4190, 7
      %v4192 = vsub.s32 %v4189, %v4191
      %v4193 = vrot.slane %v4177, %v4192
      %v4195 = vunpack.c.l.s4 1966171168
      %v4196 = vunpack.c.0.s8 %v4195
      %v4197 = vlaneseq
      %v4198 = vshrl.u32 %v4197, 7
      %v4199 = vsub.s32 %v4196, %v4198
      %v4200 = vrot.slane %v4184, %v4199
      %v4202 = vunpack.c.l.s4 1966171168
      %v4203 = vunpack.c.0.s8 %v4202
      %v4204 = vlaneseq
      %v4205 = vshrl.u32 %v4204, 7
      %v4206 = vsub.s32 %v4203, %v4205
      %v4207 = vrot.slane %v4185, %v4206
      %v4209 = vunpack.c.l.s4 1966171168
      %v4210 = vunpack.c.0.s8 %v4209
      %v4211 = vlaneseq
      %v4212 = vshrl.u32 %v4211, 7
      %v4213 = vsub.s32 %v4210, %v4212
      %v4214 = vrot.slane %v4186, %v4213
      %v4215 = vcombine.high %v4193, %v4193
      %v4216 = vcombine.high %v4200, %v4200
      %v4217 = vcombine.high %v4207, %v4207
      %v4218 = vcombine.high %v4214, %v4214
      %v4219 = vcombine.high %v2858, %v2858
      %v4221 = vunpack.c.l.s4 1966171168
      %v4222 = vunpack.c.0.s8 %v4221
      %v4223 = vlaneseq
      %v4224 = vshrl.u32 %v4223, 7
      %v4225 = vsub.s32 %v4222, %v4224
      %v4226 = vrot.slane %v2858, %v4225
      %v4228 = vunpack.c.l.s4 1966171168
      %v4229 = vunpack.c.0.s8 %v4228
      %v4230 = vlaneseq
      %v4231 = vshrl.u32 %v4230, 7
      %v4232 = vsub.s32 %v4229, %v4231
      %v4233 = vrot.slane %v4219, %v4232
      %v4234 = vcombine.high %v4226, %v4226
      %v4235 = vcombine.high %v4233, %v4233
      %v4237 = vunpack.c.l.s4 1966171168
      %v4238 = vunpack.c.0.s8 %v4237
      %v4239 = vlaneseq
      %v4240 = vshrl.u32 %v4239, 7
      %v4241 = vsub.s32 %v4238, %v4240
      %v4242 = vrot.slane %v4226, %v4241
      %v4244 = vunpack.c.l.s4 1966171168
      %v4245 = vunpack.c.0.s8 %v4244
      %v4246 = vlaneseq
      %v4247 = vshrl.u32 %v4246, 7
      %v4248 = vsub.s32 %v4245, %v4247
      %v4249 = vrot.slane %v4233, %v4248
      %v4251 = vunpack.c.l.s4 1966171168
      %v4252 = vunpack.c.0.s8 %v4251
      %v4253 = vlaneseq
      %v4254 = vshrl.u32 %v4253, 7
      %v4255 = vsub.s32 %v4252, %v4254
      %v4256 = vrot.slane %v4234, %v4255
      %v4258 = vunpack.c.l.s4 1966171168
      %v4259 = vunpack.c.0.s8 %v4258
      %v4260 = vlaneseq
      %v4261 = vshrl.u32 %v4260, 7
      %v4262 = vsub.s32 %v4259, %v4261
      %v4263 = vrot.slane %v4235, %v4262
      %v4264 = vcombine.high %v4242, %v4242
      %v4265 = vcombine.high %v4249, %v4249
      %v4266 = vcombine.high %v4256, %v4256
      %v4267 = vcombine.high %v4263, %v4263
      %v4268 = vcombine.high %v2859, %v2859
      %v4270 = vunpack.c.l.s4 1966171168
      %v4271 = vunpack.c.0.s8 %v4270
      %v4272 = vlaneseq
      %v4273 = vshrl.u32 %v4272, 7
      %v4274 = vsub.s32 %v4271, %v4273
      %v4275 = vrot.slane %v2859, %v4274
      %v4277 = vunpack.c.l.s4 1966171168
      %v4278 = vunpack.c.0.s8 %v4277
      %v4279 = vlaneseq
      %v4280 = vshrl.u32 %v4279, 7
      %v4281 = vsub.s32 %v4278, %v4280
      %v4282 = vrot.slane %v4268, %v4281
      %v4283 = vcombine.high %v4275, %v4275
      %v4284 = vcombine.high %v4282, %v4282
      %v4286 = vunpack.c.l.s4 1966171168
      %v4287 = vunpack.c.0.s8 %v4286
      %v4288 = vlaneseq
      %v4289 = vshrl.u32 %v4288, 7
      %v4290 = vsub.s32 %v4287, %v4289
      %v4291 = vrot.slane %v4275, %v4290
      %v4293 = vunpack.c.l.s4 1966171168
      %v4294 = vunpack.c.0.s8 %v4293
      %v4295 = vlaneseq
      %v4296 = vshrl.u32 %v4295, 7
      %v4297 = vsub.s32 %v4294, %v4296
      %v4298 = vrot.slane %v4282, %v4297
      %v4300 = vunpack.c.l.s4 1966171168
      %v4301 = vunpack.c.0.s8 %v4300
      %v4302 = vlaneseq
      %v4303 = vshrl.u32 %v4302, 7
      %v4304 = vsub.s32 %v4301, %v4303
      %v4305 = vrot.slane %v4283, %v4304
      %v4307 = vunpack.c.l.s4 1966171168
      %v4308 = vunpack.c.0.s8 %v4307
      %v4309 = vlaneseq
      %v4310 = vshrl.u32 %v4309, 7
      %v4311 = vsub.s32 %v4308, %v4310
      %v4312 = vrot.slane %v4284, %v4311
      %v4313 = vcombine.high %v4291, %v4291
      %v4314 = vcombine.high %v4298, %v4298
      %v4315 = vcombine.high %v4305, %v4305
      %v4316 = vcombine.high %v4312, %v4312
      %v4317 = vcombine.high %v2860, %v2860
      %v4319 = vunpack.c.l.s4 1966171168
      %v4320 = vunpack.c.0.s8 %v4319
      %v4321 = vlaneseq
      %v4322 = vshrl.u32 %v4321, 7
      %v4323 = vsub.s32 %v4320, %v4322
      %v4324 = vrot.slane %v2860, %v4323
      %v4326 = vunpack.c.l.s4 1966171168
      %v4327 = vunpack.c.0.s8 %v4326
      %v4328 = vlaneseq
      %v4329 = vshrl.u32 %v4328, 7
      %v4330 = vsub.s32 %v4327, %v4329
      %v4331 = vrot.slane %v4317, %v4330
      %v4332 = vcombine.high %v4324, %v4324
      %v4333 = vcombine.high %v4331, %v4331
      %v4335 = vunpack.c.l.s4 1966171168
      %v4336 = vunpack.c.0.s8 %v4335
      %v4337 = vlaneseq
      %v4338 = vshrl.u32 %v4337, 7
      %v4339 = vsub.s32 %v4336, %v4338
      %v4340 = vrot.slane %v4324, %v4339
      %v4342 = vunpack.c.l.s4 1966171168
      %v4343 = vunpack.c.0.s8 %v4342
      %v4344 = vlaneseq
      %v4345 = vshrl.u32 %v4344, 7
      %v4346 = vsub.s32 %v4343, %v4345
      %v4347 = vrot.slane %v4331, %v4346
      %v4349 = vunpack.c.l.s4 1966171168
      %v4350 = vunpack.c.0.s8 %v4349
      %v4351 = vlaneseq
      %v4352 = vshrl.u32 %v4351, 7
      %v4353 = vsub.s32 %v4350, %v4352
      %v4354 = vrot.slane %v4332, %v4353
      %v4356 = vunpack.c.l.s4 1966171168
      %v4357 = vunpack.c.0.s8 %v4356
      %v4358 = vlaneseq
      %v4359 = vshrl.u32 %v4358, 7
      %v4360 = vsub.s32 %v4357, %v4359
      %v4361 = vrot.slane %v4333, %v4360
      %v4362 = vcombine.high %v4340, %v4340
      %v4363 = vcombine.high %v4347, %v4347
      %v4364 = vcombine.high %v4354, %v4354
      %v4365 = vcombine.high %v4361, %v4361
      %v4366 = vcombine.high %v2861, %v2861
      %v4368 = vunpack.c.l.s4 1966171168
      %v4369 = vunpack.c.0.s8 %v4368
      %v4370 = vlaneseq
      %v4371 = vshrl.u32 %v4370, 7
      %v4372 = vsub.s32 %v4369, %v4371
      %v4373 = vrot.slane %v2861, %v4372
      %v4375 = vunpack.c.l.s4 1966171168
      %v4376 = vunpack.c.0.s8 %v4375
      %v4377 = vlaneseq
      %v4378 = vshrl.u32 %v4377, 7
      %v4379 = vsub.s32 %v4376, %v4378
      %v4380 = vrot.slane %v4366, %v4379
      %v4381 = vcombine.high %v4373, %v4373
      %v4382 = vcombine.high %v4380, %v4380
      %v4384 = vunpack.c.l.s4 1966171168
      %v4385 = vunpack.c.0.s8 %v4384
      %v4386 = vlaneseq
      %v4387 = vshrl.u32 %v4386, 7
      %v4388 = vsub.s32 %v4385, %v4387
      %v4389 = vrot.slane %v4373, %v4388
      %v4391 = vunpack.c.l.s4 1966171168
      %v4392 = vunpack.c.0.s8 %v4391
      %v4393 = vlaneseq
      %v4394 = vshrl.u32 %v4393, 7
      %v4395 = vsub.s32 %v4392, %v4394
      %v4396 = vrot.slane %v4380, %v4395
      %v4398 = vunpack.c.l.s4 1966171168
      %v4399 = vunpack.c.0.s8 %v4398
      %v4400 = vlaneseq
      %v4401 = vshrl.u32 %v4400, 7
      %v4402 = vsub.s32 %v4399, %v4401
      %v4403 = vrot.slane %v4381, %v4402
      %v4405 = vunpack.c.l.s4 1966171168
      %v4406 = vunpack.c.0.s8 %v4405
      %v4407 = vlaneseq
      %v4408 = vshrl.u32 %v4407, 7
      %v4409 = vsub.s32 %v4406, %v4408
      %v4410 = vrot.slane %v4382, %v4409
      %v4411 = vcombine.high %v4389, %v4389
      %v4412 = vcombine.high %v4396, %v4396
      %v4413 = vcombine.high %v4403, %v4403
      %v4414 = vcombine.high %v4410, %v4410
      %v4415 = vcombine.high %v2862, %v2862
      %v4417 = vunpack.c.l.s4 1966171168
      %v4418 = vunpack.c.0.s8 %v4417
      %v4419 = vlaneseq
      %v4420 = vshrl.u32 %v4419, 7
      %v4421 = vsub.s32 %v4418, %v4420
      %v4422 = vrot.slane %v2862, %v4421
      %v4424 = vunpack.c.l.s4 1966171168
      %v4425 = vunpack.c.0.s8 %v4424
      %v4426 = vlaneseq
      %v4427 = vshrl.u32 %v4426, 7
      %v4428 = vsub.s32 %v4425, %v4427
      %v4429 = vrot.slane %v4415, %v4428
      %v4430 = vcombine.high %v4422, %v4422
      %v4431 = vcombine.high %v4429, %v4429
      %v4433 = vunpack.c.l.s4 1966171168
      %v4434 = vunpack.c.0.s8 %v4433
      %v4435 = vlaneseq
      %v4436 = vshrl.u32 %v4435, 7
      %v4437 = vsub.s32 %v4434, %v4436
      %v4438 = vrot.slane %v4422, %v4437
      %v4440 = vunpack.c.l.s4 1966171168
      %v4441 = vunpack.c.0.s8 %v4440
      %v4442 = vlaneseq
      %v4443 = vshrl.u32 %v4442, 7
      %v4444 = vsub.s32 %v4441, %v4443
      %v4445 = vrot.slane %v4429, %v4444
      %v4447 = vunpack.c.l.s4 1966171168
      %v4448 = vunpack.c.0.s8 %v4447
      %v4449 = vlaneseq
      %v4450 = vshrl.u32 %v4449, 7
      %v4451 = vsub.s32 %v4448, %v4450
      %v4452 = vrot.slane %v4430, %v4451
      %v4454 = vunpack.c.l.s4 1966171168
      %v4455 = vunpack.c.0.s8 %v4454
      %v4456 = vlaneseq
      %v4457 = vshrl.u32 %v4456, 7
      %v4458 = vsub.s32 %v4455, %v4457
      %v4459 = vrot.slane %v4431, %v4458
      %v4460 = vcombine.high %v4438, %v4438
      %v4461 = vcombine.high %v4445, %v4445
      %v4462 = vcombine.high %v4452, %v4452
      %v4463 = vcombine.high %v4459, %v4459
      %v4464 = vcombine.high %v2863, %v2863
      %v4466 = vunpack.c.l.s4 1966171168
      %v4467 = vunpack.c.0.s8 %v4466
      %v4468 = vlaneseq
      %v4469 = vshrl.u32 %v4468, 7
      %v4470 = vsub.s32 %v4467, %v4469
      %v4471 = vrot.slane %v2863, %v4470
      %v4473 = vunpack.c.l.s4 1966171168
      %v4474 = vunpack.c.0.s8 %v4473
      %v4475 = vlaneseq
      %v4476 = vshrl.u32 %v4475, 7
      %v4477 = vsub.s32 %v4474, %v4476
      %v4478 = vrot.slane %v4464, %v4477
      %v4479 = vcombine.high %v4471, %v4471
      %v4480 = vcombine.high %v4478, %v4478
      %v4482 = vunpack.c.l.s4 1966171168
      %v4483 = vunpack.c.0.s8 %v4482
      %v4484 = vlaneseq
      %v4485 = vshrl.u32 %v4484, 7
      %v4486 = vsub.s32 %v4483, %v4485
      %v4487 = vrot.slane %v4471, %v4486
      %v4489 = vunpack.c.l.s4 1966171168
      %v4490 = vunpack.c.0.s8 %v4489
      %v4491 = vlaneseq
      %v4492 = vshrl.u32 %v4491, 7
      %v4493 = vsub.s32 %v4490, %v4492
      %v4494 = vrot.slane %v4478, %v4493
      %v4496 = vunpack.c.l.s4 1966171168
      %v4497 = vunpack.c.0.s8 %v4496
      %v4498 = vlaneseq
      %v4499 = vshrl.u32 %v4498, 7
      %v4500 = vsub.s32 %v4497, %v4499
      %v4501 = vrot.slane %v4479, %v4500
      %v4503 = vunpack.c.l.s4 1966171168
      %v4504 = vunpack.c.0.s8 %v4503
      %v4505 = vlaneseq
      %v4506 = vshrl.u32 %v4505, 7
      %v4507 = vsub.s32 %v4504, %v4506
      %v4508 = vrot.slane %v4480, %v4507
      %v4509 = vcombine.high %v4487, %v4487
      %v4510 = vcombine.high %v4494, %v4494
      %v4511 = vcombine.high %v4501, %v4501
      %v4512 = vcombine.high %v4508, %v4508
      %v4513 = vcombine.high %v2864, %v2864
      %v4515 = vunpack.c.l.s4 1966171168
      %v4516 = vunpack.c.0.s8 %v4515
      %v4517 = vlaneseq
      %v4518 = vshrl.u32 %v4517, 7
      %v4519 = vsub.s32 %v4516, %v4518
      %v4520 = vrot.slane %v2864, %v4519
      %v4522 = vunpack.c.l.s4 1966171168
      %v4523 = vunpack.c.0.s8 %v4522
      %v4524 = vlaneseq
      %v4525 = vshrl.u32 %v4524, 7
      %v4526 = vsub.s32 %v4523, %v4525
      %v4527 = vrot.slane %v4513, %v4526
      %v4528 = vcombine.high %v4520, %v4520
      %v4529 = vcombine.high %v4527, %v4527
      %v4531 = vunpack.c.l.s4 1966171168
      %v4532 = vunpack.c.0.s8 %v4531
      %v4533 = vlaneseq
      %v4534 = vshrl.u32 %v4533, 7
      %v4535 = vsub.s32 %v4532, %v4534
      %v4536 = vrot.slane %v4520, %v4535
      %v4538 = vunpack.c.l.s4 1966171168
      %v4539 = vunpack.c.0.s8 %v4538
      %v4540 = vlaneseq
      %v4541 = vshrl.u32 %v4540, 7
      %v4542 = vsub.s32 %v4539, %v4541
      %v4543 = vrot.slane %v4527, %v4542
      %v4545 = vunpack.c.l.s4 1966171168
      %v4546 = vunpack.c.0.s8 %v4545
      %v4547 = vlaneseq
      %v4548 = vshrl.u32 %v4547, 7
      %v4549 = vsub.s32 %v4546, %v4548
      %v4550 = vrot.slane %v4528, %v4549
      %v4552 = vunpack.c.l.s4 1966171168
      %v4553 = vunpack.c.0.s8 %v4552
      %v4554 = vlaneseq
      %v4555 = vshrl.u32 %v4554, 7
      %v4556 = vsub.s32 %v4553, %v4555
      %v4557 = vrot.slane %v4529, %v4556
      %v4558 = vcombine.high %v4536, %v4536
      %v4559 = vcombine.high %v4543, %v4543
      %v4560 = vcombine.high %v4550, %v4550
      %v4561 = vcombine.high %v4557, %v4557
      %v4562 = vcombine.high %v2865, %v2865
      %v4564 = vunpack.c.l.s4 1966171168
      %v4565 = vunpack.c.0.s8 %v4564
      %v4566 = vlaneseq
      %v4567 = vshrl.u32 %v4566, 7
      %v4568 = vsub.s32 %v4565, %v4567
      %v4569 = vrot.slane %v2865, %v4568
      %v4571 = vunpack.c.l.s4 1966171168
      %v4572 = vunpack.c.0.s8 %v4571
      %v4573 = vlaneseq
      %v4574 = vshrl.u32 %v4573, 7
      %v4575 = vsub.s32 %v4572, %v4574
      %v4576 = vrot.slane %v4562, %v4575
      %v4577 = vcombine.high %v4569, %v4569
      %v4578 = vcombine.high %v4576, %v4576
      %v4580 = vunpack.c.l.s4 1966171168
      %v4581 = vunpack.c.0.s8 %v4580
      %v4582 = vlaneseq
      %v4583 = vshrl.u32 %v4582, 7
      %v4584 = vsub.s32 %v4581, %v4583
      %v4585 = vrot.slane %v4569, %v4584
      %v4587 = vunpack.c.l.s4 1966171168
      %v4588 = vunpack.c.0.s8 %v4587
      %v4589 = vlaneseq
      %v4590 = vshrl.u32 %v4589, 7
      %v4591 = vsub.s32 %v4588, %v4590
      %v4592 = vrot.slane %v4576, %v4591
      %v4594 = vunpack.c.l.s4 1966171168
      %v4595 = vunpack.c.0.s8 %v4594
      %v4596 = vlaneseq
      %v4597 = vshrl.u32 %v4596, 7
      %v4598 = vsub.s32 %v4595, %v4597
      %v4599 = vrot.slane %v4577, %v4598
      %v4601 = vunpack.c.l.s4 1966171168
      %v4602 = vunpack.c.0.s8 %v4601
      %v4603 = vlaneseq
      %v4604 = vshrl.u32 %v4603, 7
      %v4605 = vsub.s32 %v4602, %v4604
      %v4606 = vrot.slane %v4578, %v4605
      %v4607 = vcombine.high %v4585, %v4585
      %v4608 = vcombine.high %v4592, %v4592
      %v4609 = vcombine.high %v4599, %v4599
      %v4610 = vcombine.high %v4606, %v4606
      %v4611 = vcombine.high %v2866, %v2866
      %v4613 = vunpack.c.l.s4 1966171168
      %v4614 = vunpack.c.0.s8 %v4613
      %v4615 = vlaneseq
      %v4616 = vshrl.u32 %v4615, 7
      %v4617 = vsub.s32 %v4614, %v4616
      %v4618 = vrot.slane %v2866, %v4617
      %v4620 = vunpack.c.l.s4 1966171168
      %v4621 = vunpack.c.0.s8 %v4620
      %v4622 = vlaneseq
      %v4623 = vshrl.u32 %v4622, 7
      %v4624 = vsub.s32 %v4621, %v4623
      %v4625 = vrot.slane %v4611, %v4624
      %v4626 = vcombine.high %v4618, %v4618
      %v4627 = vcombine.high %v4625, %v4625
      %v4629 = vunpack.c.l.s4 1966171168
      %v4630 = vunpack.c.0.s8 %v4629
      %v4631 = vlaneseq
      %v4632 = vshrl.u32 %v4631, 7
      %v4633 = vsub.s32 %v4630, %v4632
      %v4634 = vrot.slane %v4618, %v4633
      %v4636 = vunpack.c.l.s4 1966171168
      %v4637 = vunpack.c.0.s8 %v4636
      %v4638 = vlaneseq
      %v4639 = vshrl.u32 %v4638, 7
      %v4640 = vsub.s32 %v4637, %v4639
      %v4641 = vrot.slane %v4625, %v4640
      %v4643 = vunpack.c.l.s4 1966171168
      %v4644 = vunpack.c.0.s8 %v4643
      %v4645 = vlaneseq
      %v4646 = vshrl.u32 %v4645, 7
      %v4647 = vsub.s32 %v4644, %v4646
      %v4648 = vrot.slane %v4626, %v4647
      %v4650 = vunpack.c.l.s4 1966171168
      %v4651 = vunpack.c.0.s8 %v4650
      %v4652 = vlaneseq
      %v4653 = vshrl.u32 %v4652, 7
      %v4654 = vsub.s32 %v4651, %v4653
      %v4655 = vrot.slane %v4627, %v4654
      %v4656 = vcombine.high %v4634, %v4634
      %v4657 = vcombine.high %v4641, %v4641
      %v4658 = vcombine.high %v4648, %v4648
      %v4659 = vcombine.high %v4655, %v4655
      %v4660 = vcombine.high %v2867, %v2867
      %v4662 = vunpack.c.l.s4 1966171168
      %v4663 = vunpack.c.0.s8 %v4662
      %v4664 = vlaneseq
      %v4665 = vshrl.u32 %v4664, 7
      %v4666 = vsub.s32 %v4663, %v4665
      %v4667 = vrot.slane %v2867, %v4666
      %v4669 = vunpack.c.l.s4 1966171168
      %v4670 = vunpack.c.0.s8 %v4669
      %v4671 = vlaneseq
      %v4672 = vshrl.u32 %v4671, 7
      %v4673 = vsub.s32 %v4670, %v4672
      %v4674 = vrot.slane %v4660, %v4673
      %v4675 = vcombine.high %v4667, %v4667
      %v4676 = vcombine.high %v4674, %v4674
      %v4678 = vunpack.c.l.s4 1966171168
      %v4679 = vunpack.c.0.s8 %v4678
      %v4680 = vlaneseq
      %v4681 = vshrl.u32 %v4680, 7
      %v4682 = vsub.s32 %v4679, %v4681
      %v4683 = vrot.slane %v4667, %v4682
      %v4685 = vunpack.c.l.s4 1966171168
      %v4686 = vunpack.c.0.s8 %v4685
      %v4687 = vlaneseq
      %v4688 = vshrl.u32 %v4687, 7
      %v4689 = vsub.s32 %v4686, %v4688
      %v4690 = vrot.slane %v4674, %v4689
      %v4692 = vunpack.c.l.s4 1966171168
      %v4693 = vunpack.c.0.s8 %v4692
      %v4694 = vlaneseq
      %v4695 = vshrl.u32 %v4694, 7
      %v4696 = vsub.s32 %v4693, %v4695
      %v4697 = vrot.slane %v4675, %v4696
      %v4699 = vunpack.c.l.s4 1966171168
      %v4700 = vunpack.c.0.s8 %v4699
      %v4701 = vlaneseq
      %v4702 = vshrl.u32 %v4701, 7
      %v4703 = vsub.s32 %v4700, %v4702
      %v4704 = vrot.slane %v4676, %v4703
      %v4705 = vcombine.high %v4683, %v4683
      %v4706 = vcombine.high %v4690, %v4690
      %v4707 = vcombine.high %v4697, %v4697
      %v4708 = vcombine.high %v4704, %v4704
      %v4709 = vsel %vm3781, 1, 0
      %v4710 = vsel %vm3782, 1, 0
      %v4711 = vsel %vm3783, 1, 0
      %v4712 = vsel %vm3784, 1, 0
      %v4713 = vsel %vm3785, 1, 0
      %v4714 = vsel %vm3786, 1, 0
      %v4715 = vsel %vm3787, 1, 0
      %v4716 = vsel %vm3788, 1, 0
      %v4717 = vsel %vm3789, 1, 0
      %v4718 = vsel %vm3790, 1, 0
      %v4719 = vsel %vm3791, 1, 0
      %v4720 = vsel %vm3792, 1, 0
      %v4721 = vsel %vm3793, 1, 0
      %v4722 = vsel %vm3794, 1, 0
      %v4723 = vsel %vm3795, 1, 0
      %v4724 = vsel %vm3796, 1, 0
      %v4725 = vsel %vm3797, 1, 0
      %v4726 = vsel %vm3798, 1, 0
      %v4727 = vsel %vm3799, 1, 0
      %v4728 = vsel %vm3800, 1, 0
      %v4729 = vsel %vm3801, 1, 0
      %v4730 = vsel %vm3802, 1, 0
      %v4731 = vsel %vm3803, 1, 0
      %v4732 = vsel %vm3804, 1, 0
      %v4733 = vsel %vm3805, 1, 0
      %v4734 = vsel %vm3806, 1, 0
      %v4735 = vsel %vm3807, 1, 0
      %v4736 = vsel %vm3808, 1, 0
      %v4737 = vsel %vm3809, 1, 0
      %v4738 = vsel %vm3810, 1, 0
      %v4739 = vsel %vm3811, 1, 0
      %v4740 = vsel %vm3812, 1, 0
      %v4741 = vsel %vm3813, 1, 0
      %v4742 = vsel %vm3814, 1, 0
      %v4743 = vsel %vm3815, 1, 0
      %v4744 = vsel %vm3816, 1, 0
      %v4745 = vsel %vm3817, 1, 0
      %v4746 = vsel %vm3818, 1, 0
      %v4747 = vsel %vm3819, 1, 0
      %v4748 = vsel %vm3820, 1, 0
      %v4749 = vsel %vm3821, 1, 0
      %v4750 = vsel %vm3822, 1, 0
      %v4751 = vsel %vm3823, 1, 0
      %v4752 = vsel %vm3824, 1, 0
      %v4753 = vsel %vm3825, 1, 0
      %v4754 = vsel %vm3826, 1, 0
      %v4755 = vsel %vm3827, 1, 0
      %v4756 = vsel %vm3828, 1, 0
      %v4757 = vsel %vm3829, 1, 0
      %v4758 = vsel %vm3830, 1, 0
      %v4759 = vsel %vm3831, 1, 0
      %v4760 = vsel %vm3832, 1, 0
      %v4761 = vsel %vm3833, 1, 0
      %v4762 = vsel %vm3834, 1, 0
      %v4763 = vsel %vm3835, 1, 0
      %v4764 = vsel %vm3836, 1, 0
      %v4765 = vsel %vm3837, 1, 0
      %v4766 = vsel %vm3838, 1, 0
      %v4767 = vsel %vm3839, 1, 0
      %v4768 = vsel %vm3840, 1, 0
      %v4769 = vsel %vm3841, 1, 0
      %v4770 = vsel %vm3842, 1, 0
      %v4771 = vsel %vm3843, 1, 0
      %v4772 = vsel %vm3844, 1, 0
      %v4773 = vsel %vm3845, 1, 0
      %v4774 = vsel %vm3846, 1, 0
      %v4775 = vsel %vm3847, 1, 0
      %v4776 = vsel %vm3848, 1, 0
      %v4777 = vsel %vm3849, 1, 0
      %v4778 = vsel %vm3850, 1, 0
      %v4779 = vsel %vm3851, 1, 0
      %v4780 = vsel %vm3852, 1, 0
      %v4781 = vsel %vm3853, 1, 0
      %v4782 = vsel %vm3854, 1, 0
      %v4783 = vsel %vm3855, 1, 0
      %v4784 = vsel %vm3856, 1, 0
      %v4785 = vsel %vm3857, 1, 0
      %v4786 = vsel %vm3858, 1, 0
      %v4787 = vsel %vm3859, 1, 0
      %v4788 = vsel %vm3860, 1, 0
      %v4789 = vsel %vm3861, 1, 0
      %v4790 = vsel %vm3862, 1, 0
      %v4791 = vsel %vm3863, 1, 0
      %v4792 = vsel %vm3864, 1, 0
      %v4793 = vsel %vm3865, 1, 0
      %v4794 = vsel %vm3866, 1, 0
      %v4795 = vsel %vm3867, 1, 0
      %v4796 = vsel %vm3868, 1, 0
      %v4797 = vsel %vm3869, 1, 0
      %v4798 = vsel %vm3870, 1, 0
      %v4799 = vsel %vm3871, 1, 0
      %v4800 = vsel %vm3872, 1, 0
      %v4801 = vsel %vm3873, 1, 0
      %v4802 = vsel %vm3874, 1, 0
      %v4803 = vsel %vm3875, 1, 0
      %v4804 = vsel %vm3876, 1, 0
      %v4805 = vsel %vm3877, 1, 0
      %v4806 = vsel %vm3878, 1, 0
      %v4807 = vsel %vm3879, 1, 0
      %v4808 = vsel %vm3880, 1, 0
      %v4809 = vsel %vm3881, 1, 0
      %v4810 = vsel %vm3882, 1, 0
      %v4811 = vsel %vm3883, 1, 0
      %v4812 = vsel %vm3884, 1, 0
      %v4813 = vsel %vm3885, 1, 0
      %v4814 = vsel %vm3886, 1, 0
      %v4815 = vsel %vm3887, 1, 0
      %v4816 = vsel %vm3888, 1, 0
      %v4817 = vsel %vm3889, 1, 0
      %v4818 = vsel %vm3890, 1, 0
      %v4819 = vsel %vm3891, 1, 0
      %v4820 = vsel %vm3892, 1, 0
      %v4821 = vsel %vm3893, 1, 0
      %v4822 = vsel %vm3894, 1, 0
      %v4823 = vsel %vm3895, 1, 0
      %v4824 = vsel %vm3896, 1, 0
      %v4825 = vsel %vm3897, 1, 0
      %v4826 = vsel %vm3898, 1, 0
      %v4827 = vsel %vm3899, 1, 0
      %v4828 = vsel %vm3900, 1, 0
      %v4829 = vsel %vm3901, 1, 0
      %v4830 = vsel %vm3902, 1, 0
      %v4831 = vsel %vm3903, 1, 0
      %v4832 = vsel %vm3904, 1, 0
      %v4833 = vsel %vm3905, 1, 0
      %v4834 = vsel %vm3906, 1, 0
      %v4835 = vsel %vm3907, 1, 0
      %v4836 = vsel %vm3908, 1, 0
      %vm4837 = vcmp.eq.s32.totalorder %v4709, 1
      %vm4838 = vcmp.eq.s32.totalorder %v4710, 1
      %vm4839 = vcmp.eq.s32.totalorder %v4711, 1
      %vm4840 = vcmp.eq.s32.totalorder %v4712, 1
      %vm4841 = vcmp.eq.s32.totalorder %v4713, 1
      %vm4842 = vcmp.eq.s32.totalorder %v4714, 1
      %vm4843 = vcmp.eq.s32.totalorder %v4715, 1
      %vm4844 = vcmp.eq.s32.totalorder %v4716, 1
      %vm4845 = vcmp.eq.s32.totalorder %v4717, 1
      %vm4846 = vcmp.eq.s32.totalorder %v4718, 1
      %vm4847 = vcmp.eq.s32.totalorder %v4719, 1
      %vm4848 = vcmp.eq.s32.totalorder %v4720, 1
      %vm4849 = vcmp.eq.s32.totalorder %v4721, 1
      %vm4850 = vcmp.eq.s32.totalorder %v4722, 1
      %vm4851 = vcmp.eq.s32.totalorder %v4723, 1
      %vm4852 = vcmp.eq.s32.totalorder %v4724, 1
      %vm4853 = vcmp.eq.s32.totalorder %v4725, 1
      %vm4854 = vcmp.eq.s32.totalorder %v4726, 1
      %vm4855 = vcmp.eq.s32.totalorder %v4727, 1
      %vm4856 = vcmp.eq.s32.totalorder %v4728, 1
      %vm4857 = vcmp.eq.s32.totalorder %v4729, 1
      %vm4858 = vcmp.eq.s32.totalorder %v4730, 1
      %vm4859 = vcmp.eq.s32.totalorder %v4731, 1
      %vm4860 = vcmp.eq.s32.totalorder %v4732, 1
      %vm4861 = vcmp.eq.s32.totalorder %v4733, 1
      %vm4862 = vcmp.eq.s32.totalorder %v4734, 1
      %vm4863 = vcmp.eq.s32.totalorder %v4735, 1
      %vm4864 = vcmp.eq.s32.totalorder %v4736, 1
      %vm4865 = vcmp.eq.s32.totalorder %v4737, 1
      %vm4866 = vcmp.eq.s32.totalorder %v4738, 1
      %vm4867 = vcmp.eq.s32.totalorder %v4739, 1
      %vm4868 = vcmp.eq.s32.totalorder %v4740, 1
      %vm4869 = vcmp.eq.s32.totalorder %v4741, 1
      %vm4870 = vcmp.eq.s32.totalorder %v4742, 1
      %vm4871 = vcmp.eq.s32.totalorder %v4743, 1
      %vm4872 = vcmp.eq.s32.totalorder %v4744, 1
      %vm4873 = vcmp.eq.s32.totalorder %v4745, 1
      %vm4874 = vcmp.eq.s32.totalorder %v4746, 1
      %vm4875 = vcmp.eq.s32.totalorder %v4747, 1
      %vm4876 = vcmp.eq.s32.totalorder %v4748, 1
      %vm4877 = vcmp.eq.s32.totalorder %v4749, 1
      %vm4878 = vcmp.eq.s32.totalorder %v4750, 1
      %vm4879 = vcmp.eq.s32.totalorder %v4751, 1
      %vm4880 = vcmp.eq.s32.totalorder %v4752, 1
      %vm4881 = vcmp.eq.s32.totalorder %v4753, 1
      %vm4882 = vcmp.eq.s32.totalorder %v4754, 1
      %vm4883 = vcmp.eq.s32.totalorder %v4755, 1
      %vm4884 = vcmp.eq.s32.totalorder %v4756, 1
      %vm4885 = vcmp.eq.s32.totalorder %v4757, 1
      %vm4886 = vcmp.eq.s32.totalorder %v4758, 1
      %vm4887 = vcmp.eq.s32.totalorder %v4759, 1
      %vm4888 = vcmp.eq.s32.totalorder %v4760, 1
      %vm4889 = vcmp.eq.s32.totalorder %v4761, 1
      %vm4890 = vcmp.eq.s32.totalorder %v4762, 1
      %vm4891 = vcmp.eq.s32.totalorder %v4763, 1
      %vm4892 = vcmp.eq.s32.totalorder %v4764, 1
      %vm4893 = vcmp.eq.s32.totalorder %v4765, 1
      %vm4894 = vcmp.eq.s32.totalorder %v4766, 1
      %vm4895 = vcmp.eq.s32.totalorder %v4767, 1
      %vm4896 = vcmp.eq.s32.totalorder %v4768, 1
      %vm4897 = vcmp.eq.s32.totalorder %v4769, 1
      %vm4898 = vcmp.eq.s32.totalorder %v4770, 1
      %vm4899 = vcmp.eq.s32.totalorder %v4771, 1
      %vm4900 = vcmp.eq.s32.totalorder %v4772, 1
      %vm4901 = vcmp.eq.s32.totalorder %v4773, 1
      %vm4902 = vcmp.eq.s32.totalorder %v4774, 1
      %vm4903 = vcmp.eq.s32.totalorder %v4775, 1
      %vm4904 = vcmp.eq.s32.totalorder %v4776, 1
      %vm4905 = vcmp.eq.s32.totalorder %v4777, 1
      %vm4906 = vcmp.eq.s32.totalorder %v4778, 1
      %vm4907 = vcmp.eq.s32.totalorder %v4779, 1
      %vm4908 = vcmp.eq.s32.totalorder %v4780, 1
      %vm4909 = vcmp.eq.s32.totalorder %v4781, 1
      %vm4910 = vcmp.eq.s32.totalorder %v4782, 1
      %vm4911 = vcmp.eq.s32.totalorder %v4783, 1
      %vm4912 = vcmp.eq.s32.totalorder %v4784, 1
      %vm4913 = vcmp.eq.s32.totalorder %v4785, 1
      %vm4914 = vcmp.eq.s32.totalorder %v4786, 1
      %vm4915 = vcmp.eq.s32.totalorder %v4787, 1
      %vm4916 = vcmp.eq.s32.totalorder %v4788, 1
      %vm4917 = vcmp.eq.s32.totalorder %v4789, 1
      %vm4918 = vcmp.eq.s32.totalorder %v4790, 1
      %vm4919 = vcmp.eq.s32.totalorder %v4791, 1
      %vm4920 = vcmp.eq.s32.totalorder %v4792, 1
      %vm4921 = vcmp.eq.s32.totalorder %v4793, 1
      %vm4922 = vcmp.eq.s32.totalorder %v4794, 1
      %vm4923 = vcmp.eq.s32.totalorder %v4795, 1
      %vm4924 = vcmp.eq.s32.totalorder %v4796, 1
      %vm4925 = vcmp.eq.s32.totalorder %v4797, 1
      %vm4926 = vcmp.eq.s32.totalorder %v4798, 1
      %vm4927 = vcmp.eq.s32.totalorder %v4799, 1
      %vm4928 = vcmp.eq.s32.totalorder %v4800, 1
      %vm4929 = vcmp.eq.s32.totalorder %v4801, 1
      %vm4930 = vcmp.eq.s32.totalorder %v4802, 1
      %vm4931 = vcmp.eq.s32.totalorder %v4803, 1
      %vm4932 = vcmp.eq.s32.totalorder %v4804, 1
      %vm4933 = vcmp.eq.s32.totalorder %v4805, 1
      %vm4934 = vcmp.eq.s32.totalorder %v4806, 1
      %vm4935 = vcmp.eq.s32.totalorder %v4807, 1
      %vm4936 = vcmp.eq.s32.totalorder %v4808, 1
      %vm4937 = vcmp.eq.s32.totalorder %v4809, 1
      %vm4938 = vcmp.eq.s32.totalorder %v4810, 1
      %vm4939 = vcmp.eq.s32.totalorder %v4811, 1
      %vm4940 = vcmp.eq.s32.totalorder %v4812, 1
      %vm4941 = vcmp.eq.s32.totalorder %v4813, 1
      %vm4942 = vcmp.eq.s32.totalorder %v4814, 1
      %vm4943 = vcmp.eq.s32.totalorder %v4815, 1
      %vm4944 = vcmp.eq.s32.totalorder %v4816, 1
      %vm4945 = vcmp.eq.s32.totalorder %v4817, 1
      %vm4946 = vcmp.eq.s32.totalorder %v4818, 1
      %vm4947 = vcmp.eq.s32.totalorder %v4819, 1
      %vm4948 = vcmp.eq.s32.totalorder %v4820, 1
      %vm4949 = vcmp.eq.s32.totalorder %v4821, 1
      %vm4950 = vcmp.eq.s32.totalorder %v4822, 1
      %vm4951 = vcmp.eq.s32.totalorder %v4823, 1
      %vm4952 = vcmp.eq.s32.totalorder %v4824, 1
      %vm4953 = vcmp.eq.s32.totalorder %v4825, 1
      %vm4954 = vcmp.eq.s32.totalorder %v4826, 1
      %vm4955 = vcmp.eq.s32.totalorder %v4827, 1
      %vm4956 = vcmp.eq.s32.totalorder %v4828, 1
      %vm4957 = vcmp.eq.s32.totalorder %v4829, 1
      %vm4958 = vcmp.eq.s32.totalorder %v4830, 1
      %vm4959 = vcmp.eq.s32.totalorder %v4831, 1
      %vm4960 = vcmp.eq.s32.totalorder %v4832, 1
      %vm4961 = vcmp.eq.s32.totalorder %v4833, 1
      %vm4962 = vcmp.eq.s32.totalorder %v4834, 1
      %vm4963 = vcmp.eq.s32.totalorder %v4835, 1
      %vm4964 = vcmp.eq.s32.totalorder %v4836, 1
      %v4965 = vlaneseq
      %v4966 = vshrl.u32 %v4965, 7
      %v4967 = vsub.s32 0, %v4966
      %v4968 = vrot.slane %v3948, %v4967
      %v4969 = vlaneseq
      %v4970 = vshrl.u32 %v4969, 7
      %v4971 = vsub.s32 0, %v4970
      %v4972 = vrot.slane %v3962, %v4971
      %v4973 = vlaneseq
      %v4974 = vshrl.u32 %v4973, 7
      %v4975 = vsub.s32 0, %v4974
      %v4976 = vrot.slane %v3970, %v4975
      %v4977 = vlaneseq
      %v4978 = vshrl.u32 %v4977, 7
      %v4979 = vsub.s32 0, %v4978
      %v4980 = vrot.slane %v3972, %v4979
      %v4981 = vlaneseq
      %v4982 = vshrl.u32 %v4981, 7
      %v4983 = vsub.s32 0, %v4982
      %v4984 = vrot.slane %v3955, %v4983
      %v4985 = vlaneseq
      %v4986 = vshrl.u32 %v4985, 7
      %v4987 = vsub.s32 0, %v4986
      %v4988 = vrot.slane %v3969, %v4987
      %v4989 = vlaneseq
      %v4990 = vshrl.u32 %v4989, 7
      %v4991 = vsub.s32 0, %v4990
      %v4992 = vrot.slane %v3971, %v4991
      %v4993 = vlaneseq
      %v4994 = vshrl.u32 %v4993, 7
      %v4995 = vsub.s32 0, %v4994
      %v4996 = vrot.slane %v3973, %v4995
      %v4997 = vlaneseq
      %v4998 = vshrl.u32 %v4997, 7
      %v4999 = vsub.s32 0, %v4998
      %v5000 = vrot.slane %v3997, %v4999
      %v5001 = vlaneseq
      %v5002 = vshrl.u32 %v5001, 7
      %v5003 = vsub.s32 0, %v5002
      %v5004 = vrot.slane %v4011, %v5003
      %v5005 = vlaneseq
      %v5006 = vshrl.u32 %v5005, 7
      %v5007 = vsub.s32 0, %v5006
      %v5008 = vrot.slane %v4019, %v5007
      %v5009 = vlaneseq
      %v5010 = vshrl.u32 %v5009, 7
      %v5011 = vsub.s32 0, %v5010
      %v5012 = vrot.slane %v4021, %v5011
      %v5013 = vlaneseq
      %v5014 = vshrl.u32 %v5013, 7
      %v5015 = vsub.s32 0, %v5014
      %v5016 = vrot.slane %v4004, %v5015
      %v5017 = vlaneseq
      %v5018 = vshrl.u32 %v5017, 7
      %v5019 = vsub.s32 0, %v5018
      %v5020 = vrot.slane %v4018, %v5019
      %v5021 = vlaneseq
      %v5022 = vshrl.u32 %v5021, 7
      %v5023 = vsub.s32 0, %v5022
      %v5024 = vrot.slane %v4020, %v5023
      %v5025 = vlaneseq
      %v5026 = vshrl.u32 %v5025, 7
      %v5027 = vsub.s32 0, %v5026
      %v5028 = vrot.slane %v4022, %v5027
      %v5029 = vlaneseq
      %v5030 = vshrl.u32 %v5029, 7
      %v5031 = vsub.s32 0, %v5030
      %v5032 = vrot.slane %v4046, %v5031
      %v5033 = vlaneseq
      %v5034 = vshrl.u32 %v5033, 7
      %v5035 = vsub.s32 0, %v5034
      %v5036 = vrot.slane %v4060, %v5035
      %v5037 = vlaneseq
      %v5038 = vshrl.u32 %v5037, 7
      %v5039 = vsub.s32 0, %v5038
      %v5040 = vrot.slane %v4068, %v5039
      %v5041 = vlaneseq
      %v5042 = vshrl.u32 %v5041, 7
      %v5043 = vsub.s32 0, %v5042
      %v5044 = vrot.slane %v4070, %v5043
      %v5045 = vlaneseq
      %v5046 = vshrl.u32 %v5045, 7
      %v5047 = vsub.s32 0, %v5046
      %v5048 = vrot.slane %v4053, %v5047
      %v5049 = vlaneseq
      %v5050 = vshrl.u32 %v5049, 7
      %v5051 = vsub.s32 0, %v5050
      %v5052 = vrot.slane %v4067, %v5051
      %v5053 = vlaneseq
      %v5054 = vshrl.u32 %v5053, 7
      %v5055 = vsub.s32 0, %v5054
      %v5056 = vrot.slane %v4069, %v5055
      %v5057 = vlaneseq
      %v5058 = vshrl.u32 %v5057, 7
      %v5059 = vsub.s32 0, %v5058
      %v5060 = vrot.slane %v4071, %v5059
      %v5061 = vlaneseq
      %v5062 = vshrl.u32 %v5061, 7
      %v5063 = vsub.s32 0, %v5062
      %v5064 = vrot.slane %v4095, %v5063
      %v5065 = vlaneseq
      %v5066 = vshrl.u32 %v5065, 7
      %v5067 = vsub.s32 0, %v5066
      %v5068 = vrot.slane %v4109, %v5067
      %v5069 = vlaneseq
      %v5070 = vshrl.u32 %v5069, 7
      %v5071 = vsub.s32 0, %v5070
      %v5072 = vrot.slane %v4117, %v5071
      %v5073 = vlaneseq
      %v5074 = vshrl.u32 %v5073, 7
      %v5075 = vsub.s32 0, %v5074
      %v5076 = vrot.slane %v4119, %v5075
      %v5077 = vlaneseq
      %v5078 = vshrl.u32 %v5077, 7
      %v5079 = vsub.s32 0, %v5078
      %v5080 = vrot.slane %v4102, %v5079
      %v5081 = vlaneseq
      %v5082 = vshrl.u32 %v5081, 7
      %v5083 = vsub.s32 0, %v5082
      %v5084 = vrot.slane %v4116, %v5083
      %v5085 = vlaneseq
      %v5086 = vshrl.u32 %v5085, 7
      %v5087 = vsub.s32 0, %v5086
      %v5088 = vrot.slane %v4118, %v5087
      %v5089 = vlaneseq
      %v5090 = vshrl.u32 %v5089, 7
      %v5091 = vsub.s32 0, %v5090
      %v5092 = vrot.slane %v4120, %v5091
      %v5093 = vlaneseq
      %v5094 = vshrl.u32 %v5093, 7
      %v5095 = vsub.s32 0, %v5094
      %v5096 = vrot.slane %v4144, %v5095
      %v5097 = vlaneseq
      %v5098 = vshrl.u32 %v5097, 7
      %v5099 = vsub.s32 0, %v5098
      %v5100 = vrot.slane %v4158, %v5099
      %v5101 = vlaneseq
      %v5102 = vshrl.u32 %v5101, 7
      %v5103 = vsub.s32 0, %v5102
      %v5104 = vrot.slane %v4166, %v5103
      %v5105 = vlaneseq
      %v5106 = vshrl.u32 %v5105, 7
      %v5107 = vsub.s32 0, %v5106
      %v5108 = vrot.slane %v4168, %v5107
      %v5109 = vlaneseq
      %v5110 = vshrl.u32 %v5109, 7
      %v5111 = vsub.s32 0, %v5110
      %v5112 = vrot.slane %v4151, %v5111
      %v5113 = vlaneseq
      %v5114 = vshrl.u32 %v5113, 7
      %v5115 = vsub.s32 0, %v5114
      %v5116 = vrot.slane %v4165, %v5115
      %v5117 = vlaneseq
      %v5118 = vshrl.u32 %v5117, 7
      %v5119 = vsub.s32 0, %v5118
      %v5120 = vrot.slane %v4167, %v5119
      %v5121 = vlaneseq
      %v5122 = vshrl.u32 %v5121, 7
      %v5123 = vsub.s32 0, %v5122
      %v5124 = vrot.slane %v4169, %v5123
      %v5125 = vlaneseq
      %v5126 = vshrl.u32 %v5125, 7
      %v5127 = vsub.s32 0, %v5126
      %v5128 = vrot.slane %v4193, %v5127
      %v5129 = vlaneseq
      %v5130 = vshrl.u32 %v5129, 7
      %v5131 = vsub.s32 0, %v5130
      %v5132 = vrot.slane %v4207, %v5131
      %v5133 = vlaneseq
      %v5134 = vshrl.u32 %v5133, 7
      %v5135 = vsub.s32 0, %v5134
      %v5136 = vrot.slane %v4215, %v5135
      %v5137 = vlaneseq
      %v5138 = vshrl.u32 %v5137, 7
      %v5139 = vsub.s32 0, %v5138
      %v5140 = vrot.slane %v4217, %v5139
      %v5141 = vlaneseq
      %v5142 = vshrl.u32 %v5141, 7
      %v5143 = vsub.s32 0, %v5142
      %v5144 = vrot.slane %v4200, %v5143
      %v5145 = vlaneseq
      %v5146 = vshrl.u32 %v5145, 7
      %v5147 = vsub.s32 0, %v5146
      %v5148 = vrot.slane %v4214, %v5147
      %v5149 = vlaneseq
      %v5150 = vshrl.u32 %v5149, 7
      %v5151 = vsub.s32 0, %v5150
      %v5152 = vrot.slane %v4216, %v5151
      %v5153 = vlaneseq
      %v5154 = vshrl.u32 %v5153, 7
      %v5155 = vsub.s32 0, %v5154
      %v5156 = vrot.slane %v4218, %v5155
      %v5157 = vlaneseq
      %v5158 = vshrl.u32 %v5157, 7
      %v5159 = vsub.s32 0, %v5158
      %v5160 = vrot.slane %v4242, %v5159
      %v5161 = vlaneseq
      %v5162 = vshrl.u32 %v5161, 7
      %v5163 = vsub.s32 0, %v5162
      %v5164 = vrot.slane %v4256, %v5163
      %v5165 = vlaneseq
      %v5166 = vshrl.u32 %v5165, 7
      %v5167 = vsub.s32 0, %v5166
      %v5168 = vrot.slane %v4264, %v5167
      %v5169 = vlaneseq
      %v5170 = vshrl.u32 %v5169, 7
      %v5171 = vsub.s32 0, %v5170
      %v5172 = vrot.slane %v4266, %v5171
      %v5173 = vlaneseq
      %v5174 = vshrl.u32 %v5173, 7
      %v5175 = vsub.s32 0, %v5174
      %v5176 = vrot.slane %v4249, %v5175
      %v5177 = vlaneseq
      %v5178 = vshrl.u32 %v5177, 7
      %v5179 = vsub.s32 0, %v5178
      %v5180 = vrot.slane %v4263, %v5179
      %v5181 = vlaneseq
      %v5182 = vshrl.u32 %v5181, 7
      %v5183 = vsub.s32 0, %v5182
      %v5184 = vrot.slane %v4265, %v5183
      %v5185 = vlaneseq
      %v5186 = vshrl.u32 %v5185, 7
      %v5187 = vsub.s32 0, %v5186
      %v5188 = vrot.slane %v4267, %v5187
      %v5189 = vlaneseq
      %v5190 = vshrl.u32 %v5189, 7
      %v5191 = vsub.s32 0, %v5190
      %v5192 = vrot.slane %v4291, %v5191
      %v5193 = vlaneseq
      %v5194 = vshrl.u32 %v5193, 7
      %v5195 = vsub.s32 0, %v5194
      %v5196 = vrot.slane %v4305, %v5195
      %v5197 = vlaneseq
      %v5198 = vshrl.u32 %v5197, 7
      %v5199 = vsub.s32 0, %v5198
      %v5200 = vrot.slane %v4313, %v5199
      %v5201 = vlaneseq
      %v5202 = vshrl.u32 %v5201, 7
      %v5203 = vsub.s32 0, %v5202
      %v5204 = vrot.slane %v4315, %v5203
      %v5205 = vlaneseq
      %v5206 = vshrl.u32 %v5205, 7
      %v5207 = vsub.s32 0, %v5206
      %v5208 = vrot.slane %v4298, %v5207
      %v5209 = vlaneseq
      %v5210 = vshrl.u32 %v5209, 7
      %v5211 = vsub.s32 0, %v5210
      %v5212 = vrot.slane %v4312, %v5211
      %v5213 = vlaneseq
      %v5214 = vshrl.u32 %v5213, 7
      %v5215 = vsub.s32 0, %v5214
      %v5216 = vrot.slane %v4314, %v5215
      %v5217 = vlaneseq
      %v5218 = vshrl.u32 %v5217, 7
      %v5219 = vsub.s32 0, %v5218
      %v5220 = vrot.slane %v4316, %v5219
      %v5221 = vlaneseq
      %v5222 = vshrl.u32 %v5221, 7
      %v5223 = vsub.s32 0, %v5222
      %v5224 = vrot.slane %v4340, %v5223
      %v5225 = vlaneseq
      %v5226 = vshrl.u32 %v5225, 7
      %v5227 = vsub.s32 0, %v5226
      %v5228 = vrot.slane %v4354, %v5227
      %v5229 = vlaneseq
      %v5230 = vshrl.u32 %v5229, 7
      %v5231 = vsub.s32 0, %v5230
      %v5232 = vrot.slane %v4362, %v5231
      %v5233 = vlaneseq
      %v5234 = vshrl.u32 %v5233, 7
      %v5235 = vsub.s32 0, %v5234
      %v5236 = vrot.slane %v4364, %v5235
      %v5237 = vlaneseq
      %v5238 = vshrl.u32 %v5237, 7
      %v5239 = vsub.s32 0, %v5238
      %v5240 = vrot.slane %v4347, %v5239
      %v5241 = vlaneseq
      %v5242 = vshrl.u32 %v5241, 7
      %v5243 = vsub.s32 0, %v5242
      %v5244 = vrot.slane %v4361, %v5243
      %v5245 = vlaneseq
      %v5246 = vshrl.u32 %v5245, 7
      %v5247 = vsub.s32 0, %v5246
      %v5248 = vrot.slane %v4363, %v5247
      %v5249 = vlaneseq
      %v5250 = vshrl.u32 %v5249, 7
      %v5251 = vsub.s32 0, %v5250
      %v5252 = vrot.slane %v4365, %v5251
      %v5253 = vlaneseq
      %v5254 = vshrl.u32 %v5253, 7
      %v5255 = vsub.s32 0, %v5254
      %v5256 = vrot.slane %v4389, %v5255
      %v5257 = vlaneseq
      %v5258 = vshrl.u32 %v5257, 7
      %v5259 = vsub.s32 0, %v5258
      %v5260 = vrot.slane %v4403, %v5259
      %v5261 = vlaneseq
      %v5262 = vshrl.u32 %v5261, 7
      %v5263 = vsub.s32 0, %v5262
      %v5264 = vrot.slane %v4411, %v5263
      %v5265 = vlaneseq
      %v5266 = vshrl.u32 %v5265, 7
      %v5267 = vsub.s32 0, %v5266
      %v5268 = vrot.slane %v4413, %v5267
      %v5269 = vlaneseq
      %v5270 = vshrl.u32 %v5269, 7
      %v5271 = vsub.s32 0, %v5270
      %v5272 = vrot.slane %v4396, %v5271
      %v5273 = vlaneseq
      %v5274 = vshrl.u32 %v5273, 7
      %v5275 = vsub.s32 0, %v5274
      %v5276 = vrot.slane %v4410, %v5275
      %v5277 = vlaneseq
      %v5278 = vshrl.u32 %v5277, 7
      %v5279 = vsub.s32 0, %v5278
      %v5280 = vrot.slane %v4412, %v5279
      %v5281 = vlaneseq
      %v5282 = vshrl.u32 %v5281, 7
      %v5283 = vsub.s32 0, %v5282
      %v5284 = vrot.slane %v4414, %v5283
      %v5285 = vlaneseq
      %v5286 = vshrl.u32 %v5285, 7
      %v5287 = vsub.s32 0, %v5286
      %v5288 = vrot.slane %v4438, %v5287
      %v5289 = vlaneseq
      %v5290 = vshrl.u32 %v5289, 7
      %v5291 = vsub.s32 0, %v5290
      %v5292 = vrot.slane %v4452, %v5291
      %v5293 = vlaneseq
      %v5294 = vshrl.u32 %v5293, 7
      %v5295 = vsub.s32 0, %v5294
      %v5296 = vrot.slane %v4460, %v5295
      %v5297 = vlaneseq
      %v5298 = vshrl.u32 %v5297, 7
      %v5299 = vsub.s32 0, %v5298
      %v5300 = vrot.slane %v4462, %v5299
      %v5301 = vlaneseq
      %v5302 = vshrl.u32 %v5301, 7
      %v5303 = vsub.s32 0, %v5302
      %v5304 = vrot.slane %v4445, %v5303
      %v5305 = vlaneseq
      %v5306 = vshrl.u32 %v5305, 7
      %v5307 = vsub.s32 0, %v5306
      %v5308 = vrot.slane %v4459, %v5307
      %v5309 = vlaneseq
      %v5310 = vshrl.u32 %v5309, 7
      %v5311 = vsub.s32 0, %v5310
      %v5312 = vrot.slane %v4461, %v5311
      %v5313 = vlaneseq
      %v5314 = vshrl.u32 %v5313, 7
      %v5315 = vsub.s32 0, %v5314
      %v5316 = vrot.slane %v4463, %v5315
      %v5317 = vlaneseq
      %v5318 = vshrl.u32 %v5317, 7
      %v5319 = vsub.s32 0, %v5318
      %v5320 = vrot.slane %v4487, %v5319
      %v5321 = vlaneseq
      %v5322 = vshrl.u32 %v5321, 7
      %v5323 = vsub.s32 0, %v5322
      %v5324 = vrot.slane %v4501, %v5323
      %v5325 = vlaneseq
      %v5326 = vshrl.u32 %v5325, 7
      %v5327 = vsub.s32 0, %v5326
      %v5328 = vrot.slane %v4509, %v5327
      %v5329 = vlaneseq
      %v5330 = vshrl.u32 %v5329, 7
      %v5331 = vsub.s32 0, %v5330
      %v5332 = vrot.slane %v4511, %v5331
      %v5333 = vlaneseq
      %v5334 = vshrl.u32 %v5333, 7
      %v5335 = vsub.s32 0, %v5334
      %v5336 = vrot.slane %v4494, %v5335
      %v5337 = vlaneseq
      %v5338 = vshrl.u32 %v5337, 7
      %v5339 = vsub.s32 0, %v5338
      %v5340 = vrot.slane %v4508, %v5339
      %v5341 = vlaneseq
      %v5342 = vshrl.u32 %v5341, 7
      %v5343 = vsub.s32 0, %v5342
      %v5344 = vrot.slane %v4510, %v5343
      %v5345 = vlaneseq
      %v5346 = vshrl.u32 %v5345, 7
      %v5347 = vsub.s32 0, %v5346
      %v5348 = vrot.slane %v4512, %v5347
      %v5349 = vlaneseq
      %v5350 = vshrl.u32 %v5349, 7
      %v5351 = vsub.s32 0, %v5350
      %v5352 = vrot.slane %v4536, %v5351
      %v5353 = vlaneseq
      %v5354 = vshrl.u32 %v5353, 7
      %v5355 = vsub.s32 0, %v5354
      %v5356 = vrot.slane %v4550, %v5355
      %v5357 = vlaneseq
      %v5358 = vshrl.u32 %v5357, 7
      %v5359 = vsub.s32 0, %v5358
      %v5360 = vrot.slane %v4558, %v5359
      %v5361 = vlaneseq
      %v5362 = vshrl.u32 %v5361, 7
      %v5363 = vsub.s32 0, %v5362
      %v5364 = vrot.slane %v4560, %v5363
      %v5365 = vlaneseq
      %v5366 = vshrl.u32 %v5365, 7
      %v5367 = vsub.s32 0, %v5366
      %v5368 = vrot.slane %v4543, %v5367
      %v5369 = vlaneseq
      %v5370 = vshrl.u32 %v5369, 7
      %v5371 = vsub.s32 0, %v5370
      %v5372 = vrot.slane %v4557, %v5371
      %v5373 = vlaneseq
      %v5374 = vshrl.u32 %v5373, 7
      %v5375 = vsub.s32 0, %v5374
      %v5376 = vrot.slane %v4559, %v5375
      %v5377 = vlaneseq
      %v5378 = vshrl.u32 %v5377, 7
      %v5379 = vsub.s32 0, %v5378
      %v5380 = vrot.slane %v4561, %v5379
      %v5381 = vlaneseq
      %v5382 = vshrl.u32 %v5381, 7
      %v5383 = vsub.s32 0, %v5382
      %v5384 = vrot.slane %v4585, %v5383
      %v5385 = vlaneseq
      %v5386 = vshrl.u32 %v5385, 7
      %v5387 = vsub.s32 0, %v5386
      %v5388 = vrot.slane %v4599, %v5387
      %v5389 = vlaneseq
      %v5390 = vshrl.u32 %v5389, 7
      %v5391 = vsub.s32 0, %v5390
      %v5392 = vrot.slane %v4607, %v5391
      %v5393 = vlaneseq
      %v5394 = vshrl.u32 %v5393, 7
      %v5395 = vsub.s32 0, %v5394
      %v5396 = vrot.slane %v4609, %v5395
      %v5397 = vlaneseq
      %v5398 = vshrl.u32 %v5397, 7
      %v5399 = vsub.s32 0, %v5398
      %v5400 = vrot.slane %v4592, %v5399
      %v5401 = vlaneseq
      %v5402 = vshrl.u32 %v5401, 7
      %v5403 = vsub.s32 0, %v5402
      %v5404 = vrot.slane %v4606, %v5403
      %v5405 = vlaneseq
      %v5406 = vshrl.u32 %v5405, 7
      %v5407 = vsub.s32 0, %v5406
      %v5408 = vrot.slane %v4608, %v5407
      %v5409 = vlaneseq
      %v5410 = vshrl.u32 %v5409, 7
      %v5411 = vsub.s32 0, %v5410
      %v5412 = vrot.slane %v4610, %v5411
      %v5413 = vlaneseq
      %v5414 = vshrl.u32 %v5413, 7
      %v5415 = vsub.s32 0, %v5414
      %v5416 = vrot.slane %v4634, %v5415
      %v5417 = vlaneseq
      %v5418 = vshrl.u32 %v5417, 7
      %v5419 = vsub.s32 0, %v5418
      %v5420 = vrot.slane %v4648, %v5419
      %v5421 = vlaneseq
      %v5422 = vshrl.u32 %v5421, 7
      %v5423 = vsub.s32 0, %v5422
      %v5424 = vrot.slane %v4656, %v5423
      %v5425 = vlaneseq
      %v5426 = vshrl.u32 %v5425, 7
      %v5427 = vsub.s32 0, %v5426
      %v5428 = vrot.slane %v4658, %v5427
      %v5429 = vlaneseq
      %v5430 = vshrl.u32 %v5429, 7
      %v5431 = vsub.s32 0, %v5430
      %v5432 = vrot.slane %v4641, %v5431
      %v5433 = vlaneseq
      %v5434 = vshrl.u32 %v5433, 7
      %v5435 = vsub.s32 0, %v5434
      %v5436 = vrot.slane %v4655, %v5435
      %v5437 = vlaneseq
      %v5438 = vshrl.u32 %v5437, 7
      %v5439 = vsub.s32 0, %v5438
      %v5440 = vrot.slane %v4657, %v5439
      %v5441 = vlaneseq
      %v5442 = vshrl.u32 %v5441, 7
      %v5443 = vsub.s32 0, %v5442
      %v5444 = vrot.slane %v4659, %v5443
      %v5445 = vlaneseq
      %v5446 = vshrl.u32 %v5445, 7
      %v5447 = vsub.s32 0, %v5446
      %v5448 = vrot.slane %v4683, %v5447
      %v5449 = vlaneseq
      %v5450 = vshrl.u32 %v5449, 7
      %v5451 = vsub.s32 0, %v5450
      %v5452 = vrot.slane %v4697, %v5451
      %v5453 = vlaneseq
      %v5454 = vshrl.u32 %v5453, 7
      %v5455 = vsub.s32 0, %v5454
      %v5456 = vrot.slane %v4705, %v5455
      %v5457 = vlaneseq
      %v5458 = vshrl.u32 %v5457, 7
      %v5459 = vsub.s32 0, %v5458
      %v5460 = vrot.slane %v4707, %v5459
      %v5461 = vlaneseq
      %v5462 = vshrl.u32 %v5461, 7
      %v5463 = vsub.s32 0, %v5462
      %v5464 = vrot.slane %v4690, %v5463
      %v5465 = vlaneseq
      %v5466 = vshrl.u32 %v5465, 7
      %v5467 = vsub.s32 0, %v5466
      %v5468 = vrot.slane %v4704, %v5467
      %v5469 = vlaneseq
      %v5470 = vshrl.u32 %v5469, 7
      %v5471 = vsub.s32 0, %v5470
      %v5472 = vrot.slane %v4706, %v5471
      %v5473 = vlaneseq
      %v5474 = vshrl.u32 %v5473, 7
      %v5475 = vsub.s32 0, %v5474
      %v5476 = vrot.slane %v4708, %v5475
      %v5605 = vsel %vm4837, %v4968, -1.0
      %v5606 = vsel %vm4838, %v4972, -1.0
      %v5607 = vsel %vm4839, %v4976, -1.0
      %v5608 = vsel %vm4840, %v4980, -1.0
      %v5609 = vsel %vm4841, %v4984, -1.0
      %v5610 = vsel %vm4842, %v4988, -1.0
      %v5611 = vsel %vm4843, %v4992, -1.0
      %v5612 = vsel %vm4844, %v4996, -1.0
      %v5613 = vsel %vm4845, %v5000, -1.0
      %v5614 = vsel %vm4846, %v5004, -1.0
      %v5615 = vsel %vm4847, %v5008, -1.0
      %v5616 = vsel %vm4848, %v5012, -1.0
      %v5617 = vsel %vm4849, %v5016, -1.0
      %v5618 = vsel %vm4850, %v5020, -1.0
      %v5619 = vsel %vm4851, %v5024, -1.0
      %v5620 = vsel %vm4852, %v5028, -1.0
      %v5621 = vsel %vm4853, %v5032, -1.0
      %v5622 = vsel %vm4854, %v5036, -1.0
      %v5623 = vsel %vm4855, %v5040, -1.0
      %v5624 = vsel %vm4856, %v5044, -1.0
      %v5625 = vsel %vm4857, %v5048, -1.0
      %v5626 = vsel %vm4858, %v5052, -1.0
      %v5627 = vsel %vm4859, %v5056, -1.0
      %v5628 = vsel %vm4860, %v5060, -1.0
      %v5629 = vsel %vm4861, %v5064, -1.0
      %v5630 = vsel %vm4862, %v5068, -1.0
      %v5631 = vsel %vm4863, %v5072, -1.0
      %v5632 = vsel %vm4864, %v5076, -1.0
      %v5633 = vsel %vm4865, %v5080, -1.0
      %v5634 = vsel %vm4866, %v5084, -1.0
      %v5635 = vsel %vm4867, %v5088, -1.0
      %v5636 = vsel %vm4868, %v5092, -1.0
      %v5637 = vsel %vm4869, %v5096, -1.0
      %v5638 = vsel %vm4870, %v5100, -1.0
      %v5639 = vsel %vm4871, %v5104, -1.0
      %v5640 = vsel %vm4872, %v5108, -1.0
      %v5641 = vsel %vm4873, %v5112, -1.0
      %v5642 = vsel %vm4874, %v5116, -1.0
      %v5643 = vsel %vm4875, %v5120, -1.0
      %v5644 = vsel %vm4876, %v5124, -1.0
      %v5645 = vsel %vm4877, %v5128, -1.0
      %v5646 = vsel %vm4878, %v5132, -1.0
      %v5647 = vsel %vm4879, %v5136, -1.0
      %v5648 = vsel %vm4880, %v5140, -1.0
      %v5649 = vsel %vm4881, %v5144, -1.0
      %v5650 = vsel %vm4882, %v5148, -1.0
      %v5651 = vsel %vm4883, %v5152, -1.0
      %v5652 = vsel %vm4884, %v5156, -1.0
      %v5653 = vsel %vm4885, %v5160, -1.0
      %v5654 = vsel %vm4886, %v5164, -1.0
      %v5655 = vsel %vm4887, %v5168, -1.0
      %v5656 = vsel %vm4888, %v5172, -1.0
      %v5657 = vsel %vm4889, %v5176, -1.0
      %v5658 = vsel %vm4890, %v5180, -1.0
      %v5659 = vsel %vm4891, %v5184, -1.0
      %v5660 = vsel %vm4892, %v5188, -1.0
      %v5661 = vsel %vm4893, %v5192, -1.0
      %v5662 = vsel %vm4894, %v5196, -1.0
      %v5663 = vsel %vm4895, %v5200, -1.0
      %v5664 = vsel %vm4896, %v5204, -1.0
      %v5665 = vsel %vm4897, %v5208, -1.0
      %v5666 = vsel %vm4898, %v5212, -1.0
      %v5667 = vsel %vm4899, %v5216, -1.0
      %v5668 = vsel %vm4900, %v5220, -1.0
      %v5669 = vsel %vm4901, %v5224, -1.0
      %v5670 = vsel %vm4902, %v5228, -1.0
      %v5671 = vsel %vm4903, %v5232, -1.0
      %v5672 = vsel %vm4904, %v5236, -1.0
      %v5673 = vsel %vm4905, %v5240, -1.0
      %v5674 = vsel %vm4906, %v5244, -1.0
      %v5675 = vsel %vm4907, %v5248, -1.0
      %v5676 = vsel %vm4908, %v5252, -1.0
      %v5677 = vsel %vm4909, %v5256, -1.0
      %v5678 = vsel %vm4910, %v5260, -1.0
      %v5679 = vsel %vm4911, %v5264, -1.0
      %v5680 = vsel %vm4912, %v5268, -1.0
      %v5681 = vsel %vm4913, %v5272, -1.0
      %v5682 = vsel %vm4914, %v5276, -1.0
      %v5683 = vsel %vm4915, %v5280, -1.0
      %v5684 = vsel %vm4916, %v5284, -1.0
      %v5685 = vsel %vm4917, %v5288, -1.0
      %v5686 = vsel %vm4918, %v5292, -1.0
      %v5687 = vsel %vm4919, %v5296, -1.0
      %v5688 = vsel %vm4920, %v5300, -1.0
      %v5689 = vsel %vm4921, %v5304, -1.0
      %v5690 = vsel %vm4922, %v5308, -1.0
      %v5691 = vsel %vm4923, %v5312, -1.0
      %v5692 = vsel %vm4924, %v5316, -1.0
      %v5693 = vsel %vm4925, %v5320, -1.0
      %v5694 = vsel %vm4926, %v5324, -1.0
      %v5695 = vsel %vm4927, %v5328, -1.0
      %v5696 = vsel %vm4928, %v5332, -1.0
      %v5697 = vsel %vm4929, %v5336, -1.0
      %v5698 = vsel %vm4930, %v5340, -1.0
      %v5699 = vsel %vm4931, %v5344, -1.0
      %v5700 = vsel %vm4932, %v5348, -1.0
      %v5701 = vsel %vm4933, %v5352, -1.0
      %v5702 = vsel %vm4934, %v5356, -1.0
      %v5703 = vsel %vm4935, %v5360, -1.0
      %v5704 = vsel %vm4936, %v5364, -1.0
      %v5705 = vsel %vm4937, %v5368, -1.0
      %v5706 = vsel %vm4938, %v5372, -1.0
      %v5707 = vsel %vm4939, %v5376, -1.0
      %v5708 = vsel %vm4940, %v5380, -1.0
      %v5709 = vsel %vm4941, %v5384, -1.0
      %v5710 = vsel %vm4942, %v5388, -1.0
      %v5711 = vsel %vm4943, %v5392, -1.0
      %v5712 = vsel %vm4944, %v5396, -1.0
      %v5713 = vsel %vm4945, %v5400, -1.0
      %v5714 = vsel %vm4946, %v5404, -1.0
      %v5715 = vsel %vm4947, %v5408, -1.0
      %v5716 = vsel %vm4948, %v5412, -1.0
      %v5717 = vsel %vm4949, %v5416, -1.0
      %v5718 = vsel %vm4950, %v5420, -1.0
      %v5719 = vsel %vm4951, %v5424, -1.0
      %v5720 = vsel %vm4952, %v5428, -1.0
      %v5721 = vsel %vm4953, %v5432, -1.0
      %v5722 = vsel %vm4954, %v5436, -1.0
      %v5723 = vsel %vm4955, %v5440, -1.0
      %v5724 = vsel %vm4956, %v5444, -1.0
      %v5725 = vsel %vm4957, %v5448, -1.0
      %v5726 = vsel %vm4958, %v5452, -1.0
      %v5727 = vsel %vm4959, %v5456, -1.0
      %v5728 = vsel %vm4960, %v5460, -1.0
      %v5729 = vsel %vm4961, %v5464, -1.0
      %v5730 = vsel %vm4962, %v5468, -1.0
      %v5731 = vsel %vm4963, %v5472, -1.0
      %v5732 = vsel %vm4964, %v5476, -1.0
      %vm5733 = vcmask 123904
      %v5734 = vsel %vm5733, %v5605, -inf
      %v5735 = vsel %vm5733, %v5606, -inf
      %v5736 = vsel %vm5733, %v5607, -inf
      %v5737 = vsel %vm5733, %v5608, -inf
      %v5738 = vsel %vm5733, %v5609, -inf
      %v5739 = vmax.f32 %v5734, %v5738
      %v5740 = vsel %vm5733, %v5610, -inf
      %v5741 = vmax.f32 %v5735, %v5740
      %v5742 = vsel %vm5733, %v5611, -inf
      %v5743 = vmax.f32 %v5736, %v5742
      %v5744 = vsel %vm5733, %v5612, -inf
      %v5745 = vmax.f32 %v5737, %v5744
      %v5746 = vsel %vm5733, %v5613, -inf
      %v5747 = vmax.f32 %v5739, %v5746
      %v5748 = vsel %vm5733, %v5614, -inf
      %v5749 = vmax.f32 %v5741, %v5748
      %v5750 = vsel %vm5733, %v5615, -inf
      %v5751 = vmax.f32 %v5743, %v5750
      %v5752 = vsel %vm5733, %v5616, -inf
      %v5753 = vmax.f32 %v5745, %v5752
      %v5754 = vsel %vm5733, %v5617, -inf
      %v5755 = vmax.f32 %v5747, %v5754
      %v5756 = vsel %vm5733, %v5618, -inf
      %v5757 = vmax.f32 %v5749, %v5756
      %v5758 = vsel %vm5733, %v5619, -inf
      %v5759 = vmax.f32 %v5751, %v5758
      %v5760 = vsel %vm5733, %v5620, -inf
      %v5761 = vmax.f32 %v5753, %v5760
      %v5762 = vsel %vm5733, %v5621, -inf
      %v5763 = vmax.f32 %v5755, %v5762
      %v5764 = vsel %vm5733, %v5622, -inf
      %v5765 = vmax.f32 %v5757, %v5764
      %v5766 = vsel %vm5733, %v5623, -inf
      %v5767 = vmax.f32 %v5759, %v5766
      %v5768 = vsel %vm5733, %v5624, -inf
      %v5769 = vmax.f32 %v5761, %v5768
      %v5770 = vsel %vm5733, %v5625, -inf
      %v5771 = vmax.f32 %v5763, %v5770
      %v5772 = vsel %vm5733, %v5626, -inf
      %v5773 = vmax.f32 %v5765, %v5772
      %v5774 = vsel %vm5733, %v5627, -inf
      %v5775 = vmax.f32 %v5767, %v5774
      %v5776 = vsel %vm5733, %v5628, -inf
      %v5777 = vmax.f32 %v5769, %v5776
      %v5778 = vsel %vm5733, %v5629, -inf
      %v5779 = vmax.f32 %v5771, %v5778
      %v5780 = vsel %vm5733, %v5630, -inf
      %v5781 = vmax.f32 %v5773, %v5780
      %v5782 = vsel %vm5733, %v5631, -inf
      %v5783 = vmax.f32 %v5775, %v5782
      %v5784 = vsel %vm5733, %v5632, -inf
      %v5785 = vmax.f32 %v5777, %v5784
      %v5786 = vsel %vm5733, %v5633, -inf
      %v5787 = vmax.f32 %v5779, %v5786
      %v5788 = vsel %vm5733, %v5634, -inf
      %v5789 = vmax.f32 %v5781, %v5788
      %v5790 = vsel %vm5733, %v5635, -inf
      %v5791 = vmax.f32 %v5783, %v5790
      %v5792 = vsel %vm5733, %v5636, -inf
      %v5793 = vmax.f32 %v5785, %v5792
      %v5794 = vsel %vm5733, %v5637, -inf
      %v5795 = vmax.f32 %v5787, %v5794
      %v5796 = vsel %vm5733, %v5638, -inf
      %v5797 = vmax.f32 %v5789, %v5796
      %v5798 = vsel %vm5733, %v5639, -inf
      %v5799 = vmax.f32 %v5791, %v5798
      %v5800 = vsel %vm5733, %v5640, -inf
      %v5801 = vmax.f32 %v5793, %v5800
      %v5802 = vsel %vm5733, %v5641, -inf
      %v5803 = vmax.f32 %v5795, %v5802
      %v5804 = vsel %vm5733, %v5642, -inf
      %v5805 = vmax.f32 %v5797, %v5804
      %v5806 = vsel %vm5733, %v5643, -inf
      %v5807 = vmax.f32 %v5799, %v5806
      %v5808 = vsel %vm5733, %v5644, -inf
      %v5809 = vmax.f32 %v5801, %v5808
      %v5810 = vsel %vm5733, %v5645, -inf
      %v5811 = vmax.f32 %v5803, %v5810
      %v5812 = vsel %vm5733, %v5646, -inf
      %v5813 = vmax.f32 %v5805, %v5812
      %v5814 = vsel %vm5733, %v5647, -inf
      %v5815 = vmax.f32 %v5807, %v5814
      %v5816 = vsel %vm5733, %v5648, -inf
      %v5817 = vmax.f32 %v5809, %v5816
      %v5818 = vsel %vm5733, %v5649, -inf
      %v5819 = vmax.f32 %v5811, %v5818
      %v5820 = vsel %vm5733, %v5650, -inf
      %v5821 = vmax.f32 %v5813, %v5820
      %v5822 = vsel %vm5733, %v5651, -inf
      %v5823 = vmax.f32 %v5815, %v5822
      %v5824 = vsel %vm5733, %v5652, -inf
      %v5825 = vmax.f32 %v5817, %v5824
      %v5826 = vsel %vm5733, %v5653, -inf
      %v5827 = vmax.f32 %v5819, %v5826
      %v5828 = vsel %vm5733, %v5654, -inf
      %v5829 = vmax.f32 %v5821, %v5828
      %v5830 = vsel %vm5733, %v5655, -inf
      %v5831 = vmax.f32 %v5823, %v5830
      %v5832 = vsel %vm5733, %v5656, -inf
      %v5833 = vmax.f32 %v5825, %v5832
      %v5834 = vsel %vm5733, %v5657, -inf
      %v5835 = vmax.f32 %v5827, %v5834
      %v5836 = vsel %vm5733, %v5658, -inf
      %v5837 = vmax.f32 %v5829, %v5836
      %v5838 = vsel %vm5733, %v5659, -inf
      %v5839 = vmax.f32 %v5831, %v5838
      %v5840 = vsel %vm5733, %v5660, -inf
      %v5841 = vmax.f32 %v5833, %v5840
      %v5842 = vsel %vm5733, %v5661, -inf
      %v5843 = vmax.f32 %v5835, %v5842
      %v5844 = vsel %vm5733, %v5662, -inf
      %v5845 = vmax.f32 %v5837, %v5844
      %v5846 = vsel %vm5733, %v5663, -inf
      %v5847 = vmax.f32 %v5839, %v5846
      %v5848 = vsel %vm5733, %v5664, -inf
      %v5849 = vmax.f32 %v5841, %v5848
      %v5850 = vsel %vm5733, %v5665, -inf
      %v5851 = vmax.f32 %v5843, %v5850
      %v5852 = vsel %vm5733, %v5666, -inf
      %v5853 = vmax.f32 %v5845, %v5852
      %v5854 = vsel %vm5733, %v5667, -inf
      %v5855 = vmax.f32 %v5847, %v5854
      %v5856 = vsel %vm5733, %v5668, -inf
      %v5857 = vmax.f32 %v5849, %v5856
      %v5858 = vsel %vm5733, %v5669, -inf
      %v5859 = vmax.f32 %v5851, %v5858
      %v5860 = vsel %vm5733, %v5670, -inf
      %v5861 = vmax.f32 %v5853, %v5860
      %v5862 = vsel %vm5733, %v5671, -inf
      %v5863 = vmax.f32 %v5855, %v5862
      %v5864 = vsel %vm5733, %v5672, -inf
      %v5865 = vmax.f32 %v5857, %v5864
      %v5866 = vsel %vm5733, %v5673, -inf
      %v5867 = vmax.f32 %v5859, %v5866
      %v5868 = vsel %vm5733, %v5674, -inf
      %v5869 = vmax.f32 %v5861, %v5868
      %v5870 = vsel %vm5733, %v5675, -inf
      %v5871 = vmax.f32 %v5863, %v5870
      %v5872 = vsel %vm5733, %v5676, -inf
      %v5873 = vmax.f32 %v5865, %v5872
      %v5874 = vsel %vm5733, %v5677, -inf
      %v5875 = vmax.f32 %v5867, %v5874
      %v5876 = vsel %vm5733, %v5678, -inf
      %v5877 = vmax.f32 %v5869, %v5876
      %v5878 = vsel %vm5733, %v5679, -inf
      %v5879 = vmax.f32 %v5871, %v5878
      %v5880 = vsel %vm5733, %v5680, -inf
      %v5881 = vmax.f32 %v5873, %v5880
      %v5882 = vsel %vm5733, %v5681, -inf
      %v5883 = vmax.f32 %v5875, %v5882
      %v5884 = vsel %vm5733, %v5682, -inf
      %v5885 = vmax.f32 %v5877, %v5884
      %v5886 = vsel %vm5733, %v5683, -inf
      %v5887 = vmax.f32 %v5879, %v5886
      %v5888 = vsel %vm5733, %v5684, -inf
      %v5889 = vmax.f32 %v5881, %v5888
      %v5890 = vsel %vm5733, %v5685, -inf
      %v5891 = vmax.f32 %v5883, %v5890
      %v5892 = vsel %vm5733, %v5686, -inf
      %v5893 = vmax.f32 %v5885, %v5892
      %v5894 = vsel %vm5733, %v5687, -inf
      %v5895 = vmax.f32 %v5887, %v5894
      %v5896 = vsel %vm5733, %v5688, -inf
      %v5897 = vmax.f32 %v5889, %v5896
      %v5898 = vsel %vm5733, %v5689, -inf
      %v5899 = vmax.f32 %v5891, %v5898
      %v5900 = vsel %vm5733, %v5690, -inf
      %v5901 = vmax.f32 %v5893, %v5900
      %v5902 = vsel %vm5733, %v5691, -inf
      %v5903 = vmax.f32 %v5895, %v5902
      %v5904 = vsel %vm5733, %v5692, -inf
      %v5905 = vmax.f32 %v5897, %v5904
      %v5906 = vsel %vm5733, %v5693, -inf
      %v5907 = vmax.f32 %v5899, %v5906
      %v5908 = vsel %vm5733, %v5694, -inf
      %v5909 = vmax.f32 %v5901, %v5908
      %v5910 = vsel %vm5733, %v5695, -inf
      %v5911 = vmax.f32 %v5903, %v5910
      %v5912 = vsel %vm5733, %v5696, -inf
      %v5913 = vmax.f32 %v5905, %v5912
      %v5914 = vsel %vm5733, %v5697, -inf
      %v5915 = vmax.f32 %v5907, %v5914
      %v5916 = vsel %vm5733, %v5698, -inf
      %v5917 = vmax.f32 %v5909, %v5916
      %v5918 = vsel %vm5733, %v5699, -inf
      %v5919 = vmax.f32 %v5911, %v5918
      %v5920 = vsel %vm5733, %v5700, -inf
      %v5921 = vmax.f32 %v5913, %v5920
      %v5922 = vsel %vm5733, %v5701, -inf
      %v5923 = vmax.f32 %v5915, %v5922
      %v5924 = vsel %vm5733, %v5702, -inf
      %v5925 = vmax.f32 %v5917, %v5924
      %v5926 = vsel %vm5733, %v5703, -inf
      %v5927 = vmax.f32 %v5919, %v5926
      %v5928 = vsel %vm5733, %v5704, -inf
      %v5929 = vmax.f32 %v5921, %v5928
      %v5930 = vsel %vm5733, %v5705, -inf
      %v5931 = vmax.f32 %v5923, %v5930
      %v5932 = vsel %vm5733, %v5706, -inf
      %v5933 = vmax.f32 %v5925, %v5932
      %v5934 = vsel %vm5733, %v5707, -inf
      %v5935 = vmax.f32 %v5927, %v5934
      %v5936 = vsel %vm5733, %v5708, -inf
      %v5937 = vmax.f32 %v5929, %v5936
      %v5938 = vsel %vm5733, %v5709, -inf
      %v5939 = vmax.f32 %v5931, %v5938
      %v5940 = vsel %vm5733, %v5710, -inf
      %v5941 = vmax.f32 %v5933, %v5940
      %v5942 = vsel %vm5733, %v5711, -inf
      %v5943 = vmax.f32 %v5935, %v5942
      %v5944 = vsel %vm5733, %v5712, -inf
      %v5945 = vmax.f32 %v5937, %v5944
      %v5946 = vsel %vm5733, %v5713, -inf
      %v5947 = vmax.f32 %v5939, %v5946
      %v5948 = vsel %vm5733, %v5714, -inf
      %v5949 = vmax.f32 %v5941, %v5948
      %v5950 = vsel %vm5733, %v5715, -inf
      %v5951 = vmax.f32 %v5943, %v5950
      %v5952 = vsel %vm5733, %v5716, -inf
      %v5953 = vmax.f32 %v5945, %v5952
      %v5954 = vsel %vm5733, %v5717, -inf
      %v5955 = vmax.f32 %v5947, %v5954
      %v5956 = vsel %vm5733, %v5718, -inf
      %v5957 = vmax.f32 %v5949, %v5956
      %v5958 = vsel %vm5733, %v5719, -inf
      %v5959 = vmax.f32 %v5951, %v5958
      %v5960 = vsel %vm5733, %v5720, -inf
      %v5961 = vmax.f32 %v5953, %v5960
      %v5962 = vsel %vm5733, %v5721, -inf
      %v5963 = vmax.f32 %v5955, %v5962
      %v5964 = vsel %vm5733, %v5722, -inf
      %v5965 = vmax.f32 %v5957, %v5964
      %v5966 = vsel %vm5733, %v5723, -inf
      %v5967 = vmax.f32 %v5959, %v5966
      %v5968 = vsel %vm5733, %v5724, -inf
      %v5969 = vmax.f32 %v5961, %v5968
      %v5970 = vsel %vm5733, %v5725, -inf
      %v5971 = vmax.f32 %v5963, %v5970
      %v5972 = vsel %vm5733, %v5726, -inf
      %v5973 = vmax.f32 %v5965, %v5972
      %v5974 = vsel %vm5733, %v5727, -inf
      %v5975 = vmax.f32 %v5967, %v5974
      %v5976 = vsel %vm5733, %v5728, -inf
      %v5977 = vmax.f32 %v5969, %v5976
      %v5978 = vsel %vm5733, %v5729, -inf
      %v5979 = vmax.f32 %v5971, %v5978
      %v5980 = vsel %vm5733, %v5730, -inf
      %v5981 = vmax.f32 %v5973, %v5980
      %v5982 = vsel %vm5733, %v5731, -inf
      %v5983 = vmax.f32 %v5975, %v5982
      %v5984 = vsel %vm5733, %v5732, -inf
      %v5985 = vmax.f32 %v5977, %v5984
      %v5986 = vmax.f32 %v5979, %v5981
      %v5987 = vmax.f32 %v5983, %v5985
      %v5988 = vmax.f32 %v5986, %v5987
      %v5989 = vmax.f32 %v2848, %v5988
      %v5990 = vsel %vm4837, %v4968, 1.0
      %v5991 = vsel %vm4838, %v4972, 1.0
      %v5992 = vsel %vm4839, %v4976, 1.0
      %v5993 = vsel %vm4840, %v4980, 1.0
      %v5994 = vsel %vm4841, %v4984, 1.0
      %v5995 = vsel %vm4842, %v4988, 1.0
      %v5996 = vsel %vm4843, %v4992, 1.0
      %v5997 = vsel %vm4844, %v4996, 1.0
      %v5998 = vsel %vm4845, %v5000, 1.0
      %v5999 = vsel %vm4846, %v5004, 1.0
      %v6000 = vsel %vm4847, %v5008, 1.0
      %v6001 = vsel %vm4848, %v5012, 1.0
      %v6002 = vsel %vm4849, %v5016, 1.0
      %v6003 = vsel %vm4850, %v5020, 1.0
      %v6004 = vsel %vm4851, %v5024, 1.0
      %v6005 = vsel %vm4852, %v5028, 1.0
      %v6006 = vsel %vm4853, %v5032, 1.0
      %v6007 = vsel %vm4854, %v5036, 1.0
      %v6008 = vsel %vm4855, %v5040, 1.0
      %v6009 = vsel %vm4856, %v5044, 1.0
      %v6010 = vsel %vm4857, %v5048, 1.0
      %v6011 = vsel %vm4858, %v5052, 1.0
      %v6012 = vsel %vm4859, %v5056, 1.0
      %v6013 = vsel %vm4860, %v5060, 1.0
      %v6014 = vsel %vm4861, %v5064, 1.0
      %v6015 = vsel %vm4862, %v5068, 1.0
      %v6016 = vsel %vm4863, %v5072, 1.0
      %v6017 = vsel %vm4864, %v5076, 1.0
      %v6018 = vsel %vm4865, %v5080, 1.0
      %v6019 = vsel %vm4866, %v5084, 1.0
      %v6020 = vsel %vm4867, %v5088, 1.0
      %v6021 = vsel %vm4868, %v5092, 1.0
      %v6022 = vsel %vm4869, %v5096, 1.0
      %v6023 = vsel %vm4870, %v5100, 1.0
      %v6024 = vsel %vm4871, %v5104, 1.0
      %v6025 = vsel %vm4872, %v5108, 1.0
      %v6026 = vsel %vm4873, %v5112, 1.0
      %v6027 = vsel %vm4874, %v5116, 1.0
      %v6028 = vsel %vm4875, %v5120, 1.0
      %v6029 = vsel %vm4876, %v5124, 1.0
      %v6030 = vsel %vm4877, %v5128, 1.0
      %v6031 = vsel %vm4878, %v5132, 1.0
      %v6032 = vsel %vm4879, %v5136, 1.0
      %v6033 = vsel %vm4880, %v5140, 1.0
      %v6034 = vsel %vm4881, %v5144, 1.0
      %v6035 = vsel %vm4882, %v5148, 1.0
      %v6036 = vsel %vm4883, %v5152, 1.0
      %v6037 = vsel %vm4884, %v5156, 1.0
      %v6038 = vsel %vm4885, %v5160, 1.0
      %v6039 = vsel %vm4886, %v5164, 1.0
      %v6040 = vsel %vm4887, %v5168, 1.0
      %v6041 = vsel %vm4888, %v5172, 1.0
      %v6042 = vsel %vm4889, %v5176, 1.0
      %v6043 = vsel %vm4890, %v5180, 1.0
      %v6044 = vsel %vm4891, %v5184, 1.0
      %v6045 = vsel %vm4892, %v5188, 1.0
      %v6046 = vsel %vm4893, %v5192, 1.0
      %v6047 = vsel %vm4894, %v5196, 1.0
      %v6048 = vsel %vm4895, %v5200, 1.0
      %v6049 = vsel %vm4896, %v5204, 1.0
      %v6050 = vsel %vm4897, %v5208, 1.0
      %v6051 = vsel %vm4898, %v5212, 1.0
      %v6052 = vsel %vm4899, %v5216, 1.0
      %v6053 = vsel %vm4900, %v5220, 1.0
      %v6054 = vsel %vm4901, %v5224, 1.0
      %v6055 = vsel %vm4902, %v5228, 1.0
      %v6056 = vsel %vm4903, %v5232, 1.0
      %v6057 = vsel %vm4904, %v5236, 1.0
      %v6058 = vsel %vm4905, %v5240, 1.0
      %v6059 = vsel %vm4906, %v5244, 1.0
      %v6060 = vsel %vm4907, %v5248, 1.0
      %v6061 = vsel %vm4908, %v5252, 1.0
      %v6062 = vsel %vm4909, %v5256, 1.0
      %v6063 = vsel %vm4910, %v5260, 1.0
      %v6064 = vsel %vm4911, %v5264, 1.0
      %v6065 = vsel %vm4912, %v5268, 1.0
      %v6066 = vsel %vm4913, %v5272, 1.0
      %v6067 = vsel %vm4914, %v5276, 1.0
      %v6068 = vsel %vm4915, %v5280, 1.0
      %v6069 = vsel %vm4916, %v5284, 1.0
      %v6070 = vsel %vm4917, %v5288, 1.0
      %v6071 = vsel %vm4918, %v5292, 1.0
      %v6072 = vsel %vm4919, %v5296, 1.0
      %v6073 = vsel %vm4920, %v5300, 1.0
      %v6074 = vsel %vm4921, %v5304, 1.0
      %v6075 = vsel %vm4922, %v5308, 1.0
      %v6076 = vsel %vm4923, %v5312, 1.0
      %v6077 = vsel %vm4924, %v5316, 1.0
      %v6078 = vsel %vm4925, %v5320, 1.0
      %v6079 = vsel %vm4926, %v5324, 1.0
      %v6080 = vsel %vm4927, %v5328, 1.0
      %v6081 = vsel %vm4928, %v5332, 1.0
      %v6082 = vsel %vm4929, %v5336, 1.0
      %v6083 = vsel %vm4930, %v5340, 1.0
      %v6084 = vsel %vm4931, %v5344, 1.0
      %v6085 = vsel %vm4932, %v5348, 1.0
      %v6086 = vsel %vm4933, %v5352, 1.0
      %v6087 = vsel %vm4934, %v5356, 1.0
      %v6088 = vsel %vm4935, %v5360, 1.0
      %v6089 = vsel %vm4936, %v5364, 1.0
      %v6090 = vsel %vm4937, %v5368, 1.0
      %v6091 = vsel %vm4938, %v5372, 1.0
      %v6092 = vsel %vm4939, %v5376, 1.0
      %v6093 = vsel %vm4940, %v5380, 1.0
      %v6094 = vsel %vm4941, %v5384, 1.0
      %v6095 = vsel %vm4942, %v5388, 1.0
      %v6096 = vsel %vm4943, %v5392, 1.0
      %v6097 = vsel %vm4944, %v5396, 1.0
      %v6098 = vsel %vm4945, %v5400, 1.0
      %v6099 = vsel %vm4946, %v5404, 1.0
      %v6100 = vsel %vm4947, %v5408, 1.0
      %v6101 = vsel %vm4948, %v5412, 1.0
      %v6102 = vsel %vm4949, %v5416, 1.0
      %v6103 = vsel %vm4950, %v5420, 1.0
      %v6104 = vsel %vm4951, %v5424, 1.0
      %v6105 = vsel %vm4952, %v5428, 1.0
      %v6106 = vsel %vm4953, %v5432, 1.0
      %v6107 = vsel %vm4954, %v5436, 1.0
      %v6108 = vsel %vm4955, %v5440, 1.0
      %v6109 = vsel %vm4956, %v5444, 1.0
      %v6110 = vsel %vm4957, %v5448, 1.0
      %v6111 = vsel %vm4958, %v5452, 1.0
      %v6112 = vsel %vm4959, %v5456, 1.0
      %v6113 = vsel %vm4960, %v5460, 1.0
      %v6114 = vsel %vm4961, %v5464, 1.0
      %v6115 = vsel %vm4962, %v5468, 1.0
      %v6116 = vsel %vm4963, %v5472, 1.0
      %v6117 = vsel %vm4964, %v5476, 1.0
      %v6118 = vsel %vm5733, %v5990, inf
      %v6119 = vsel %vm5733, %v5991, inf
      %v6120 = vsel %vm5733, %v5992, inf
      %v6121 = vsel %vm5733, %v5993, inf
      %v6122 = vsel %vm5733, %v5994, inf
      %v6123 = vmin.f32 %v6118, %v6122
      %v6124 = vsel %vm5733, %v5995, inf
      %v6125 = vmin.f32 %v6119, %v6124
      %v6126 = vsel %vm5733, %v5996, inf
      %v6127 = vmin.f32 %v6120, %v6126
      %v6128 = vsel %vm5733, %v5997, inf
      %v6129 = vmin.f32 %v6121, %v6128
      %v6130 = vsel %vm5733, %v5998, inf
      %v6131 = vmin.f32 %v6123, %v6130
      %v6132 = vsel %vm5733, %v5999, inf
      %v6133 = vmin.f32 %v6125, %v6132
      %v6134 = vsel %vm5733, %v6000, inf
      %v6135 = vmin.f32 %v6127, %v6134
      %v6136 = vsel %vm5733, %v6001, inf
      %v6137 = vmin.f32 %v6129, %v6136
      %v6138 = vsel %vm5733, %v6002, inf
      %v6139 = vmin.f32 %v6131, %v6138
      %v6140 = vsel %vm5733, %v6003, inf
      %v6141 = vmin.f32 %v6133, %v6140
      %v6142 = vsel %vm5733, %v6004, inf
      %v6143 = vmin.f32 %v6135, %v6142
      %v6144 = vsel %vm5733, %v6005, inf
      %v6145 = vmin.f32 %v6137, %v6144
      %v6146 = vsel %vm5733, %v6006, inf
      %v6147 = vmin.f32 %v6139, %v6146
      %v6148 = vsel %vm5733, %v6007, inf
      %v6149 = vmin.f32 %v6141, %v6148
      %v6150 = vsel %vm5733, %v6008, inf
      %v6151 = vmin.f32 %v6143, %v6150
      %v6152 = vsel %vm5733, %v6009, inf
      %v6153 = vmin.f32 %v6145, %v6152
      %v6154 = vsel %vm5733, %v6010, inf
      %v6155 = vmin.f32 %v6147, %v6154
      %v6156 = vsel %vm5733, %v6011, inf
      %v6157 = vmin.f32 %v6149, %v6156
      %v6158 = vsel %vm5733, %v6012, inf
      %v6159 = vmin.f32 %v6151, %v6158
      %v6160 = vsel %vm5733, %v6013, inf
      %v6161 = vmin.f32 %v6153, %v6160
      %v6162 = vsel %vm5733, %v6014, inf
      %v6163 = vmin.f32 %v6155, %v6162
      %v6164 = vsel %vm5733, %v6015, inf
      %v6165 = vmin.f32 %v6157, %v6164
      %v6166 = vsel %vm5733, %v6016, inf
      %v6167 = vmin.f32 %v6159, %v6166
      %v6168 = vsel %vm5733, %v6017, inf
      %v6169 = vmin.f32 %v6161, %v6168
      %v6170 = vsel %vm5733, %v6018, inf
      %v6171 = vmin.f32 %v6163, %v6170
      %v6172 = vsel %vm5733, %v6019, inf
      %v6173 = vmin.f32 %v6165, %v6172
      %v6174 = vsel %vm5733, %v6020, inf
      %v6175 = vmin.f32 %v6167, %v6174
      %v6176 = vsel %vm5733, %v6021, inf
      %v6177 = vmin.f32 %v6169, %v6176
      %v6178 = vsel %vm5733, %v6022, inf
      %v6179 = vmin.f32 %v6171, %v6178
      %v6180 = vsel %vm5733, %v6023, inf
      %v6181 = vmin.f32 %v6173, %v6180
      %v6182 = vsel %vm5733, %v6024, inf
      %v6183 = vmin.f32 %v6175, %v6182
      %v6184 = vsel %vm5733, %v6025, inf
      %v6185 = vmin.f32 %v6177, %v6184
      %v6186 = vsel %vm5733, %v6026, inf
      %v6187 = vmin.f32 %v6179, %v6186
      %v6188 = vsel %vm5733, %v6027, inf
      %v6189 = vmin.f32 %v6181, %v6188
      %v6190 = vsel %vm5733, %v6028, inf
      %v6191 = vmin.f32 %v6183, %v6190
      %v6192 = vsel %vm5733, %v6029, inf
      %v6193 = vmin.f32 %v6185, %v6192
      %v6194 = vsel %vm5733, %v6030, inf
      %v6195 = vmin.f32 %v6187, %v6194
      %v6196 = vsel %vm5733, %v6031, inf
      %v6197 = vmin.f32 %v6189, %v6196
      %v6198 = vsel %vm5733, %v6032, inf
      %v6199 = vmin.f32 %v6191, %v6198
      %v6200 = vsel %vm5733, %v6033, inf
      %v6201 = vmin.f32 %v6193, %v6200
      %v6202 = vsel %vm5733, %v6034, inf
      %v6203 = vmin.f32 %v6195, %v6202
      %v6204 = vsel %vm5733, %v6035, inf
      %v6205 = vmin.f32 %v6197, %v6204
      %v6206 = vsel %vm5733, %v6036, inf
      %v6207 = vmin.f32 %v6199, %v6206
      %v6208 = vsel %vm5733, %v6037, inf
      %v6209 = vmin.f32 %v6201, %v6208
      %v6210 = vsel %vm5733, %v6038, inf
      %v6211 = vmin.f32 %v6203, %v6210
      %v6212 = vsel %vm5733, %v6039, inf
      %v6213 = vmin.f32 %v6205, %v6212
      %v6214 = vsel %vm5733, %v6040, inf
      %v6215 = vmin.f32 %v6207, %v6214
      %v6216 = vsel %vm5733, %v6041, inf
      %v6217 = vmin.f32 %v6209, %v6216
      %v6218 = vsel %vm5733, %v6042, inf
      %v6219 = vmin.f32 %v6211, %v6218
      %v6220 = vsel %vm5733, %v6043, inf
      %v6221 = vmin.f32 %v6213, %v6220
      %v6222 = vsel %vm5733, %v6044, inf
      %v6223 = vmin.f32 %v6215, %v6222
      %v6224 = vsel %vm5733, %v6045, inf
      %v6225 = vmin.f32 %v6217, %v6224
      %v6226 = vsel %vm5733, %v6046, inf
      %v6227 = vmin.f32 %v6219, %v6226
      %v6228 = vsel %vm5733, %v6047, inf
      %v6229 = vmin.f32 %v6221, %v6228
      %v6230 = vsel %vm5733, %v6048, inf
      %v6231 = vmin.f32 %v6223, %v6230
      %v6232 = vsel %vm5733, %v6049, inf
      %v6233 = vmin.f32 %v6225, %v6232
      %v6234 = vsel %vm5733, %v6050, inf
      %v6235 = vmin.f32 %v6227, %v6234
      %v6236 = vsel %vm5733, %v6051, inf
      %v6237 = vmin.f32 %v6229, %v6236
      %v6238 = vsel %vm5733, %v6052, inf
      %v6239 = vmin.f32 %v6231, %v6238
      %v6240 = vsel %vm5733, %v6053, inf
      %v6241 = vmin.f32 %v6233, %v6240
      %v6242 = vsel %vm5733, %v6054, inf
      %v6243 = vmin.f32 %v6235, %v6242
      %v6244 = vsel %vm5733, %v6055, inf
      %v6245 = vmin.f32 %v6237, %v6244
      %v6246 = vsel %vm5733, %v6056, inf
      %v6247 = vmin.f32 %v6239, %v6246
      %v6248 = vsel %vm5733, %v6057, inf
      %v6249 = vmin.f32 %v6241, %v6248
      %v6250 = vsel %vm5733, %v6058, inf
      %v6251 = vmin.f32 %v6243, %v6250
      %v6252 = vsel %vm5733, %v6059, inf
      %v6253 = vmin.f32 %v6245, %v6252
      %v6254 = vsel %vm5733, %v6060, inf
      %v6255 = vmin.f32 %v6247, %v6254
      %v6256 = vsel %vm5733, %v6061, inf
      %v6257 = vmin.f32 %v6249, %v6256
      %v6258 = vsel %vm5733, %v6062, inf
      %v6259 = vmin.f32 %v6251, %v6258
      %v6260 = vsel %vm5733, %v6063, inf
      %v6261 = vmin.f32 %v6253, %v6260
      %v6262 = vsel %vm5733, %v6064, inf
      %v6263 = vmin.f32 %v6255, %v6262
      %v6264 = vsel %vm5733, %v6065, inf
      %v6265 = vmin.f32 %v6257, %v6264
      %v6266 = vsel %vm5733, %v6066, inf
      %v6267 = vmin.f32 %v6259, %v6266
      %v6268 = vsel %vm5733, %v6067, inf
      %v6269 = vmin.f32 %v6261, %v6268
      %v6270 = vsel %vm5733, %v6068, inf
      %v6271 = vmin.f32 %v6263, %v6270
      %v6272 = vsel %vm5733, %v6069, inf
      %v6273 = vmin.f32 %v6265, %v6272
      %v6274 = vsel %vm5733, %v6070, inf
      %v6275 = vmin.f32 %v6267, %v6274
      %v6276 = vsel %vm5733, %v6071, inf
      %v6277 = vmin.f32 %v6269, %v6276
      %v6278 = vsel %vm5733, %v6072, inf
      %v6279 = vmin.f32 %v6271, %v6278
      %v6280 = vsel %vm5733, %v6073, inf
      %v6281 = vmin.f32 %v6273, %v6280
      %v6282 = vsel %vm5733, %v6074, inf
      %v6283 = vmin.f32 %v6275, %v6282
      %v6284 = vsel %vm5733, %v6075, inf
      %v6285 = vmin.f32 %v6277, %v6284
      %v6286 = vsel %vm5733, %v6076, inf
      %v6287 = vmin.f32 %v6279, %v6286
      %v6288 = vsel %vm5733, %v6077, inf
      %v6289 = vmin.f32 %v6281, %v6288
      %v6290 = vsel %vm5733, %v6078, inf
      %v6291 = vmin.f32 %v6283, %v6290
      %v6292 = vsel %vm5733, %v6079, inf
      %v6293 = vmin.f32 %v6285, %v6292
      %v6294 = vsel %vm5733, %v6080, inf
      %v6295 = vmin.f32 %v6287, %v6294
      %v6296 = vsel %vm5733, %v6081, inf
      %v6297 = vmin.f32 %v6289, %v6296
      %v6298 = vsel %vm5733, %v6082, inf
      %v6299 = vmin.f32 %v6291, %v6298
      %v6300 = vsel %vm5733, %v6083, inf
      %v6301 = vmin.f32 %v6293, %v6300
      %v6302 = vsel %vm5733, %v6084, inf
      %v6303 = vmin.f32 %v6295, %v6302
      %v6304 = vsel %vm5733, %v6085, inf
      %v6305 = vmin.f32 %v6297, %v6304
      %v6306 = vsel %vm5733, %v6086, inf
      %v6307 = vmin.f32 %v6299, %v6306
      %v6308 = vsel %vm5733, %v6087, inf
      %v6309 = vmin.f32 %v6301, %v6308
      %v6310 = vsel %vm5733, %v6088, inf
      %v6311 = vmin.f32 %v6303, %v6310
      %v6312 = vsel %vm5733, %v6089, inf
      %v6313 = vmin.f32 %v6305, %v6312
      %v6314 = vsel %vm5733, %v6090, inf
      %v6315 = vmin.f32 %v6307, %v6314
      %v6316 = vsel %vm5733, %v6091, inf
      %v6317 = vmin.f32 %v6309, %v6316
      %v6318 = vsel %vm5733, %v6092, inf
      %v6319 = vmin.f32 %v6311, %v6318
      %v6320 = vsel %vm5733, %v6093, inf
      %v6321 = vmin.f32 %v6313, %v6320
      %v6322 = vsel %vm5733, %v6094, inf
      %v6323 = vmin.f32 %v6315, %v6322
      %v6324 = vsel %vm5733, %v6095, inf
      %v6325 = vmin.f32 %v6317, %v6324
      %v6326 = vsel %vm5733, %v6096, inf
      %v6327 = vmin.f32 %v6319, %v6326
      %v6328 = vsel %vm5733, %v6097, inf
      %v6329 = vmin.f32 %v6321, %v6328
      %v6330 = vsel %vm5733, %v6098, inf
      %v6331 = vmin.f32 %v6323, %v6330
      %v6332 = vsel %vm5733, %v6099, inf
      %v6333 = vmin.f32 %v6325, %v6332
      %v6334 = vsel %vm5733, %v6100, inf
      %v6335 = vmin.f32 %v6327, %v6334
      %v6336 = vsel %vm5733, %v6101, inf
      %v6337 = vmin.f32 %v6329, %v6336
      %v6338 = vsel %vm5733, %v6102, inf
      %v6339 = vmin.f32 %v6331, %v6338
      %v6340 = vsel %vm5733, %v6103, inf
      %v6341 = vmin.f32 %v6333, %v6340
      %v6342 = vsel %vm5733, %v6104, inf
      %v6343 = vmin.f32 %v6335, %v6342
      %v6344 = vsel %vm5733, %v6105, inf
      %v6345 = vmin.f32 %v6337, %v6344
      %v6346 = vsel %vm5733, %v6106, inf
      %v6347 = vmin.f32 %v6339, %v6346
      %v6348 = vsel %vm5733, %v6107, inf
      %v6349 = vmin.f32 %v6341, %v6348
      %v6350 = vsel %vm5733, %v6108, inf
      %v6351 = vmin.f32 %v6343, %v6350
      %v6352 = vsel %vm5733, %v6109, inf
      %v6353 = vmin.f32 %v6345, %v6352
      %v6354 = vsel %vm5733, %v6110, inf
      %v6355 = vmin.f32 %v6347, %v6354
      %v6356 = vsel %vm5733, %v6111, inf
      %v6357 = vmin.f32 %v6349, %v6356
      %v6358 = vsel %vm5733, %v6112, inf
      %v6359 = vmin.f32 %v6351, %v6358
      %v6360 = vsel %vm5733, %v6113, inf
      %v6361 = vmin.f32 %v6353, %v6360
      %v6362 = vsel %vm5733, %v6114, inf
      %v6363 = vmin.f32 %v6355, %v6362
      %v6364 = vsel %vm5733, %v6115, inf
      %v6365 = vmin.f32 %v6357, %v6364
      %v6366 = vsel %vm5733, %v6116, inf
      %v6367 = vmin.f32 %v6359, %v6366
      %v6368 = vsel %vm5733, %v6117, inf
      %v6369 = vmin.f32 %v6361, %v6368
      %v6370 = vmin.f32 %v6363, %v6365
      %v6371 = vmin.f32 %v6367, %v6369
      %v6372 = vmin.f32 %v6370, %v6371
      %v6373 = vmin.f32 %v2849, %v6372
    $region62: #{tpu_custom_call.1} parent=1 // loop_footer
      %s2847 = sadd.s32 1, %s2843
    $region63: #{tpu_custom_call.1} parent=1 // loop_footer_branch
      %2842 = sbr.rel target = $region59
    $region64: #{tpu_custom_call.1} parent=1 // loop_exit
      _
    %v6374 = vsub.f32 %v2848, %v2849
    %6376 = vrot.lane.b32.xlu0 %v2841, 16
    %v6377 = vpop.permute.xlu0 %6376
    %v6379 = vsel %vm2699, %v6374, %v6377
    %v6380 = vld [vmem:[%s12] sm:$0xff]
    %v6381 = vld [vmem:[%s12 + $0x8] sm:$0xff]
    %v6382 = vld [vmem:[%s12 + $0x10] sm:$0xff]
    %v6383 = vld [vmem:[%s12 + $0x18] sm:$0xff]
    %v6384 = vld [vmem:[%s13] sm:$0x1]
    %v6386 = vlaneseq
    %v6387 = vshrl.u32 %v6386, 7
    %v6388 = vsub.s32 0, %v6387
    %v6389 = vrot.slane %v6384, %v6388
    %v6392 = vsel %vm1504, %v6379, 0
    %6394 = vmatprep.subr.mxu0 0.0
    %6395 = vmatpush1.msra.mxu0 %v6380
    %6396 = vmatprep.subr.mxu0 0.0
    %6397 = vmatpush1.msra.mxu0 %v6381
    %6398 = vmatprep.subr.mxu0 0.0
    %6399 = vmatpush1.msra.mxu0 %v6382
    %6400 = vmatprep.subr.mxu0 0.0
    %6401 = vmatpush1.msra.mxu0 %v6383
    %6402 = vmatprep.subr.mxu0 0.0
    %6403 = vmatpush1.msra.mxu0 0.0
    %6404 = vmatprep.subr.mxu0 0.0
    %6405 = vmatpush1.msra.mxu0 0.0
    %6406 = vmatprep.subr.mxu0 0.0
    %6407 = vmatpush1.msra.mxu0 0.0
    %6408 = vmatprep.subr.mxu0 0.0
    %6409 = vmatpush1.msra.mxu0 0.0
    %6410 = vmatprep.subr.mxu0 0.0
    %6411 = vmatpush1.msra.mxu0 0.0
    %6412 = vmatprep.subr.mxu0 0.0
    %6413 = vmatpush1.msra.mxu0 0.0
    %6414 = vmatprep.subr.mxu0 0.0
    %6415 = vmatpush1.msra.mxu0 0.0
    %6416 = vmatprep.subr.mxu0 0.0
    %6417 = vmatpush1.msra.mxu0 0.0
    %6418 = vmatprep.subr.mxu0 0.0
    %6419 = vmatpush1.msra.mxu0 0.0
    %6420 = vmatprep.subr.mxu0 0.0
    %6421 = vmatpush1.msra.mxu0 0.0
    %6422 = vmatprep.subr.mxu0 0.0
    %6423 = vmatpush1.msra.mxu0 0.0
    %6424 = vmatprep.subr.mxu0 0.0
    %6425 = vmatpush1.msra.mxu0 0.0
    %6426 = vmatprep.subr.mxu0 0.0
    %6427 = vmatpush1.msra.mxu0 0.0
    %6428 = vmatprep.subr.mxu0 0.0
    %6429 = vmatpush1.msra.mxu0 0.0
    %6430 = vmatprep.subr.mxu0 0.0
    %6431 = vmatpush1.msra.mxu0 0.0
    %6432 = vmatprep.subr.mxu0 0.0
    %6433 = vmatpush1.msra.mxu0 0.0
    %6434 = vmatprep.subr.mxu0 0.0
    %6435 = vmatpush1.msra.mxu0 0.0
    %6436 = vmatprep.subr.mxu0 0.0
    %6437 = vmatpush1.msra.mxu0 0.0
    %6438 = vmatprep.subr.mxu0 0.0
    %6439 = vmatpush1.msra.mxu0 0.0
    %6440 = vmatprep.subr.mxu0 0.0
    %6441 = vmatpush1.msra.mxu0 0.0
    %6442 = vmatprep.subr.mxu0 0.0
    %6443 = vmatpush1.msra.mxu0 0.0
    %6444 = vmatprep.subr.mxu0 0.0
    %6445 = vmatpush1.msra.mxu0 0.0
    %6446 = vmatprep.subr.mxu0 0.0
    %6447 = vmatpush1.msra.mxu0 0.0
    %6448 = vmatprep.subr.mxu0 0.0
    %6449 = vmatpush1.msra.mxu0 0.0
    %6450 = vmatprep.subr.mxu0 0.0
    %6451 = vmatpush1.msra.mxu0 0.0
    %6452 = vmatprep.subr.mxu0 0.0
    %6453 = vmatpush1.msra.mxu0 0.0
    %6454 = vmatprep.subr.mxu0 0.0
    %6455 = vmatpush1.msra.mxu0 0.0
    %6456 = vmatprep.subr.mxu0 0.0
    %6457 = vmatpush1.msra.mxu0 0.0
    %6458 = vmatprep.mubr.f32.mxu0 0.0
    %6459 = vmatmul.mubr.f32.gmra.mrb[0].mxu0 %v6392
    %v6460 = vpop.f32.mrb[0].mxu0
    %v6461 = vadd.f32 %v6389, %v6460
    %v6462 = vpop.f32.mrb[0].mxu0
    %6463 = vdwg.mxu0
    %vm6464 = vcmask 254976
    %6465 = vst.msk [vmem:[#allocation3] sm:$0x3] %vm6464, %v6461
    // Predicated region
    $region65: #{tpu_custom_call.1} parent=1 // pred_check
      _
    $region66: #{tpu_custom_call.1} parent=1 // pred_check_branch
      %6467 = sbr.rel (0) target = $region68
    $region67: #{tpu_custom_call.1} parent=1 // pred_region
      %s6469 = ssub.s32 32, 32
      %6470 = vsyncadd [#allocation4], %s6469
      %s6472 = sshll.u32 [#allocation3], 4
      %s6473 = int_to_ptr.vmem [resolvable:$true] %s6472
      %6475 = dma.vmem_to_hbm [thread:$0]  %s6473, 32, %s14, [#allocation4]
    $region68: #{tpu_custom_call.1} parent=1 // pred_fallthru
      _
    // Predicated region
    $region69: #{tpu_custom_call.1} parent=1 // pred_check
      _
    $region70: #{tpu_custom_call.1} parent=1 // pred_check_branch
      %6477 = sbr.rel (0) target = $region72
    $region71: #{tpu_custom_call.1} parent=1 // pred_region
      %6478 = dma.done [#allocation4], 32
    $region72: #{tpu_custom_call.1} parent=1 // pred_fallthru
      _
    %6479 = vsyncpa [#allocation4], 1

</llo_original>
